<compile_context>
chip_gen: v5e
topology: v5e:2x2
jax: 0.10.0
libtpu: 0.0.40
codegen_flags: <defaults>
</compile_context>

<pallas_src>
import jax
import jax.numpy as jnp
from jax.experimental import pallas as pl
from jax.experimental.pallas import tpu as pltpu


def _round_up(x, m):
    return ((x + m - 1) // m) * m


def _vmem_budget(byte_sizes):
    need = int(sum(byte_sizes))
    return int(min(100 * 1024 * 1024, max(16 * 1024 * 1024, 2 * need)))


# ---------------------------------------------------------------------------
# GRU recurrence kernel (one grid step == Tc timesteps, length-masked)
# ---------------------------------------------------------------------------
def _gru_chunk_kernel(len_ref, x_ref, h0_ref, wih_ref, whh_ref, bgi_ref, bhn_ref,
                      out_ref, hfin_ref, h_scr, gi_scr, o_scr):
    tb = pl.program_id(1)                       # time-chunk index (sequential axis)
    tc, bblk, hp = x_ref.shape                  # (Tc, Bblk, Hp); gate sections are Hp wide

    @pl.when(tb == 0)
    def _():
        h_scr[...] = h0_ref[...]

    # Hoisted input-side gate GEMM for the whole chunk: (Tc*Bblk, Hp) @ (Hp, 3Hp).
    gi = jnp.dot(x_ref[...].reshape(tc * bblk, hp), wih_ref[...],
                 preferred_element_type=jnp.float32)
    gi_scr[...] = (gi + bgi_ref[...]).reshape(tc, bblk, 3 * hp)

    lengths = len_ref[...]                                  # (Bblk, 1) int32
    b_hn = jnp.broadcast_to(bhn_ref[...], (bblk, hp))       # hoisted broadcast

    def step(j, carry):
        h_prev = h_scr[...]
        gh = jnp.dot(h_prev.astype(jnp.bfloat16), whh_ref[...],
                     preferred_element_type=jnp.float32)    # (Bblk, 3Hp)
        gij = gi_scr[j]                                     # (Bblk, 3Hp), lane-aligned slices
        r = jax.nn.sigmoid(gij[:, 0:hp] + gh[:, 0:hp])
        z = jax.nn.sigmoid(gij[:, hp:2 * hp] + gh[:, hp:2 * hp])
        n = jnp.tanh(gij[:, 2 * hp:3 * hp] + r * (gh[:, 2 * hp:3 * hp] + b_hn))
        h_new = (1.0 - z) * n + z * h_prev

        valid = (tb * tc + j) < lengths                     # packed-sequence mask (Bblk, 1)
        h_scr[...] = jnp.where(valid, h_new, h_prev)        # freeze state past length
        o_scr[:, pl.ds(j, 1), :] = (
            jnp.where(valid, h_new, 0.0).astype(o_scr.dtype)[:, None, :])
        return carry

    jax.lax.fori_loop(0, tc, step, 0, unroll=True)

    out_ref[...] = o_scr[...]                   # one full-tile batch-major store per chunk

    @pl.when(tb == pl.num_programs(1) - 1)
    def _():
        hfin_ref[...] = h_scr[...]              # hidden at each sequence's last valid step


# ---------------------------------------------------------------------------
# Vocab-tiled projection + online log_softmax
#   grid axis 1 has 2*nv steps:
#     k <  nv : accumulate running max / sum-exp over vocab tile k
#     k >= nv : recompute logits for vocab tile k-nv and write normalized output
# ---------------------------------------------------------------------------
def _proj_logsoftmax_kernel(x_ref, w_ref, b_ref, o_ref, m_scr, l_scr):
    k = pl.program_id(1)
    nv = pl.num_programs(1) // 2

    @pl.when(k == 0)
    def _():
        m_scr[...] = jnp.full(m_scr.shape, -jnp.inf, m_scr.dtype)
        l_scr[...] = jnp.zeros(l_scr.shape, l_scr.dtype)

    logits = jnp.dot(x_ref[...], w_ref[...],
                     preferred_element_type=jnp.float32) + b_ref[...]

    @pl.when(k < nv)
    def _():
        m_prev = m_scr[...]
        m_new = jnp.maximum(m_prev, jnp.max(logits, axis=-1, keepdims=True))
        l_scr[...] = (l_scr[...] * jnp.exp(m_prev - m_new)
                      + jnp.sum(jnp.exp(logits - m_new), axis=-1, keepdims=True))
        m_scr[...] = m_new

    @pl.when(k >= nv)
    def _():
        lse = m_scr[...] + jnp.log(l_scr[...])
        o_ref[...] = (logits - lse).astype(o_ref.dtype)


# ---------------------------------------------------------------------------
# Wrapper
# ---------------------------------------------------------------------------
def plain_decoder_forward(y, y_lengths, hid, params, *, t_chunk=32, num_batch_shards=1):
    """Forward pass of PlainDecoder. Returns (log_probs (B, Tmax, V), hid (1, B, H))."""
    B, _ = y.shape
    H = params["embed"].shape[1]
    V = params["w_out"].shape[1]
    f32, bf16 = jnp.float32, jnp.bfloat16

    # pad_packed_sequence trims the output to the longest sequence in the batch.
    # (Data-dependent; requires concrete y_lengths, i.e. eager / static lengths.)
    Tmax = int(jnp.max(y_lengths))

    Tc = _round_up(max(min(t_chunk, Tmax), 1), 8)    # timesteps per grid step
    Tp = _round_up(max(Tmax, 1), Tc)                 # time padded to a chunk multiple
    Bp = _round_up(B, 8)                             # batch padded to a full sublane
    Hp = _round_up(H, 128)                           # lane-aligned hidden / gate sections
    Vp = _round_up(V, 128)                           # lane-dense vocab

    nb = num_batch_shards if (num_batch_shards > 1
                              and Bp % (8 * num_batch_shards) == 0) else 1
    Bblk = Bp // nb                                  # >1 shard only useful on v7x (2 TCs)

    # ---- parameters: pad each gate to Hp, concat gates, fold r/z biases ----
    def pad_mat(w):                                  # (H, H) -> (Hp, Hp)
        return jnp.zeros((Hp, Hp), f32).at[:H, :H].set(w)

    def pad_vec(v):                                  # (1, H) -> (1, Hp)
        return jnp.zeros((1, Hp), f32).at[:, :H].set(v)

    wih_cat = jnp.concatenate([pad_mat(params["w_ih"][g]) for g in range(3)], axis=1)
    whh_cat = jnp.concatenate([pad_mat(params["w_hh"][g]) for g in range(3)], axis=1)
    b_gi = jnp.concatenate([pad_vec(params["b_ih"][0] + params["b_hh"][0]),
                            pad_vec(params["b_ih"][1] + params["b_hh"][1]),
                            pad_vec(params["b_ih"][2])], axis=1)           # (1, 3Hp)
    b_hn = pad_vec(params["b_hh"][2])                                      # (1, Hp)

    w_out_p = jnp.zeros((Hp, Vp), f32).at[:H, :V].set(params["w_out"])
    b_out_p = jnp.full((1, Vp), -1e9, f32).at[:, :V].set(params["b_out"])

    # ---- embedding gather, emitted time-major so the GRU reads contiguous chunks ----
    embed_p = jnp.zeros((params["embed"].shape[0], Hp), f32).at[:, :H].set(params["embed"])
    y_pad = jnp.zeros((Bp, Tp), jnp.int32).at[:B, :Tmax].set(y[:, :Tmax])
    x_tm = jnp.take(embed_p, y_pad.T, axis=0).astype(bf16)                 # (Tp, Bp, Hp)
    # TODO(synk): dropout is identity in eval mode; training-mode dropout not implemented.

    lengths2d = jnp.zeros((Bp, 1), jnp.int32).at[:B, 0].set(y_lengths.astype(jnp.int32))
    h0 = jnp.zeros((Bp, Hp), f32).at[:B, :H].set(hid[0].astype(f32))

    gru_vmem = _vmem_budget([
        2 * Tc * Bblk * Hp * 2,          # x chunk (bf16, double-buffered)
        2 * 2 * Hp * 3 * Hp * 2,         # W_ih + W_hh (bf16, double-buffered)
        2 * Bblk * Hp * 4,               # h0
        2 * 8 * 3 * Hp * 4,              # biases (sublane-padded)
        2 * Bblk * Tc * Hp * 2,          # out chunk (bf16)
        2 * Bblk * Hp * 4,               # h_fin
        Bblk * Hp * 4,                   # h scratch
        Tc * Bblk * 3 * Hp * 4,          # gi scratch
        Bblk * Tc * Hp * 2,              # output chunk scratch
    ])

    # ---- masked GRU recurrence (chunked over time, batch-major bf16 output) ----
    out_seq, h_fin = pl.pallas_call(
        _gru_chunk_kernel,
        out_shape=(jax.ShapeDtypeStruct((Bp, Tp, Hp), bf16),
                   jax.ShapeDtypeStruct((Bp, Hp), f32)),
        grid_spec=pltpu.PrefetchScalarGridSpec(
            num_scalar_prefetch=0,
            grid=(nb, Tp // Tc),
            in_specs=[
                pl.BlockSpec((Bblk, 1), lambda b, t: (b, 0)),            # lengths
                pl.BlockSpec((Tc, Bblk, Hp), lambda b, t: (t, b, 0)),    # x chunk (time-major)
                pl.BlockSpec((Bblk, Hp), lambda b, t: (b, 0)),           # h0
                pl.BlockSpec((Hp, 3 * Hp), lambda b, t: (0, 0)),         # W_ih concat (bf16)
                pl.BlockSpec((Hp, 3 * Hp), lambda b, t: (0, 0)),         # W_hh concat (bf16)
                pl.BlockSpec((1, 3 * Hp), lambda b, t: (0, 0)),          # folded input bias
                pl.BlockSpec((1, Hp), lambda b, t: (0, 0)),              # b_hn
            ],
            out_specs=(pl.BlockSpec((Bblk, Tc, Hp), lambda b, t: (b, t, 0)),  # batch-major
                       pl.BlockSpec((Bblk, Hp), lambda b, t: (b, 0))),
            scratch_shapes=[pltpu.VMEM((Bblk, Hp), f32),
                            pltpu.VMEM((Tc, Bblk, 3 * Hp), f32),
                            pltpu.VMEM((Bblk, Tc, Hp), bf16)],
        ),
        compiler_params=pltpu.CompilerParams(
            dimension_semantics=("parallel", "arbitrary"),   # recurrence is sequential
            vmem_limit_bytes=gru_vmem),
    )(lengths2d, x_tm, h0,
      wih_cat.astype(bf16), whh_cat.astype(bf16), b_gi, b_hn)

    # ---- vocab-tiled projection + online log_softmax over batch-major rows ----
    R = Bp * Tp
    tile_r = 256                                     # fills MXU M-dim on all generations
    Rp = _round_up(R, tile_r)
    rows = out_seq.reshape(R, Hp)                    # contiguous, no transpose
    if Rp != R:
        rows = jnp.zeros((Rp, Hp), rows.dtype).at[:R].set(rows)

    tile_v = next(t for t in (2048, 1024, 512, 256, 128) if Vp % t == 0)
    nv = Vp // tile_v

    proj_vmem = _vmem_budget([
        2 * tile_r * Hp * 2,             # row tile (bf16)
        2 * Hp * tile_v * 2,             # W tile (bf16)
        2 * 8 * tile_v * 4,              # bias tile
        2 * tile_r * tile_v * 4,         # output tile (f32)
        2 * tile_r * 128 * 4,            # m/l accumulators (lane-padded)
    ])

    logp = pl.pallas_call(
        _proj_logsoftmax_kernel,
        out_shape=jax.ShapeDtypeStruct((Rp, Vp), f32),
        grid_spec=pltpu.PrefetchScalarGridSpec(
            num_scalar_prefetch=0,
            grid=(Rp // tile_r, 2 * nv),
            in_specs=[
                pl.BlockSpec((tile_r, Hp), lambda i, k: (i, 0)),          # resident row tile
                pl.BlockSpec((Hp, tile_v), lambda i, k: (0, k % nv)),     # vocab weight tile
                pl.BlockSpec((1, tile_v), lambda i, k: (0, k % nv)),      # vocab bias tile
            ],
            out_specs=pl.BlockSpec((tile_r, tile_v),
                                   lambda i, k: (i, jnp.maximum(k - nv, 0))),
            scratch_shapes=[pltpu.VMEM((tile_r, 1), f32),
                            pltpu.VMEM((tile_r, 1), f32)],
        ),
        compiler_params=pltpu.CompilerParams(
            dimension_semantics=("parallel", "arbitrary"),   # shards rows across TCs
            vmem_limit_bytes=proj_vmem),
    )(rows, w_out_p.astype(bf16), b_out_p)

    output = logp[:R].reshape(Bp, Tp, Vp)[:B, :Tmax, :V]
    hid_out = h_fin[:B, :H][None]                    # back to (1, B, H)
    return output, hid_out


if __name__ == "__main__":
    vocab_size, hidden_size = 50, 32
    B, T = 4, 8

    key = jax.random.PRNGKey(0)
    ks = jax.random.split(key, 9)
    s = 1.0 / (hidden_size ** 0.5)

    params = {
        # nn.Embedding(vocab, hidden): weight (V, H)
        "embed": jax.random.normal(ks[0], (vocab_size, hidden_size), jnp.float32),
        # nn.GRU(hidden, hidden): per-gate transposed weights (3, H_in, H_out), r/z/n order
        "w_ih": jax.random.uniform(ks[1], (3, hidden_size, hidden_size), jnp.float32, -s, s),
        "w_hh": jax.random.uniform(ks[2], (3, hidden_size, hidden_size), jnp.float32, -s, s),
        "b_ih": jax.random.uniform(ks[3], (3, 1, hidden_size), jnp.float32, -s, s),
        "b_hh": jax.random.uniform(ks[4], (3, 1, hidden_size), jnp.float32, -s, s),
        # nn.Linear(hidden, vocab): stored transposed (H, V), bias (1, V)
        "w_out": jax.random.uniform(ks[5], (hidden_size, vocab_size), jnp.float32, -s, s),
        "b_out": jax.random.uniform(ks[6], (1, vocab_size), jnp.float32, -s, s),
    }

    y = jax.random.randint(ks[7], (B, T), 0, vocab_size, dtype=jnp.int32)
    y_lengths = jnp.array([8, 5, 3, 6], dtype=jnp.int32)
    hid = jax.random.normal(ks[8], (1, B, hidden_size), jnp.float32)

    output, h_out = plain_decoder_forward(y, y_lengths, hid, params)
    jax.block_until_ready((output, h_out))

    Tmax = int(y_lengths.max())
    assert output.shape == (B, Tmax, vocab_size)
    assert h_out.shape == (1, B, hidden_size)
    # Robust numerical invariant (independent of bf16 matmul drift): each
    # log_softmax row must normalize, and the hidden state must be finite.
    probs_sum = jnp.exp(output).sum(-1)
    assert bool(jnp.all(jnp.abs(probs_sum - 1.0) < 2e-3))
    assert bool(jnp.all(jnp.isfinite(h_out)))
    print("KERNEL_OK")
</pallas_src>

<mosaic_0001>
module attributes {stable_mosaic.version = 11 : i64} {
  func.func @_gru_chunk_kernel(%arg0: i32, %arg1: i32, %arg2: memref<8x1xi32, #tpu.memory_space<vmem>>, %arg3: memref<8x8x128xbf16, #tpu.memory_space<vmem>>, %arg4: memref<8x128xf32, #tpu.memory_space<vmem>>, %arg5: memref<128x384xbf16, #tpu.memory_space<vmem>>, %arg6: memref<128x384xbf16, #tpu.memory_space<vmem>>, %arg7: memref<1x384xf32, #tpu.memory_space<vmem>>, %arg8: memref<1x128xf32, #tpu.memory_space<vmem>>, %arg9: memref<8x8x128xbf16, #tpu.memory_space<vmem>>, %arg10: memref<8x128xf32, #tpu.memory_space<vmem>>, %arg11: memref<8x128xf32, #tpu.memory_space<vmem>>, %arg12: memref<8x8x384xf32, #tpu.memory_space<vmem>>, %arg13: memref<8x8x128xbf16, #tpu.memory_space<vmem>>) attributes {dimension_semantics = [#tpu.dimension_semantics<parallel>, #tpu.dimension_semantics<arbitrary>], iteration_bounds = array<i64: 1, 1>, scalar_prefetch = 0 : i64, scratch_operands = 3 : i64, tpu.core_type = #tpu.core_type<tc>, window_params = [{transform_indices = @transform_0, window_bounds = array<i64: 8, 1>}, {transform_indices = @transform_1, window_bounds = array<i64: 8, 8, 128>}, {transform_indices = @transform_2, window_bounds = array<i64: 8, 128>}, {pipeline_mode = #tpu.pipeline_mode<synchronous>, transform_indices = @transform_3, window_bounds = array<i64: 128, 384>}, {pipeline_mode = #tpu.pipeline_mode<synchronous>, transform_indices = @transform_4, window_bounds = array<i64: 128, 384>}, {pipeline_mode = #tpu.pipeline_mode<synchronous>, transform_indices = @transform_5, window_bounds = array<i64: 1, 384>}, {pipeline_mode = #tpu.pipeline_mode<synchronous>, transform_indices = @transform_6, window_bounds = array<i64: 1, 128>}, {transform_indices = @transform_7, window_bounds = array<i64: 8, 8, 128>}, {transform_indices = @transform_8, window_bounds = array<i64: 8, 128>}]} {
    %c0_i32 = arith.constant 0 : i32
    %0 = arith.cmpi eq, %arg1, %c0_i32 : i32
    %1 = arith.extui %0 : i1 to i32
    %c0_i32_0 = arith.constant 0 : i32
    %2 = arith.cmpi ne, %1, %c0_i32_0 : i32
    scf.if %2 {
      %c0_151 = arith.constant 0 : index
      %c0_152 = arith.constant 0 : index
      %421 = vector.load %arg4[%c0_151, %c0_152] : memref<8x128xf32, #tpu.memory_space<vmem>>, vector<8x128xf32>
      %c0_153 = arith.constant 0 : index
      %c0_154 = arith.constant 0 : index
      %422 = vector.load %arg11[%c0_153, %c0_154] : memref<8x128xf32, #tpu.memory_space<vmem>>, vector<8x128xf32>
      tpu.vector_store %arg11[%c0_153, %c0_154], %421 {strides = array<i32>} : memref<8x128xf32, #tpu.memory_space<vmem>>, vector<8x128xf32>,
    } else {
    }
    %c0 = arith.constant 0 : index
    %c0_1 = arith.constant 0 : index
    %c0_2 = arith.constant 0 : index
    %3 = vector.load %arg3[%c0, %c0_1, %c0_2] : memref<8x8x128xbf16, #tpu.memory_space<vmem>>, vector<8x8x128xbf16>
    %4 = vector.shape_cast %3 : vector<8x8x128xbf16> to vector<64x128xbf16>
    %c0_3 = arith.constant 0 : index
    %c0_4 = arith.constant 0 : index
    %5 = vector.load %arg5[%c0_3, %c0_4] : memref<128x384xbf16, #tpu.memory_space<vmem>>, vector<128x384xbf16>
    %cst = arith.constant dense<0.000000e+00> : vector<64x384xf32>
    %6 = tpu.matmul %4, %5, %cst {dimension_numbers = #tpu.dot_dimension_numbers<[1], [0], [0], [1], [0, 0, 1, 1], [], []>} : vector<64x128xbf16>, vector<128x384xbf16>, vector<64x384xf32> -> vector<64x384xf32>
    %c0_5 = arith.constant 0 : index
    %c0_6 = arith.constant 0 : index
    %7 = vector.load %arg7[%c0_5, %c0_6] : memref<1x384xf32, #tpu.memory_space<vmem>>, vector<1x384xf32>
    %8 = vector.broadcast %7 : vector<1x384xf32> to vector<64x384xf32>
    %9 = arith.addf %6, %8 : vector<64x384xf32>
    %10 = vector.shape_cast %9 : vector<64x384xf32> to vector<8x8x384xf32>
    %c0_7 = arith.constant 0 : index
    %c0_8 = arith.constant 0 : index
    %c0_9 = arith.constant 0 : index
    %11 = vector.load %arg12[%c0_7, %c0_8, %c0_9] : memref<8x8x384xf32, #tpu.memory_space<vmem>>, vector<8x8x384xf32>
    tpu.vector_store %arg12[%c0_7, %c0_8, %c0_9], %10 {strides = array<i32>} : memref<8x8x384xf32, #tpu.memory_space<vmem>>, vector<8x8x384xf32>,
    %c0_10 = arith.constant 0 : index
    %c0_11 = arith.constant 0 : index
    %12 = vector.load %arg2[%c0_10, %c0_11] : memref<8x1xi32, #tpu.memory_space<vmem>>, vector<8x1xi32>
    %c0_12 = arith.constant 0 : index
    %c0_13 = arith.constant 0 : index
    %13 = vector.load %arg8[%c0_12, %c0_13] : memref<1x128xf32, #tpu.memory_space<vmem>>, vector<1x128xf32>
    %14 = vector.shape_cast %13 : vector<1x128xf32> to vector<1x128xf32>
    %15 = vector.broadcast %14 : vector<1x128xf32> to vector<8x128xf32>
    %c0_i32_14 = arith.constant 0 : i32
    %c0_15 = arith.constant 0 : index
    %c0_16 = arith.constant 0 : index
    %16 = vector.load %arg11[%c0_15, %c0_16] : memref<8x128xf32, #tpu.memory_space<vmem>>, vector<8x128xf32>
    %17 = arith.truncf %16 : vector<8x128xf32> to vector<8x128xbf16>
    %c0_17 = arith.constant 0 : index
    %c0_18 = arith.constant 0 : index
    %18 = vector.load %arg6[%c0_17, %c0_18] : memref<128x384xbf16, #tpu.memory_space<vmem>>, vector<128x384xbf16>
    %cst_19 = arith.constant dense<0.000000e+00> : vector<8x384xf32>
    %19 = tpu.matmul %17, %18, %cst_19 {dimension_numbers = #tpu.dot_dimension_numbers<[1], [0], [0], [1], [0, 0, 1, 1], [], []>} : vector<8x128xbf16>, vector<128x384xbf16>, vector<8x384xf32> -> vector<8x384xf32>
    %20 = arith.index_cast %c0_i32_14 : i32 to index
    %c0_20 = arith.constant 0 : index
    %c0_21 = arith.constant 0 : index
    %21 = vector.load %arg12[%20, %c0_20, %c0_21] : memref<8x8x384xf32, #tpu.memory_space<vmem>>, vector<1x8x384xf32>
    %22 = vector.shape_cast %21 : vector<1x8x384xf32> to vector<8x384xf32>
    %23 = vector.extract_strided_slice %22 {offsets = [0, 0], sizes = [8, 128], strides = [1, 1]} : vector<8x384xf32> to vector<8x128xf32>
    %24 = vector.extract_strided_slice %19 {offsets = [0, 0], sizes = [8, 128], strides = [1, 1]} : vector<8x384xf32> to vector<8x128xf32>
    %25 = arith.addf %23, %24 : vector<8x128xf32>
    %26 = arith.negf %25 : vector<8x128xf32>
    %27 = math.exp %26 : vector<8x128xf32>
    %cst_22 = arith.constant 1.000000e+00 : f32
    %28 = vector.broadcast %cst_22 : f32 to vector<8x128xf32>
    %29 = arith.addf %28, %27 : vector<8x128xf32>
    %30 = arith.divf %28, %29 : vector<8x128xf32>
    %31 = vector.extract_strided_slice %22 {offsets = [0, 128], sizes = [8, 128], strides = [1, 1]} : vector<8x384xf32> to vector<8x128xf32>
    %32 = vector.extract_strided_slice %19 {offsets = [0, 128], sizes = [8, 128], strides = [1, 1]} : vector<8x384xf32> to vector<8x128xf32>
    %33 = arith.addf %31, %32 : vector<8x128xf32>
    %34 = arith.negf %33 : vector<8x128xf32>
    %35 = math.exp %34 : vector<8x128xf32>
    %cst_23 = arith.constant 1.000000e+00 : f32
    %36 = vector.broadcast %cst_23 : f32 to vector<8x128xf32>
    %37 = arith.addf %36, %35 : vector<8x128xf32>
    %38 = arith.divf %36, %37 : vector<8x128xf32>
    %39 = vector.extract_strided_slice %22 {offsets = [0, 256], sizes = [8, 128], strides = [1, 1]} : vector<8x384xf32> to vector<8x128xf32>
    %40 = vector.extract_strided_slice %19 {offsets = [0, 256], sizes = [8, 128], strides = [1, 1]} : vector<8x384xf32> to vector<8x128xf32>
    %41 = arith.addf %40, %15 : vector<8x128xf32>
    %42 = arith.mulf %30, %41 : vector<8x128xf32>
    %43 = arith.addf %39, %42 : vector<8x128xf32>
    %44 = math.tanh %43 : vector<8x128xf32>
    %cst_24 = arith.constant 1.000000e+00 : f32
    %45 = vector.broadcast %cst_24 : f32 to vector<8x128xf32>
    %46 = arith.subf %45, %38 : vector<8x128xf32>
    %47 = arith.mulf %46, %44 : vector<8x128xf32>
    %48 = arith.mulf %38, %16 : vector<8x128xf32>
    %49 = arith.addf %47, %48 : vector<8x128xf32>
    %c8_i32 = arith.constant 8 : i32
    %50 = arith.muli %arg1, %c8_i32 : i32
    %51 = arith.addi %50, %c0_i32_14 : i32
    %52 = vector.broadcast %51 : i32 to vector<8x1xi32>
    %53 = arith.cmpi slt, %52, %12 : vector<8x1xi32>
    %54 = vector.shape_cast %53 : vector<8x1xi1> to vector<8x1xi1>
    %55 = vector.broadcast %54 : vector<8x1xi1> to vector<8x128xi1>
    %56 = arith.select %55, %49, %16 : vector<8x128xi1>, vector<8x128xf32>
    %c0_25 = arith.constant 0 : index
    %c0_26 = arith.constant 0 : index
    %57 = vector.load %arg11[%c0_25, %c0_26] : memref<8x128xf32, #tpu.memory_space<vmem>>, vector<8x128xf32>
    tpu.vector_store %arg11[%c0_25, %c0_26], %56 {strides = array<i32>} : memref<8x128xf32, #tpu.memory_space<vmem>>, vector<8x128xf32>,
    %cst_27 = arith.constant 0.000000e+00 : f32
    %58 = vector.shape_cast %53 : vector<8x1xi1> to vector<8x1xi1>
    %59 = vector.broadcast %58 : vector<8x1xi1> to vector<8x128xi1>
    %60 = vector.broadcast %cst_27 : f32 to vector<8x128xf32>
    %61 = arith.select %59, %49, %60 : vector<8x128xi1>, vector<8x128xf32>
    %62 = arith.truncf %61 : vector<8x128xf32> to vector<8x128xbf16>
    %63 = vector.shape_cast %62 : vector<8x128xbf16> to vector<8x1x128xbf16>
    %c0_28 = arith.constant 0 : index
    %64 = arith.index_cast %c0_i32_14 : i32 to index
    %c0_29 = arith.constant 0 : index
    %65 = vector.load %arg13[%c0_28, %64, %c0_29] : memref<8x8x128xbf16, #tpu.memory_space<vmem>>, vector<8x1x128xbf16>
    tpu.vector_store %arg13[%c0_28, %64, %c0_29], %63 {strides = array<i32>} : memref<8x8x128xbf16, #tpu.memory_space<vmem>>, vector<8x1x128xbf16>,
    %c1_i32 = arith.constant 1 : i32
    %c0_30 = arith.constant 0 : index
    %c0_31 = arith.constant 0 : index
    %66 = vector.load %arg11[%c0_30, %c0_31] : memref<8x128xf32, #tpu.memory_space<vmem>>, vector<8x128xf32>
    %67 = arith.truncf %66 : vector<8x128xf32> to vector<8x128xbf16>
    %c0_32 = arith.constant 0 : index
    %c0_33 = arith.constant 0 : index
    %68 = vector.load %arg6[%c0_32, %c0_33] : memref<128x384xbf16, #tpu.memory_space<vmem>>, vector<128x384xbf16>
    %cst_34 = arith.constant dense<0.000000e+00> : vector<8x384xf32>
    %69 = tpu.matmul %67, %68, %cst_34 {dimension_numbers = #tpu.dot_dimension_numbers<[1], [0], [0], [1], [0, 0, 1, 1], [], []>} : vector<8x128xbf16>, vector<128x384xbf16>, vector<8x384xf32> -> vector<8x384xf32>
    %70 = arith.index_cast %c1_i32 : i32 to index
    %c0_35 = arith.constant 0 : index
    %c0_36 = arith.constant 0 : index
    %71 = vector.load %arg12[%70, %c0_35, %c0_36] : memref<8x8x384xf32, #tpu.memory_space<vmem>>, vector<1x8x384xf32>
    %72 = vector.shape_cast %71 : vector<1x8x384xf32> to vector<8x384xf32>
    %73 = vector.extract_strided_slice %72 {offsets = [0, 0], sizes = [8, 128], strides = [1, 1]} : vector<8x384xf32> to vector<8x128xf32>
    %74 = vector.extract_strided_slice %69 {offsets = [0, 0], sizes = [8, 128], strides = [1, 1]} : vector<8x384xf32> to vector<8x128xf32>
    %75 = arith.addf %73, %74 : vector<8x128xf32>
    %76 = arith.negf %75 : vector<8x128xf32>
    %77 = math.exp %76 : vector<8x128xf32>
    %cst_37 = arith.constant 1.000000e+00 : f32
    %78 = vector.broadcast %cst_37 : f32 to vector<8x128xf32>
    %79 = arith.addf %78, %77 : vector<8x128xf32>
    %80 = arith.divf %78, %79 : vector<8x128xf32>
    %81 = vector.extract_strided_slice %72 {offsets = [0, 128], sizes = [8, 128], strides = [1, 1]} : vector<8x384xf32> to vector<8x128xf32>
    %82 = vector.extract_strided_slice %69 {offsets = [0, 128], sizes = [8, 128], strides = [1, 1]} : vector<8x384xf32> to vector<8x128xf32>
    %83 = arith.addf %81, %82 : vector<8x128xf32>
    %84 = arith.negf %83 : vector<8x128xf32>
    %85 = math.exp %84 : vector<8x128xf32>
    %cst_38 = arith.constant 1.000000e+00 : f32
    %86 = vector.broadcast %cst_38 : f32 to vector<8x128xf32>
    %87 = arith.addf %86, %85 : vector<8x128xf32>
    %88 = arith.divf %86, %87 : vector<8x128xf32>
    %89 = vector.extract_strided_slice %72 {offsets = [0, 256], sizes = [8, 128], strides = [1, 1]} : vector<8x384xf32> to vector<8x128xf32>
    %90 = vector.extract_strided_slice %69 {offsets = [0, 256], sizes = [8, 128], strides = [1, 1]} : vector<8x384xf32> to vector<8x128xf32>
    %91 = arith.addf %90, %15 : vector<8x128xf32>
    %92 = arith.mulf %80, %91 : vector<8x128xf32>
    %93 = arith.addf %89, %92 : vector<8x128xf32>
    %94 = math.tanh %93 : vector<8x128xf32>
    %cst_39 = arith.constant 1.000000e+00 : f32
    %95 = vector.broadcast %cst_39 : f32 to vector<8x128xf32>
    %96 = arith.subf %95, %88 : vector<8x128xf32>
    %97 = arith.mulf %96, %94 : vector<8x128xf32>
    %98 = arith.mulf %88, %66 : vector<8x128xf32>
    %99 = arith.addf %97, %98 : vector<8x128xf32>
    %c8_i32_40 = arith.constant 8 : i32
    %100 = arith.muli %arg1, %c8_i32_40 : i32
    %101 = arith.addi %100, %c1_i32 : i32
    %102 = vector.broadcast %101 : i32 to vector<8x1xi32>
    %103 = arith.cmpi slt, %102, %12 : vector<8x1xi32>
    %104 = vector.shape_cast %103 : vector<8x1xi1> to vector<8x1xi1>
    %105 = vector.broadcast %104 : vector<8x1xi1> to vector<8x128xi1>
    %106 = arith.select %105, %99, %66 : vector<8x128xi1>, vector<8x128xf32>
    %c0_41 = arith.constant 0 : index
    %c0_42 = arith.constant 0 : index
    %107 = vector.load %arg11[%c0_41, %c0_42] : memref<8x128xf32, #tpu.memory_space<vmem>>, vector<8x128xf32>
    tpu.vector_store %arg11[%c0_41, %c0_42], %106 {strides = array<i32>} : memref<8x128xf32, #tpu.memory_space<vmem>>, vector<8x128xf32>,
    %cst_43 = arith.constant 0.000000e+00 : f32
    %108 = vector.shape_cast %103 : vector<8x1xi1> to vector<8x1xi1>
    %109 = vector.broadcast %108 : vector<8x1xi1> to vector<8x128xi1>
    %110 = vector.broadcast %cst_43 : f32 to vector<8x128xf32>
    %111 = arith.select %109, %99, %110 : vector<8x128xi1>, vector<8x128xf32>
    %112 = arith.truncf %111 : vector<8x128xf32> to vector<8x128xbf16>
    %113 = vector.shape_cast %112 : vector<8x128xbf16> to vector<8x1x128xbf16>
    %c0_44 = arith.constant 0 : index
    %114 = arith.index_cast %c1_i32 : i32 to index
    %c0_45 = arith.constant 0 : index
    %115 = vector.load %arg13[%c0_44, %114, %c0_45] : memref<8x8x128xbf16, #tpu.memory_space<vmem>>, vector<8x1x128xbf16>
    tpu.vector_store %arg13[%c0_44, %114, %c0_45], %113 {strides = array<i32>} : memref<8x8x128xbf16, #tpu.memory_space<vmem>>, vector<8x1x128xbf16>,
    %c2_i32 = arith.constant 2 : i32
    %c0_46 = arith.constant 0 : index
    %c0_47 = arith.constant 0 : index
    %116 = vector.load %arg11[%c0_46, %c0_47] : memref<8x128xf32, #tpu.memory_space<vmem>>, vector<8x128xf32>
    %117 = arith.truncf %116 : vector<8x128xf32> to vector<8x128xbf16>
    %c0_48 = arith.constant 0 : index
    %c0_49 = arith.constant 0 : index
    %118 = vector.load %arg6[%c0_48, %c0_49] : memref<128x384xbf16, #tpu.memory_space<vmem>>, vector<128x384xbf16>
    %cst_50 = arith.constant dense<0.000000e+00> : vector<8x384xf32>
    %119 = tpu.matmul %117, %118, %cst_50 {dimension_numbers = #tpu.dot_dimension_numbers<[1], [0], [0], [1], [0, 0, 1, 1], [], []>} : vector<8x128xbf16>, vector<128x384xbf16>, vector<8x384xf32> -> vector<8x384xf32>
    %120 = arith.index_cast %c2_i32 : i32 to index
    %c0_51 = arith.constant 0 : index
    %c0_52 = arith.constant 0 : index
    %121 = vector.load %arg12[%120, %c0_51, %c0_52] : memref<8x8x384xf32, #tpu.memory_space<vmem>>, vector<1x8x384xf32>
    %122 = vector.shape_cast %121 : vector<1x8x384xf32> to vector<8x384xf32>
    %123 = vector.extract_strided_slice %122 {offsets = [0, 0], sizes = [8, 128], strides = [1, 1]} : vector<8x384xf32> to vector<8x128xf32>
    %124 = vector.extract_strided_slice %119 {offsets = [0, 0], sizes = [8, 128], strides = [1, 1]} : vector<8x384xf32> to vector<8x128xf32>
    %125 = arith.addf %123, %124 : vector<8x128xf32>
    %126 = arith.negf %125 : vector<8x128xf32>
    %127 = math.exp %126 : vector<8x128xf32>
    %cst_53 = arith.constant 1.000000e+00 : f32
    %128 = vector.broadcast %cst_53 : f32 to vector<8x128xf32>
    %129 = arith.addf %128, %127 : vector<8x128xf32>
    %130 = arith.divf %128, %129 : vector<8x128xf32>
    %131 = vector.extract_strided_slice %122 {offsets = [0, 128], sizes = [8, 128], strides = [1, 1]} : vector<8x384xf32> to vector<8x128xf32>
    %132 = vector.extract_strided_slice %119 {offsets = [0, 128], sizes = [8, 128], strides = [1, 1]} : vector<8x384xf32> to vector<8x128xf32>
    %133 = arith.addf %131, %132 : vector<8x128xf32>
    %134 = arith.negf %133 : vector<8x128xf32>
    %135 = math.exp %134 : vector<8x128xf32>
    %cst_54 = arith.constant 1.000000e+00 : f32
    %136 = vector.broadcast %cst_54 : f32 to vector<8x128xf32>
    %137 = arith.addf %136, %135 : vector<8x128xf32>
    %138 = arith.divf %136, %137 : vector<8x128xf32>
    %139 = vector.extract_strided_slice %122 {offsets = [0, 256], sizes = [8, 128], strides = [1, 1]} : vector<8x384xf32> to vector<8x128xf32>
    %140 = vector.extract_strided_slice %119 {offsets = [0, 256], sizes = [8, 128], strides = [1, 1]} : vector<8x384xf32> to vector<8x128xf32>
    %141 = arith.addf %140, %15 : vector<8x128xf32>
    %142 = arith.mulf %130, %141 : vector<8x128xf32>
    %143 = arith.addf %139, %142 : vector<8x128xf32>
    %144 = math.tanh %143 : vector<8x128xf32>
    %cst_55 = arith.constant 1.000000e+00 : f32
    %145 = vector.broadcast %cst_55 : f32 to vector<8x128xf32>
    %146 = arith.subf %145, %138 : vector<8x128xf32>
    %147 = arith.mulf %146, %144 : vector<8x128xf32>
    %148 = arith.mulf %138, %116 : vector<8x128xf32>
    %149 = arith.addf %147, %148 : vector<8x128xf32>
    %c8_i32_56 = arith.constant 8 : i32
    %150 = arith.muli %arg1, %c8_i32_56 : i32
    %151 = arith.addi %150, %c2_i32 : i32
    %152 = vector.broadcast %151 : i32 to vector<8x1xi32>
    %153 = arith.cmpi slt, %152, %12 : vector<8x1xi32>
    %154 = vector.shape_cast %153 : vector<8x1xi1> to vector<8x1xi1>
    %155 = vector.broadcast %154 : vector<8x1xi1> to vector<8x128xi1>
    %156 = arith.select %155, %149, %116 : vector<8x128xi1>, vector<8x128xf32>
    %c0_57 = arith.constant 0 : index
    %c0_58 = arith.constant 0 : index
    %157 = vector.load %arg11[%c0_57, %c0_58] : memref<8x128xf32, #tpu.memory_space<vmem>>, vector<8x128xf32>
    tpu.vector_store %arg11[%c0_57, %c0_58], %156 {strides = array<i32>} : memref<8x128xf32, #tpu.memory_space<vmem>>, vector<8x128xf32>,
    %cst_59 = arith.constant 0.000000e+00 : f32
    %158 = vector.shape_cast %153 : vector<8x1xi1> to vector<8x1xi1>
    %159 = vector.broadcast %158 : vector<8x1xi1> to vector<8x128xi1>
    %160 = vector.broadcast %cst_59 : f32 to vector<8x128xf32>
    %161 = arith.select %159, %149, %160 : vector<8x128xi1>, vector<8x128xf32>
    %162 = arith.truncf %161 : vector<8x128xf32> to vector<8x128xbf16>
    %163 = vector.shape_cast %162 : vector<8x128xbf16> to vector<8x1x128xbf16>
    %c0_60 = arith.constant 0 : index
    %164 = arith.index_cast %c2_i32 : i32 to index
    %c0_61 = arith.constant 0 : index
    %165 = vector.load %arg13[%c0_60, %164, %c0_61] : memref<8x8x128xbf16, #tpu.memory_space<vmem>>, vector<8x1x128xbf16>
    tpu.vector_store %arg13[%c0_60, %164, %c0_61], %163 {strides = array<i32>} : memref<8x8x128xbf16, #tpu.memory_space<vmem>>, vector<8x1x128xbf16>,
    %c3_i32 = arith.constant 3 : i32
    %c0_62 = arith.constant 0 : index
    %c0_63 = arith.constant 0 : index
    %166 = vector.load %arg11[%c0_62, %c0_63] : memref<8x128xf32, #tpu.memory_space<vmem>>, vector<8x128xf32>
    %167 = arith.truncf %166 : vector<8x128xf32> to vector<8x128xbf16>
    %c0_64 = arith.constant 0 : index
    %c0_65 = arith.constant 0 : index
    %168 = vector.load %arg6[%c0_64, %c0_65] : memref<128x384xbf16, #tpu.memory_space<vmem>>, vector<128x384xbf16>
    %cst_66 = arith.constant dense<0.000000e+00> : vector<8x384xf32>
    %169 = tpu.matmul %167, %168, %cst_66 {dimension_numbers = #tpu.dot_dimension_numbers<[1], [0], [0], [1], [0, 0, 1, 1], [], []>} : vector<8x128xbf16>, vector<128x384xbf16>, vector<8x384xf32> -> vector<8x384xf32>
    %170 = arith.index_cast %c3_i32 : i32 to index
    %c0_67 = arith.constant 0 : index
    %c0_68 = arith.constant 0 : index
    %171 = vector.load %arg12[%170, %c0_67, %c0_68] : memref<8x8x384xf32, #tpu.memory_space<vmem>>, vector<1x8x384xf32>
    %172 = vector.shape_cast %171 : vector<1x8x384xf32> to vector<8x384xf32>
    %173 = vector.extract_strided_slice %172 {offsets = [0, 0], sizes = [8, 128], strides = [1, 1]} : vector<8x384xf32> to vector<8x128xf32>
    %174 = vector.extract_strided_slice %169 {offsets = [0, 0], sizes = [8, 128], strides = [1, 1]} : vector<8x384xf32> to vector<8x128xf32>
    %175 = arith.addf %173, %174 : vector<8x128xf32>
    %176 = arith.negf %175 : vector<8x128xf32>
    %177 = math.exp %176 : vector<8x128xf32>
    %cst_69 = arith.constant 1.000000e+00 : f32
    %178 = vector.broadcast %cst_69 : f32 to vector<8x128xf32>
    %179 = arith.addf %178, %177 : vector<8x128xf32>
    %180 = arith.divf %178, %179 : vector<8x128xf32>
    %181 = vector.extract_strided_slice %172 {offsets = [0, 128], sizes = [8, 128], strides = [1, 1]} : vector<8x384xf32> to vector<8x128xf32>
    %182 = vector.extract_strided_slice %169 {offsets = [0, 128], sizes = [8, 128], strides = [1, 1]} : vector<8x384xf32> to vector<8x128xf32>
    %183 = arith.addf %181, %182 : vector<8x128xf32>
    %184 = arith.negf %183 : vector<8x128xf32>
    %185 = math.exp %184 : vector<8x128xf32>
    %cst_70 = arith.constant 1.000000e+00 : f32
    %186 = vector.broadcast %cst_70 : f32 to vector<8x128xf32>
    %187 = arith.addf %186, %185 : vector<8x128xf32>
    %188 = arith.divf %186, %187 : vector<8x128xf32>
    %189 = vector.extract_strided_slice %172 {offsets = [0, 256], sizes = [8, 128], strides = [1, 1]} : vector<8x384xf32> to vector<8x128xf32>
    %190 = vector.extract_strided_slice %169 {offsets = [0, 256], sizes = [8, 128], strides = [1, 1]} : vector<8x384xf32> to vector<8x128xf32>
    %191 = arith.addf %190, %15 : vector<8x128xf32>
    %192 = arith.mulf %180, %191 : vector<8x128xf32>
    %193 = arith.addf %189, %192 : vector<8x128xf32>
    %194 = math.tanh %193 : vector<8x128xf32>
    %cst_71 = arith.constant 1.000000e+00 : f32
    %195 = vector.broadcast %cst_71 : f32 to vector<8x128xf32>
    %196 = arith.subf %195, %188 : vector<8x128xf32>
    %197 = arith.mulf %196, %194 : vector<8x128xf32>
    %198 = arith.mulf %188, %166 : vector<8x128xf32>
    %199 = arith.addf %197, %198 : vector<8x128xf32>
    %c8_i32_72 = arith.constant 8 : i32
    %200 = arith.muli %arg1, %c8_i32_72 : i32
    %201 = arith.addi %200, %c3_i32 : i32
    %202 = vector.broadcast %201 : i32 to vector<8x1xi32>
    %203 = arith.cmpi slt, %202, %12 : vector<8x1xi32>
    %204 = vector.shape_cast %203 : vector<8x1xi1> to vector<8x1xi1>
    %205 = vector.broadcast %204 : vector<8x1xi1> to vector<8x128xi1>
    %206 = arith.select %205, %199, %166 : vector<8x128xi1>, vector<8x128xf32>
    %c0_73 = arith.constant 0 : index
    %c0_74 = arith.constant 0 : index
    %207 = vector.load %arg11[%c0_73, %c0_74] : memref<8x128xf32, #tpu.memory_space<vmem>>, vector<8x128xf32>
    tpu.vector_store %arg11[%c0_73, %c0_74], %206 {strides = array<i32>} : memref<8x128xf32, #tpu.memory_space<vmem>>, vector<8x128xf32>,
    %cst_75 = arith.constant 0.000000e+00 : f32
    %208 = vector.shape_cast %203 : vector<8x1xi1> to vector<8x1xi1>
    %209 = vector.broadcast %208 : vector<8x1xi1> to vector<8x128xi1>
    %210 = vector.broadcast %cst_75 : f32 to vector<8x128xf32>
    %211 = arith.select %209, %199, %210 : vector<8x128xi1>, vector<8x128xf32>
    %212 = arith.truncf %211 : vector<8x128xf32> to vector<8x128xbf16>
    %213 = vector.shape_cast %212 : vector<8x128xbf16> to vector<8x1x128xbf16>
    %c0_76 = arith.constant 0 : index
    %214 = arith.index_cast %c3_i32 : i32 to index
    %c0_77 = arith.constant 0 : index
    %215 = vector.load %arg13[%c0_76, %214, %c0_77] : memref<8x8x128xbf16, #tpu.memory_space<vmem>>, vector<8x1x128xbf16>
    tpu.vector_store %arg13[%c0_76, %214, %c0_77], %213 {strides = array<i32>} : memref<8x8x128xbf16, #tpu.memory_space<vmem>>, vector<8x1x128xbf16>,
    %c4_i32 = arith.constant 4 : i32
    %c0_78 = arith.constant 0 : index
    %c0_79 = arith.constant 0 : index
    %216 = vector.load %arg11[%c0_78, %c0_79] : memref<8x128xf32, #tpu.memory_space<vmem>>, vector<8x128xf32>
    %217 = arith.truncf %216 : vector<8x128xf32> to vector<8x128xbf16>
    %c0_80 = arith.constant 0 : index
    %c0_81 = arith.constant 0 : index
    %218 = vector.load %arg6[%c0_80, %c0_81] : memref<128x384xbf16, #tpu.memory_space<vmem>>, vector<128x384xbf16>
    %cst_82 = arith.constant dense<0.000000e+00> : vector<8x384xf32>
    %219 = tpu.matmul %217, %218, %cst_82 {dimension_numbers = #tpu.dot_dimension_numbers<[1], [0], [0], [1], [0, 0, 1, 1], [], []>} : vector<8x128xbf16>, vector<128x384xbf16>, vector<8x384xf32> -> vector<8x384xf32>
    %220 = arith.index_cast %c4_i32 : i32 to index
    %c0_83 = arith.constant 0 : index
    %c0_84 = arith.constant 0 : index
    %221 = vector.load %arg12[%220, %c0_83, %c0_84] : memref<8x8x384xf32, #tpu.memory_space<vmem>>, vector<1x8x384xf32>
    %222 = vector.shape_cast %221 : vector<1x8x384xf32> to vector<8x384xf32>
    %223 = vector.extract_strided_slice %222 {offsets = [0, 0], sizes = [8, 128], strides = [1, 1]} : vector<8x384xf32> to vector<8x128xf32>
    %224 = vector.extract_strided_slice %219 {offsets = [0, 0], sizes = [8, 128], strides = [1, 1]} : vector<8x384xf32> to vector<8x128xf32>
    %225 = arith.addf %223, %224 : vector<8x128xf32>
    %226 = arith.negf %225 : vector<8x128xf32>
    %227 = math.exp %226 : vector<8x128xf32>
    %cst_85 = arith.constant 1.000000e+00 : f32
    %228 = vector.broadcast %cst_85 : f32 to vector<8x128xf32>
    %229 = arith.addf %228, %227 : vector<8x128xf32>
    %230 = arith.divf %228, %229 : vector<8x128xf32>
    %231 = vector.extract_strided_slice %222 {offsets = [0, 128], sizes = [8, 128], strides = [1, 1]} : vector<8x384xf32> to vector<8x128xf32>
    %232 = vector.extract_strided_slice %219 {offsets = [0, 128], sizes = [8, 128], strides = [1, 1]} : vector<8x384xf32> to vector<8x128xf32>
    %233 = arith.addf %231, %232 : vector<8x128xf32>
    %234 = arith.negf %233 : vector<8x128xf32>
    %235 = math.exp %234 : vector<8x128xf32>
    %cst_86 = arith.constant 1.000000e+00 : f32
    %236 = vector.broadcast %cst_86 : f32 to vector<8x128xf32>
    %237 = arith.addf %236, %235 : vector<8x128xf32>
    %238 = arith.divf %236, %237 : vector<8x128xf32>
    %239 = vector.extract_strided_slice %222 {offsets = [0, 256], sizes = [8, 128], strides = [1, 1]} : vector<8x384xf32> to vector<8x128xf32>
    %240 = vector.extract_strided_slice %219 {offsets = [0, 256], sizes = [8, 128], strides = [1, 1]} : vector<8x384xf32> to vector<8x128xf32>
    %241 = arith.addf %240, %15 : vector<8x128xf32>
    %242 = arith.mulf %230, %241 : vector<8x128xf32>
    %243 = arith.addf %239, %242 : vector<8x128xf32>
    %244 = math.tanh %243 : vector<8x128xf32>
    %cst_87 = arith.constant 1.000000e+00 : f32
    %245 = vector.broadcast %cst_87 : f32 to vector<8x128xf32>
    %246 = arith.subf %245, %238 : vector<8x128xf32>
    %247 = arith.mulf %246, %244 : vector<8x128xf32>
    %248 = arith.mulf %238, %216 : vector<8x128xf32>
    %249 = arith.addf %247, %248 : vector<8x128xf32>
    %c8_i32_88 = arith.constant 8 : i32
    %250 = arith.muli %arg1, %c8_i32_88 : i32
    %251 = arith.addi %250, %c4_i32 : i32
    %252 = vector.broadcast %251 : i32 to vector<8x1xi32>
    %253 = arith.cmpi slt, %252, %12 : vector<8x1xi32>
    %254 = vector.shape_cast %253 : vector<8x1xi1> to vector<8x1xi1>
    %255 = vector.broadcast %254 : vector<8x1xi1> to vector<8x128xi1>
    %256 = arith.select %255, %249, %216 : vector<8x128xi1>, vector<8x128xf32>
    %c0_89 = arith.constant 0 : index
    %c0_90 = arith.constant 0 : index
    %257 = vector.load %arg11[%c0_89, %c0_90] : memref<8x128xf32, #tpu.memory_space<vmem>>, vector<8x128xf32>
    tpu.vector_store %arg11[%c0_89, %c0_90], %256 {strides = array<i32>} : memref<8x128xf32, #tpu.memory_space<vmem>>, vector<8x128xf32>,
    %cst_91 = arith.constant 0.000000e+00 : f32
    %258 = vector.shape_cast %253 : vector<8x1xi1> to vector<8x1xi1>
    %259 = vector.broadcast %258 : vector<8x1xi1> to vector<8x128xi1>
    %260 = vector.broadcast %cst_91 : f32 to vector<8x128xf32>
    %261 = arith.select %259, %249, %260 : vector<8x128xi1>, vector<8x128xf32>
    %262 = arith.truncf %261 : vector<8x128xf32> to vector<8x128xbf16>
    %263 = vector.shape_cast %262 : vector<8x128xbf16> to vector<8x1x128xbf16>
    %c0_92 = arith.constant 0 : index
    %264 = arith.index_cast %c4_i32 : i32 to index
    %c0_93 = arith.constant 0 : index
    %265 = vector.load %arg13[%c0_92, %264, %c0_93] : memref<8x8x128xbf16, #tpu.memory_space<vmem>>, vector<8x1x128xbf16>
    tpu.vector_store %arg13[%c0_92, %264, %c0_93], %263 {strides = array<i32>} : memref<8x8x128xbf16, #tpu.memory_space<vmem>>, vector<8x1x128xbf16>,
    %c5_i32 = arith.constant 5 : i32
    %c0_94 = arith.constant 0 : index
    %c0_95 = arith.constant 0 : index
    %266 = vector.load %arg11[%c0_94, %c0_95] : memref<8x128xf32, #tpu.memory_space<vmem>>, vector<8x128xf32>
    %267 = arith.truncf %266 : vector<8x128xf32> to vector<8x128xbf16>
    %c0_96 = arith.constant 0 : index
    %c0_97 = arith.constant 0 : index
    %268 = vector.load %arg6[%c0_96, %c0_97] : memref<128x384xbf16, #tpu.memory_space<vmem>>, vector<128x384xbf16>
    %cst_98 = arith.constant dense<0.000000e+00> : vector<8x384xf32>
    %269 = tpu.matmul %267, %268, %cst_98 {dimension_numbers = #tpu.dot_dimension_numbers<[1], [0], [0], [1], [0, 0, 1, 1], [], []>} : vector<8x128xbf16>, vector<128x384xbf16>, vector<8x384xf32> -> vector<8x384xf32>
    %270 = arith.index_cast %c5_i32 : i32 to index
    %c0_99 = arith.constant 0 : index
    %c0_100 = arith.constant 0 : index
    %271 = vector.load %arg12[%270, %c0_99, %c0_100] : memref<8x8x384xf32, #tpu.memory_space<vmem>>, vector<1x8x384xf32>
    %272 = vector.shape_cast %271 : vector<1x8x384xf32> to vector<8x384xf32>
    %273 = vector.extract_strided_slice %272 {offsets = [0, 0], sizes = [8, 128], strides = [1, 1]} : vector<8x384xf32> to vector<8x128xf32>
    %274 = vector.extract_strided_slice %269 {offsets = [0, 0], sizes = [8, 128], strides = [1, 1]} : vector<8x384xf32> to vector<8x128xf32>
    %275 = arith.addf %273, %274 : vector<8x128xf32>
    %276 = arith.negf %275 : vector<8x128xf32>
    %277 = math.exp %276 : vector<8x128xf32>
    %cst_101 = arith.constant 1.000000e+00 : f32
    %278 = vector.broadcast %cst_101 : f32 to vector<8x128xf32>
    %279 = arith.addf %278, %277 : vector<8x128xf32>
    %280 = arith.divf %278, %279 : vector<8x128xf32>
    %281 = vector.extract_strided_slice %272 {offsets = [0, 128], sizes = [8, 128], strides = [1, 1]} : vector<8x384xf32> to vector<8x128xf32>
    %282 = vector.extract_strided_slice %269 {offsets = [0, 128], sizes = [8, 128], strides = [1, 1]} : vector<8x384xf32> to vector<8x128xf32>
    %283 = arith.addf %281, %282 : vector<8x128xf32>
    %284 = arith.negf %283 : vector<8x128xf32>
    %285 = math.exp %284 : vector<8x128xf32>
    %cst_102 = arith.constant 1.000000e+00 : f32
    %286 = vector.broadcast %cst_102 : f32 to vector<8x128xf32>
    %287 = arith.addf %286, %285 : vector<8x128xf32>
    %288 = arith.divf %286, %287 : vector<8x128xf32>
    %289 = vector.extract_strided_slice %272 {offsets = [0, 256], sizes = [8, 128], strides = [1, 1]} : vector<8x384xf32> to vector<8x128xf32>
    %290 = vector.extract_strided_slice %269 {offsets = [0, 256], sizes = [8, 128], strides = [1, 1]} : vector<8x384xf32> to vector<8x128xf32>
    %291 = arith.addf %290, %15 : vector<8x128xf32>
    %292 = arith.mulf %280, %291 : vector<8x128xf32>
    %293 = arith.addf %289, %292 : vector<8x128xf32>
    %294 = math.tanh %293 : vector<8x128xf32>
    %cst_103 = arith.constant 1.000000e+00 : f32
    %295 = vector.broadcast %cst_103 : f32 to vector<8x128xf32>
    %296 = arith.subf %295, %288 : vector<8x128xf32>
    %297 = arith.mulf %296, %294 : vector<8x128xf32>
    %298 = arith.mulf %288, %266 : vector<8x128xf32>
    %299 = arith.addf %297, %298 : vector<8x128xf32>
    %c8_i32_104 = arith.constant 8 : i32
    %300 = arith.muli %arg1, %c8_i32_104 : i32
    %301 = arith.addi %300, %c5_i32 : i32
    %302 = vector.broadcast %301 : i32 to vector<8x1xi32>
    %303 = arith.cmpi slt, %302, %12 : vector<8x1xi32>
    %304 = vector.shape_cast %303 : vector<8x1xi1> to vector<8x1xi1>
    %305 = vector.broadcast %304 : vector<8x1xi1> to vector<8x128xi1>
    %306 = arith.select %305, %299, %266 : vector<8x128xi1>, vector<8x128xf32>
    %c0_105 = arith.constant 0 : index
    %c0_106 = arith.constant 0 : index
    %307 = vector.load %arg11[%c0_105, %c0_106] : memref<8x128xf32, #tpu.memory_space<vmem>>, vector<8x128xf32>
    tpu.vector_store %arg11[%c0_105, %c0_106], %306 {strides = array<i32>} : memref<8x128xf32, #tpu.memory_space<vmem>>, vector<8x128xf32>,
    %cst_107 = arith.constant 0.000000e+00 : f32
    %308 = vector.shape_cast %303 : vector<8x1xi1> to vector<8x1xi1>
    %309 = vector.broadcast %308 : vector<8x1xi1> to vector<8x128xi1>
    %310 = vector.broadcast %cst_107 : f32 to vector<8x128xf32>
    %311 = arith.select %309, %299, %310 : vector<8x128xi1>, vector<8x128xf32>
    %312 = arith.truncf %311 : vector<8x128xf32> to vector<8x128xbf16>
    %313 = vector.shape_cast %312 : vector<8x128xbf16> to vector<8x1x128xbf16>
    %c0_108 = arith.constant 0 : index
    %314 = arith.index_cast %c5_i32 : i32 to index
    %c0_109 = arith.constant 0 : index
    %315 = vector.load %arg13[%c0_108, %314, %c0_109] : memref<8x8x128xbf16, #tpu.memory_space<vmem>>, vector<8x1x128xbf16>
    tpu.vector_store %arg13[%c0_108, %314, %c0_109], %313 {strides = array<i32>} : memref<8x8x128xbf16, #tpu.memory_space<vmem>>, vector<8x1x128xbf16>,
    %c6_i32 = arith.constant 6 : i32
    %c0_110 = arith.constant 0 : index
    %c0_111 = arith.constant 0 : index
    %316 = vector.load %arg11[%c0_110, %c0_111] : memref<8x128xf32, #tpu.memory_space<vmem>>, vector<8x128xf32>
    %317 = arith.truncf %316 : vector<8x128xf32> to vector<8x128xbf16>
    %c0_112 = arith.constant 0 : index
    %c0_113 = arith.constant 0 : index
    %318 = vector.load %arg6[%c0_112, %c0_113] : memref<128x384xbf16, #tpu.memory_space<vmem>>, vector<128x384xbf16>
    %cst_114 = arith.constant dense<0.000000e+00> : vector<8x384xf32>
    %319 = tpu.matmul %317, %318, %cst_114 {dimension_numbers = #tpu.dot_dimension_numbers<[1], [0], [0], [1], [0, 0, 1, 1], [], []>} : vector<8x128xbf16>, vector<128x384xbf16>, vector<8x384xf32> -> vector<8x384xf32>
    %320 = arith.index_cast %c6_i32 : i32 to index
    %c0_115 = arith.constant 0 : index
    %c0_116 = arith.constant 0 : index
    %321 = vector.load %arg12[%320, %c0_115, %c0_116] : memref<8x8x384xf32, #tpu.memory_space<vmem>>, vector<1x8x384xf32>
    %322 = vector.shape_cast %321 : vector<1x8x384xf32> to vector<8x384xf32>
    %323 = vector.extract_strided_slice %322 {offsets = [0, 0], sizes = [8, 128], strides = [1, 1]} : vector<8x384xf32> to vector<8x128xf32>
    %324 = vector.extract_strided_slice %319 {offsets = [0, 0], sizes = [8, 128], strides = [1, 1]} : vector<8x384xf32> to vector<8x128xf32>
    %325 = arith.addf %323, %324 : vector<8x128xf32>
    %326 = arith.negf %325 : vector<8x128xf32>
    %327 = math.exp %326 : vector<8x128xf32>
    %cst_117 = arith.constant 1.000000e+00 : f32
    %328 = vector.broadcast %cst_117 : f32 to vector<8x128xf32>
    %329 = arith.addf %328, %327 : vector<8x128xf32>
    %330 = arith.divf %328, %329 : vector<8x128xf32>
    %331 = vector.extract_strided_slice %322 {offsets = [0, 128], sizes = [8, 128], strides = [1, 1]} : vector<8x384xf32> to vector<8x128xf32>
    %332 = vector.extract_strided_slice %319 {offsets = [0, 128], sizes = [8, 128], strides = [1, 1]} : vector<8x384xf32> to vector<8x128xf32>
    %333 = arith.addf %331, %332 : vector<8x128xf32>
    %334 = arith.negf %333 : vector<8x128xf32>
    %335 = math.exp %334 : vector<8x128xf32>
    %cst_118 = arith.constant 1.000000e+00 : f32
    %336 = vector.broadcast %cst_118 : f32 to vector<8x128xf32>
    %337 = arith.addf %336, %335 : vector<8x128xf32>
    %338 = arith.divf %336, %337 : vector<8x128xf32>
    %339 = vector.extract_strided_slice %322 {offsets = [0, 256], sizes = [8, 128], strides = [1, 1]} : vector<8x384xf32> to vector<8x128xf32>
    %340 = vector.extract_strided_slice %319 {offsets = [0, 256], sizes = [8, 128], strides = [1, 1]} : vector<8x384xf32> to vector<8x128xf32>
    %341 = arith.addf %340, %15 : vector<8x128xf32>
    %342 = arith.mulf %330, %341 : vector<8x128xf32>
    %343 = arith.addf %339, %342 : vector<8x128xf32>
    %344 = math.tanh %343 : vector<8x128xf32>
    %cst_119 = arith.constant 1.000000e+00 : f32
    %345 = vector.broadcast %cst_119 : f32 to vector<8x128xf32>
    %346 = arith.subf %345, %338 : vector<8x128xf32>
    %347 = arith.mulf %346, %344 : vector<8x128xf32>
    %348 = arith.mulf %338, %316 : vector<8x128xf32>
    %349 = arith.addf %347, %348 : vector<8x128xf32>
    %c8_i32_120 = arith.constant 8 : i32
    %350 = arith.muli %arg1, %c8_i32_120 : i32
    %351 = arith.addi %350, %c6_i32 : i32
    %352 = vector.broadcast %351 : i32 to vector<8x1xi32>
    %353 = arith.cmpi slt, %352, %12 : vector<8x1xi32>
    %354 = vector.shape_cast %353 : vector<8x1xi1> to vector<8x1xi1>
    %355 = vector.broadcast %354 : vector<8x1xi1> to vector<8x128xi1>
    %356 = arith.select %355, %349, %316 : vector<8x128xi1>, vector<8x128xf32>
    %c0_121 = arith.constant 0 : index
    %c0_122 = arith.constant 0 : index
    %357 = vector.load %arg11[%c0_121, %c0_122] : memref<8x128xf32, #tpu.memory_space<vmem>>, vector<8x128xf32>
    tpu.vector_store %arg11[%c0_121, %c0_122], %356 {strides = array<i32>} : memref<8x128xf32, #tpu.memory_space<vmem>>, vector<8x128xf32>,
    %cst_123 = arith.constant 0.000000e+00 : f32
    %358 = vector.shape_cast %353 : vector<8x1xi1> to vector<8x1xi1>
    %359 = vector.broadcast %358 : vector<8x1xi1> to vector<8x128xi1>
    %360 = vector.broadcast %cst_123 : f32 to vector<8x128xf32>
    %361 = arith.select %359, %349, %360 : vector<8x128xi1>, vector<8x128xf32>
    %362 = arith.truncf %361 : vector<8x128xf32> to vector<8x128xbf16>
    %363 = vector.shape_cast %362 : vector<8x128xbf16> to vector<8x1x128xbf16>
    %c0_124 = arith.constant 0 : index
    %364 = arith.index_cast %c6_i32 : i32 to index
    %c0_125 = arith.constant 0 : index
    %365 = vector.load %arg13[%c0_124, %364, %c0_125] : memref<8x8x128xbf16, #tpu.memory_space<vmem>>, vector<8x1x128xbf16>
    tpu.vector_store %arg13[%c0_124, %364, %c0_125], %363 {strides = array<i32>} : memref<8x8x128xbf16, #tpu.memory_space<vmem>>, vector<8x1x128xbf16>,
    %c7_i32 = arith.constant 7 : i32
    %c0_126 = arith.constant 0 : index
    %c0_127 = arith.constant 0 : index
    %366 = vector.load %arg11[%c0_126, %c0_127] : memref<8x128xf32, #tpu.memory_space<vmem>>, vector<8x128xf32>
    %367 = arith.truncf %366 : vector<8x128xf32> to vector<8x128xbf16>
    %c0_128 = arith.constant 0 : index
    %c0_129 = arith.constant 0 : index
    %368 = vector.load %arg6[%c0_128, %c0_129] : memref<128x384xbf16, #tpu.memory_space<vmem>>, vector<128x384xbf16>
    %cst_130 = arith.constant dense<0.000000e+00> : vector<8x384xf32>
    %369 = tpu.matmul %367, %368, %cst_130 {dimension_numbers = #tpu.dot_dimension_numbers<[1], [0], [0], [1], [0, 0, 1, 1], [], []>} : vector<8x128xbf16>, vector<128x384xbf16>, vector<8x384xf32> -> vector<8x384xf32>
    %370 = arith.index_cast %c7_i32 : i32 to index
    %c0_131 = arith.constant 0 : index
    %c0_132 = arith.constant 0 : index
    %371 = vector.load %arg12[%370, %c0_131, %c0_132] : memref<8x8x384xf32, #tpu.memory_space<vmem>>, vector<1x8x384xf32>
    %372 = vector.shape_cast %371 : vector<1x8x384xf32> to vector<8x384xf32>
    %373 = vector.extract_strided_slice %372 {offsets = [0, 0], sizes = [8, 128], strides = [1, 1]} : vector<8x384xf32> to vector<8x128xf32>
    %374 = vector.extract_strided_slice %369 {offsets = [0, 0], sizes = [8, 128], strides = [1, 1]} : vector<8x384xf32> to vector<8x128xf32>
    %375 = arith.addf %373, %374 : vector<8x128xf32>
    %376 = arith.negf %375 : vector<8x128xf32>
    %377 = math.exp %376 : vector<8x128xf32>
    %cst_133 = arith.constant 1.000000e+00 : f32
    %378 = vector.broadcast %cst_133 : f32 to vector<8x128xf32>
    %379 = arith.addf %378, %377 : vector<8x128xf32>
    %380 = arith.divf %378, %379 : vector<8x128xf32>
    %381 = vector.extract_strided_slice %372 {offsets = [0, 128], sizes = [8, 128], strides = [1, 1]} : vector<8x384xf32> to vector<8x128xf32>
    %382 = vector.extract_strided_slice %369 {offsets = [0, 128], sizes = [8, 128], strides = [1, 1]} : vector<8x384xf32> to vector<8x128xf32>
    %383 = arith.addf %381, %382 : vector<8x128xf32>
    %384 = arith.negf %383 : vector<8x128xf32>
    %385 = math.exp %384 : vector<8x128xf32>
    %cst_134 = arith.constant 1.000000e+00 : f32
    %386 = vector.broadcast %cst_134 : f32 to vector<8x128xf32>
    %387 = arith.addf %386, %385 : vector<8x128xf32>
    %388 = arith.divf %386, %387 : vector<8x128xf32>
    %389 = vector.extract_strided_slice %372 {offsets = [0, 256], sizes = [8, 128], strides = [1, 1]} : vector<8x384xf32> to vector<8x128xf32>
    %390 = vector.extract_strided_slice %369 {offsets = [0, 256], sizes = [8, 128], strides = [1, 1]} : vector<8x384xf32> to vector<8x128xf32>
    %391 = arith.addf %390, %15 : vector<8x128xf32>
    %392 = arith.mulf %380, %391 : vector<8x128xf32>
    %393 = arith.addf %389, %392 : vector<8x128xf32>
    %394 = math.tanh %393 : vector<8x128xf32>
    %cst_135 = arith.constant 1.000000e+00 : f32
    %395 = vector.broadcast %cst_135 : f32 to vector<8x128xf32>
    %396 = arith.subf %395, %388 : vector<8x128xf32>
    %397 = arith.mulf %396, %394 : vector<8x128xf32>
    %398 = arith.mulf %388, %366 : vector<8x128xf32>
    %399 = arith.addf %397, %398 : vector<8x128xf32>
    %c8_i32_136 = arith.constant 8 : i32
    %400 = arith.muli %arg1, %c8_i32_136 : i32
    %401 = arith.addi %400, %c7_i32 : i32
    %402 = vector.broadcast %401 : i32 to vector<8x1xi32>
    %403 = arith.cmpi slt, %402, %12 : vector<8x1xi32>
    %404 = vector.shape_cast %403 : vector<8x1xi1> to vector<8x1xi1>
    %405 = vector.broadcast %404 : vector<8x1xi1> to vector<8x128xi1>
    %406 = arith.select %405, %399, %366 : vector<8x128xi1>, vector<8x128xf32>
    %c0_137 = arith.constant 0 : index
    %c0_138 = arith.constant 0 : index
    %407 = vector.load %arg11[%c0_137, %c0_138] : memref<8x128xf32, #tpu.memory_space<vmem>>, vector<8x128xf32>
    tpu.vector_store %arg11[%c0_137, %c0_138], %406 {strides = array<i32>} : memref<8x128xf32, #tpu.memory_space<vmem>>, vector<8x128xf32>,
    %cst_139 = arith.constant 0.000000e+00 : f32
    %408 = vector.shape_cast %403 : vector<8x1xi1> to vector<8x1xi1>
    %409 = vector.broadcast %408 : vector<8x1xi1> to vector<8x128xi1>
    %410 = vector.broadcast %cst_139 : f32 to vector<8x128xf32>
    %411 = arith.select %409, %399, %410 : vector<8x128xi1>, vector<8x128xf32>
    %412 = arith.truncf %411 : vector<8x128xf32> to vector<8x128xbf16>
    %413 = vector.shape_cast %412 : vector<8x128xbf16> to vector<8x1x128xbf16>
    %c0_140 = arith.constant 0 : index
    %414 = arith.index_cast %c7_i32 : i32 to index
    %c0_141 = arith.constant 0 : index
    %415 = vector.load %arg13[%c0_140, %414, %c0_141] : memref<8x8x128xbf16, #tpu.memory_space<vmem>>, vector<8x1x128xbf16>
    tpu.vector_store %arg13[%c0_140, %414, %c0_141], %413 {strides = array<i32>} : memref<8x8x128xbf16, #tpu.memory_space<vmem>>, vector<8x1x128xbf16>,
    %c8_i32_142 = arith.constant 8 : i32
    %c0_143 = arith.constant 0 : index
    %c0_144 = arith.constant 0 : index
    %c0_145 = arith.constant 0 : index
    %416 = vector.load %arg13[%c0_143, %c0_144, %c0_145] : memref<8x8x128xbf16, #tpu.memory_space<vmem>>, vector<8x8x128xbf16>
    %c0_146 = arith.constant 0 : index
    %c0_147 = arith.constant 0 : index
    %c0_148 = arith.constant 0 : index
    %417 = vector.load %arg9[%c0_146, %c0_147, %c0_148] : memref<8x8x128xbf16, #tpu.memory_space<vmem>>, vector<8x8x128xbf16>
    tpu.vector_store %arg9[%c0_146, %c0_147, %c0_148], %416 {strides = array<i32>} : memref<8x8x128xbf16, #tpu.memory_space<vmem>>, vector<8x8x128xbf16>,
    %c0_i32_149 = arith.constant 0 : i32
    %418 = arith.cmpi eq, %arg1, %c0_i32_149 : i32
    %419 = arith.extui %418 : i1 to i32
    %c0_i32_150 = arith.constant 0 : i32
    %420 = arith.cmpi ne, %419, %c0_i32_150 : i32
    scf.if %420 {
      %c0_151 = arith.constant 0 : index
      %c0_152 = arith.constant 0 : index
      %421 = vector.load %arg11[%c0_151, %c0_152] : memref<8x128xf32, #tpu.memory_space<vmem>>, vector<8x128xf32>
      %c0_153 = arith.constant 0 : index
      %c0_154 = arith.constant 0 : index
      %422 = vector.load %arg10[%c0_153, %c0_154] : memref<8x128xf32, #tpu.memory_space<vmem>>, vector<8x128xf32>
      tpu.vector_store %arg10[%c0_153, %c0_154], %421 {strides = array<i32>} : memref<8x128xf32, #tpu.memory_space<vmem>>, vector<8x128xf32>,
    } else {
    }
    return
  }
  func.func @transform_0(%arg0: i32, %arg1: i32) -> (i32, i32) {
    %c0_i32 = arith.constant 0 : i32
    %c0_i32_0 = arith.constant 0 : i32
    return %arg0, %c0_i32 : i32, i32
  }
  func.func @transform_1(%arg0: i32, %arg1: i32) -> (i32, i32, i32) {
    %c0_i32 = arith.constant 0 : i32
    %c0_i32_0 = arith.constant 0 : i32
    return %arg1, %arg0, %c0_i32 : i32, i32, i32
  }
  func.func @transform_2(%arg0: i32, %arg1: i32) -> (i32, i32) {
    %c0_i32 = arith.constant 0 : i32
    %c0_i32_0 = arith.constant 0 : i32
    return %arg0, %c0_i32 : i32, i32
  }
  func.func @transform_3(%arg0: i32, %arg1: i32) -> (i32, i32) {
    %c0_i32 = arith.constant 0 : i32
    %c0_i32_0 = arith.constant 0 : i32
    %c0_i32_1 = arith.constant 0 : i32
    return %c0_i32, %c0_i32_0 : i32, i32
  }
  func.func @transform_4(%arg0: i32, %arg1: i32) -> (i32, i32) {
    %c0_i32 = arith.constant 0 : i32
    %c0_i32_0 = arith.constant 0 : i32
    %c0_i32_1 = arith.constant 0 : i32
    return %c0_i32, %c0_i32_0 : i32, i32
  }
  func.func @transform_5(%arg0: i32, %arg1: i32) -> (i32, i32) {
    %c0_i32 = arith.constant 0 : i32
    %c0_i32_0 = arith.constant 0 : i32
    %c0_i32_1 = arith.constant 0 : i32
    return %c0_i32, %c0_i32_0 : i32, i32
  }
  func.func @transform_6(%arg0: i32, %arg1: i32) -> (i32, i32) {
    %c0_i32 = arith.constant 0 : i32
    %c0_i32_0 = arith.constant 0 : i32
    %c0_i32_1 = arith.constant 0 : i32
    return %c0_i32, %c0_i32_0 : i32, i32
  }
  func.func @transform_7(%arg0: i32, %arg1: i32) -> (i32, i32, i32) {
    %c0_i32 = arith.constant 0 : i32
    %c0_i32_0 = arith.constant 0 : i32
    return %arg0, %arg1, %c0_i32 : i32, i32, i32
  }
  func.func @transform_8(%arg0: i32, %arg1: i32) -> (i32, i32) {
    %c0_i32 = arith.constant 0 : i32
    %c0_i32_0 = arith.constant 0 : i32
    return %arg0, %c0_i32 : i32, i32
  }
}

</mosaic_0001>

<llo_original>
// kernel: tpu_custom_call.1
$region0: #{tpu_custom_call.1}
  #allocation0 [shape = 'u32[]', space=smem, size = 0x4, offset = 0x4, fixed_abs, tag = 'smem constant byte address 0x4 - core index']
  #allocation1 [shape = 'u32[72,128]{1,0:T(1,128)}', space=vmem, size = 0x9000, scoped, tag = 'internal scratch']
  #allocation2 [shape = 'f32[8,128]{1,0:T(8,128)}', space=vmem, size = 0x1000, scoped, tag = 'scratch operand']
  #allocation3 [shape = 'f32[8,8,384]{2,1,0:T(8,128)}', space=vmem, size = 0x18000, scoped, tag = 'scratch operand']
  #allocation4 [shape = 'bf16[8,8,128]{2,1,0:T(8,128)(2,1)}', space=vmem, size = 0x4000, scoped, tag = 'scratch operand']
  %s0 = inlined_call_operand.vmem [shape: s32[8,1], index: 0, kind: input, shape index: {}]
  %s1 = inlined_call_operand.hbm [shape: bf16[8,8,128], index: 1, kind: input, shape index: {}]
  %s2 = inlined_call_operand.vmem [shape: f32[8,128], index: 2, kind: input, shape index: {}]
  %s3 = inlined_call_operand.hbm [shape: bf16[128,384], index: 3, kind: input, shape index: {}]
  %s4 = inlined_call_operand.hbm [shape: bf16[128,384], index: 4, kind: input, shape index: {}]
  %s5 = inlined_call_operand.vmem [shape: f32[1,384], index: 5, kind: input, shape index: {}]
  %s6 = inlined_call_operand.vmem [shape: f32[1,128], index: 6, kind: input, shape index: {}]
  %s7 = inlined_call_operand.hbm [shape: bf16[8,8,128], index: 7, kind: output, shape index: {0}]
  %s8 = inlined_call_operand.hbm [shape: f32[8,128], index: 8, kind: output, shape index: {1}]
  %9 = xla_tuple %s7, %s8
  %s10 = sld [smem:[#allocation0]]
  $region66: #{tpu_custom_call.1} parent=0
    _
  %s12 = ssub.s32 1, %s10
  %s13 = scalar_select 0, %s12, %s10
  $region1: #{tpu_custom_call.1} parent=0
    #allocation5 [shape = 'u8[16384]{0}', space=vmem, size = 0x4000, scoped, tag = 'input window, operand 1, single buffered']
    #allocation6 [shape = 's32[1]{0}', space=sflag, size = 0x4, scoped, tag = 'scoped memory for tpu_custom_call.1']
    #allocation7 [shape = 's32[1]{0}', space=sflag, size = 0x4, scoped, tag = 'scoped memory for tpu_custom_call.1']
    #allocation8 [shape = 'u8[98304]{0}', space=vmem, size = 0x18000, scoped, tag = 'input window, operand 3, single buffered']
    #allocation9 [shape = 's32[1]{0}', space=sflag, size = 0x4, scoped, tag = 'scoped memory for tpu_custom_call.1']
    #allocation10 [shape = 'u8[98304]{0}', space=vmem, size = 0x18000, scoped, tag = 'input window, operand 4, single buffered']
    #allocation11 [shape = 'u8[16384]{0}', space=vmem, size = 0x4000, scoped, tag = 'output window, operand 0, single buffered']
    #allocation12 [shape = 'u8[4096]{0}', space=vmem, size = 0x1000, scoped, tag = 'output window, operand 1, single buffered']
    #allocation13 [shape = 's32[1]{0}', space=sflag, size = 0x4, scoped, tag = 'scoped memory for tpu_custom_call.1']
    %14 = vsyncpa [#allocation6], 0
    %15 = vsyncpa [#allocation9], 0
    %16 = vsyncpa [#allocation7], 0
    %17 = vsyncpa [#allocation13], 0
    // Predicated region
    $region2: #{tpu_custom_call.1} parent=1 // pred_check
      _
    $region3: #{tpu_custom_call.1} parent=1 // pred_check_branch
      %19 = sbr.rel (0) target = $region5
    $region4: #{tpu_custom_call.1} parent=1 // pred_region
      _
    $region5: #{tpu_custom_call.1} parent=1 // pred_fallthru
      _
    // Predicated region
    $region6: #{tpu_custom_call.1} parent=1 // pred_check
      _
    $region7: #{tpu_custom_call.1} parent=1 // pred_check_branch
      %21 = sbr.rel (0) target = $region9
    $region8: #{tpu_custom_call.1} parent=1 // pred_region
      %23 = vsyncadd [#allocation6], 0
      %s24 = sshll.u32 %s1, 4
      %s25 = int_to_ptr.hbm [resolvable:$true] %s24
      %s26 = sshll.u32 [#allocation5], 4
      %s27 = int_to_ptr.vmem [resolvable:$true] %s26
      %32 = dma.hbm_to_vmem [thread:$0]  %s25, 512, %s27, [#allocation6], 64, 64, 4
    $region9: #{tpu_custom_call.1} parent=1 // pred_fallthru
      _
    // Predicated region
    $region10: #{tpu_custom_call.1} parent=1 // pred_check
      _
    $region11: #{tpu_custom_call.1} parent=1 // pred_check_branch
      %34 = sbr.rel (0) target = $region13
    $region12: #{tpu_custom_call.1} parent=1 // pred_region
      _
    $region13: #{tpu_custom_call.1} parent=1 // pred_fallthru
      _
    // Predicated region
    $region14: #{tpu_custom_call.1} parent=1 // pred_check
      _
    $region15: #{tpu_custom_call.1} parent=1 // pred_check_branch
      %36 = sbr.rel (0) target = $region17
    $region16: #{tpu_custom_call.1} parent=1 // pred_region
      %38 = vsyncadd [#allocation9], 0
      %s39 = sshll.u32 %s3, 4
      %s40 = int_to_ptr.hbm [resolvable:$true] %s39
      %s41 = sshll.u32 [#allocation8], 4
      %s42 = int_to_ptr.vmem [resolvable:$true] %s41
      %47 = dma.hbm_to_vmem [thread:$0]  %s40, 3072, %s42, [#allocation9], 192, 192, 12
    $region17: #{tpu_custom_call.1} parent=1 // pred_fallthru
      _
    // Predicated region
    $region18: #{tpu_custom_call.1} parent=1 // pred_check
      _
    $region19: #{tpu_custom_call.1} parent=1 // pred_check_branch
      %49 = sbr.rel (0) target = $region21
    $region20: #{tpu_custom_call.1} parent=1 // pred_region
      %51 = vsyncadd [#allocation9], 0
      %s52 = sshll.u32 %s4, 4
      %s53 = int_to_ptr.hbm [resolvable:$true] %s52
      %s54 = sshll.u32 [#allocation10], 4
      %s55 = int_to_ptr.vmem [resolvable:$true] %s54
      %60 = dma.hbm_to_vmem [thread:$0]  %s53, 3072, %s55, [#allocation9], 192, 192, 12
    $region21: #{tpu_custom_call.1} parent=1 // pred_fallthru
      _
    // Predicated region
    $region22: #{tpu_custom_call.1} parent=1 // pred_check
      _
    $region23: #{tpu_custom_call.1} parent=1 // pred_check_branch
      %62 = sbr.rel (0) target = $region25
    $region24: #{tpu_custom_call.1} parent=1 // pred_region
      _
    $region25: #{tpu_custom_call.1} parent=1 // pred_fallthru
      _
    // Predicated region
    $region26: #{tpu_custom_call.1} parent=1 // pred_check
      _
    $region27: #{tpu_custom_call.1} parent=1 // pred_check_branch
      %64 = sbr.rel (0) target = $region29
    $region28: #{tpu_custom_call.1} parent=1 // pred_region
      _
    $region29: #{tpu_custom_call.1} parent=1 // pred_fallthru
      _
    // Predicated region
    $region30: #{tpu_custom_call.1} parent=1 // pred_check
      _
    $region31: #{tpu_custom_call.1} parent=1 // pred_check_branch
      %66 = sbr.rel (0) target = $region33
    $region32: #{tpu_custom_call.1} parent=1 // pred_region
      %68 = dma.done [#allocation6], 512
    $region33: #{tpu_custom_call.1} parent=1 // pred_fallthru
      _
    // Predicated region
    $region34: #{tpu_custom_call.1} parent=1 // pred_check
      _
    $region35: #{tpu_custom_call.1} parent=1 // pred_check_branch
      %70 = sbr.rel (0) target = $region37
    $region36: #{tpu_custom_call.1} parent=1 // pred_region
      %72 = dma.done [#allocation9], 3072
    $region37: #{tpu_custom_call.1} parent=1 // pred_fallthru
      _
    // Predicated region
    $region38: #{tpu_custom_call.1} parent=1 // pred_check
      _
    $region39: #{tpu_custom_call.1} parent=1 // pred_check_branch
      %74 = sbr.rel (0) target = $region41
    $region40: #{tpu_custom_call.1} parent=1 // pred_region
      %76 = dma.done [#allocation9], 3072
    $region41: #{tpu_custom_call.1} parent=1 // pred_fallthru
      _
    %p77 = scmp.eq.s32.totalorder 0, 0
    // Predicated region
    $region42: #{tpu_custom_call.1} parent=1 // pred_check
      %p78 = pneg %p77
    $region43: #{tpu_custom_call.1} parent=1 // pred_check_branch
      %80 = sbr.rel (%p78) target = $region45
    $region44: #{tpu_custom_call.1} parent=1 // pred_region
      %v81 = vld [vmem:[%s2] sm:$0xff]
      %82 = vst [vmem:[#allocation2] sm:$0xff] %v81
    $region45: #{tpu_custom_call.1} parent=1 // pred_fallthru
      _
    %v83 = vld [vmem:[#allocation5] sm:$0xf]
    %v84 = vld [vmem:[#allocation5 + $0x4] sm:$0xf]
    %v85 = vld [vmem:[#allocation5 + $0x8] sm:$0xf]
    %v86 = vld [vmem:[#allocation5 + $0xc] sm:$0xf]
    %v87 = vld [vmem:[#allocation5 + $0x10] sm:$0xf]
    %v88 = vld [vmem:[#allocation5 + $0x14] sm:$0xf]
    %v89 = vld [vmem:[#allocation5 + $0x18] sm:$0xf]
    %v90 = vld [vmem:[#allocation5 + $0x1c] sm:$0xf]
    %v91 = vld [vmem:[#allocation8] sm:$0xff]
    %v92 = vld [vmem:[#allocation8 + $0x8] sm:$0xf]
    %v93 = vld [vmem:[#allocation8 + $0xc] sm:$0xff]
    %v94 = vld [vmem:[#allocation8 + $0x14] sm:$0xf]
    %v95 = vld [vmem:[#allocation8 + $0x18] sm:$0xff]
    %v96 = vld [vmem:[#allocation8 + $0x20] sm:$0xf]
    %v97 = vld [vmem:[#allocation8 + $0x24] sm:$0xff]
    %v98 = vld [vmem:[#allocation8 + $0x2c] sm:$0xf]
    %v99 = vld [vmem:[#allocation8 + $0x30] sm:$0xff]
    %v100 = vld [vmem:[#allocation8 + $0x38] sm:$0xf]
    %v101 = vld [vmem:[#allocation8 + $0x3c] sm:$0xff]
    %v102 = vld [vmem:[#allocation8 + $0x44] sm:$0xf]
    %v103 = vld [vmem:[#allocation8 + $0x48] sm:$0xff]
    %v104 = vld [vmem:[#allocation8 + $0x50] sm:$0xf]
    %v105 = vld [vmem:[#allocation8 + $0x54] sm:$0xff]
    %v106 = vld [vmem:[#allocation8 + $0x5c] sm:$0xf]
    %v107 = vld [vmem:[#allocation8 + $0x60] sm:$0xff]
    %v108 = vld [vmem:[#allocation8 + $0x68] sm:$0xf]
    %v109 = vld [vmem:[#allocation8 + $0x6c] sm:$0xff]
    %v110 = vld [vmem:[#allocation8 + $0x74] sm:$0xf]
    %v111 = vld [vmem:[#allocation8 + $0x78] sm:$0xff]
    %v112 = vld [vmem:[#allocation8 + $0x80] sm:$0xf]
    %v113 = vld [vmem:[#allocation8 + $0x84] sm:$0xff]
    %v114 = vld [vmem:[#allocation8 + $0x8c] sm:$0xf]
    %v115 = vld [vmem:[#allocation8 + $0x90] sm:$0xff]
    %v116 = vld [vmem:[#allocation8 + $0x98] sm:$0xf]
    %v117 = vld [vmem:[#allocation8 + $0x9c] sm:$0xff]
    %v118 = vld [vmem:[#allocation8 + $0xa4] sm:$0xf]
    %v119 = vld [vmem:[#allocation8 + $0xa8] sm:$0xff]
    %v120 = vld [vmem:[#allocation8 + $0xb0] sm:$0xf]
    %v121 = vld [vmem:[#allocation8 + $0xb4] sm:$0xff]
    %v122 = vld [vmem:[#allocation8 + $0xbc] sm:$0xf]
    %v123 = vld [vmem:[%s5] sm:$0x7]
    %v125 = vperm.slane %v123, 0
    %v126 = vperm.slane %v123, 1
    %v127 = vperm.slane %v123, 2
    %v139 = vunpack.c.l.b16 %v83
    %v140 = vunpack.c.l.b16 %v84
    %v141 = vunpack.c.l.b16 %v85
    %v142 = vunpack.c.l.b16 %v86
    %v143 = vunpack.c.l.b16 %v87
    %v144 = vunpack.c.l.b16 %v88
    %v145 = vunpack.c.l.b16 %v89
    %v146 = vunpack.c.l.b16 %v90
    %v147 = vpack.c.b16 %v140, %v139
    %v148 = vpack.c.b16 %v142, %v141
    %v149 = vpack.c.b16 %v144, %v143
    %v150 = vpack.c.b16 %v146, %v145
    %v187 = vunpack.c.l.b16 %v91
    %v188 = vunpack.c.h.b16 %v91
    %v189 = vunpack.c.l.b16 %v92
    %v190 = vunpack.c.l.b16 %v93
    %v191 = vunpack.c.h.b16 %v93
    %v192 = vunpack.c.l.b16 %v94
    %v193 = vunpack.c.l.b16 %v95
    %v194 = vunpack.c.h.b16 %v95
    %v195 = vunpack.c.l.b16 %v96
    %v196 = vunpack.c.l.b16 %v97
    %v197 = vunpack.c.h.b16 %v97
    %v198 = vunpack.c.l.b16 %v98
    %v199 = vunpack.c.l.b16 %v99
    %v200 = vunpack.c.h.b16 %v99
    %v201 = vunpack.c.l.b16 %v100
    %v202 = vunpack.c.l.b16 %v101
    %v203 = vunpack.c.h.b16 %v101
    %v204 = vunpack.c.l.b16 %v102
    %v205 = vunpack.c.l.b16 %v103
    %v206 = vunpack.c.h.b16 %v103
    %v207 = vunpack.c.l.b16 %v104
    %v208 = vunpack.c.l.b16 %v105
    %v209 = vunpack.c.h.b16 %v105
    %v210 = vunpack.c.l.b16 %v106
    %v211 = vunpack.c.l.b16 %v107
    %v212 = vunpack.c.h.b16 %v107
    %v213 = vunpack.c.l.b16 %v108
    %v214 = vunpack.c.l.b16 %v109
    %v215 = vunpack.c.h.b16 %v109
    %v216 = vunpack.c.l.b16 %v110
    %v217 = vunpack.c.l.b16 %v111
    %v218 = vunpack.c.h.b16 %v111
    %v219 = vunpack.c.l.b16 %v112
    %v220 = vunpack.c.l.b16 %v113
    %v221 = vunpack.c.h.b16 %v113
    %v222 = vunpack.c.l.b16 %v114
    %v223 = vunpack.c.l.b16 %v115
    %v224 = vunpack.c.h.b16 %v115
    %v225 = vunpack.c.l.b16 %v116
    %v226 = vunpack.c.l.b16 %v117
    %v227 = vunpack.c.h.b16 %v117
    %v228 = vunpack.c.l.b16 %v118
    %v229 = vunpack.c.l.b16 %v119
    %v230 = vunpack.c.h.b16 %v119
    %v231 = vunpack.c.l.b16 %v120
    %v232 = vunpack.c.l.b16 %v121
    %v233 = vunpack.c.h.b16 %v121
    %v234 = vunpack.c.l.b16 %v122
    %v235 = vpack.c.b16 %v190, %v187
    %v236 = vpack.c.b16 %v191, %v188
    %v237 = vpack.c.b16 %v192, %v189
    %v238 = vpack.c.b16 %v196, %v193
    %v239 = vpack.c.b16 %v197, %v194
    %v240 = vpack.c.b16 %v198, %v195
    %v241 = vpack.c.b16 %v202, %v199
    %v242 = vpack.c.b16 %v203, %v200
    %v243 = vpack.c.b16 %v204, %v201
    %v244 = vpack.c.b16 %v208, %v205
    %v245 = vpack.c.b16 %v209, %v206
    %v246 = vpack.c.b16 %v210, %v207
    %v247 = vpack.c.b16 %v214, %v211
    %v248 = vpack.c.b16 %v215, %v212
    %v249 = vpack.c.b16 %v216, %v213
    %v250 = vpack.c.b16 %v220, %v217
    %v251 = vpack.c.b16 %v221, %v218
    %v252 = vpack.c.b16 %v222, %v219
    %v253 = vpack.c.b16 %v226, %v223
    %v254 = vpack.c.b16 %v227, %v224
    %v255 = vpack.c.b16 %v228, %v225
    %v256 = vpack.c.b16 %v232, %v229
    %v257 = vpack.c.b16 %v233, %v230
    %v258 = vpack.c.b16 %v234, %v231
    %283 = vmatpush.bf16.msra.mxu0 %v256
    %284 = vmatpush.bf16.msra.mxu0 %v253
    %285 = vmatpush.bf16.msra.mxu0 %v250
    %286 = vmatpush.bf16.msra.mxu0 %v247
    %287 = vmatpush.bf16.msra.mxu0 %v244
    %288 = vmatpush.bf16.msra.mxu0 %v241
    %289 = vmatpush.bf16.msra.mxu0 %v238
    %290 = vmatpush.bf16.msra.mxu0 %v235
    %291 = vmatmul.bf16.gmra.mxu0 %v147
    %v292 = vpop.f32.mrf.mxu0
    %v293 = vadd.f32 %v125, %v292
    %v294 = vpop.f32.mrf.mxu0
    %v295 = vadd.f32 %v125, %v294
    %296 = vmatmul.bf16.gmra.mxu0 %v148
    %v297 = vpop.f32.mrf.mxu0
    %v298 = vadd.f32 %v125, %v297
    %v299 = vpop.f32.mrf.mxu0
    %v300 = vadd.f32 %v125, %v299
    %301 = vmatmul.bf16.gmra.mxu0 %v149
    %v302 = vpop.f32.mrf.mxu0
    %v303 = vadd.f32 %v125, %v302
    %v304 = vpop.f32.mrf.mxu0
    %v305 = vadd.f32 %v125, %v304
    %306 = vmatmul.bf16.gmra.mxu0 %v150
    %v307 = vpop.f32.mrf.mxu0
    %v308 = vadd.f32 %v125, %v307
    %v309 = vpop.f32.mrf.mxu0
    %v310 = vadd.f32 %v125, %v309
    %311 = vdwg.mxu0
    %312 = vmatpush.bf16.msra.mxu0 %v257
    %313 = vmatpush.bf16.msra.mxu0 %v254
    %314 = vmatpush.bf16.msra.mxu0 %v251
    %315 = vmatpush.bf16.msra.mxu0 %v248
    %316 = vmatpush.bf16.msra.mxu0 %v245
    %317 = vmatpush.bf16.msra.mxu0 %v242
    %318 = vmatpush.bf16.msra.mxu0 %v239
    %319 = vmatpush.bf16.msra.mxu0 %v236
    %320 = vmatmul.bf16.gmra.mxu0 %v147
    %v321 = vpop.f32.mrf.mxu0
    %v322 = vadd.f32 %v126, %v321
    %v323 = vpop.f32.mrf.mxu0
    %v324 = vadd.f32 %v126, %v323
    %325 = vmatmul.bf16.gmra.mxu0 %v148
    %v326 = vpop.f32.mrf.mxu0
    %v327 = vadd.f32 %v126, %v326
    %v328 = vpop.f32.mrf.mxu0
    %v329 = vadd.f32 %v126, %v328
    %330 = vmatmul.bf16.gmra.mxu0 %v149
    %v331 = vpop.f32.mrf.mxu0
    %v332 = vadd.f32 %v126, %v331
    %v333 = vpop.f32.mrf.mxu0
    %v334 = vadd.f32 %v126, %v333
    %335 = vmatmul.bf16.gmra.mxu0 %v150
    %v336 = vpop.f32.mrf.mxu0
    %v337 = vadd.f32 %v126, %v336
    %v338 = vpop.f32.mrf.mxu0
    %v339 = vadd.f32 %v126, %v338
    %340 = vdwg.mxu0
    %341 = vmatpush.bf16.msra.mxu0 %v258
    %342 = vmatpush.bf16.msra.mxu0 %v255
    %343 = vmatpush.bf16.msra.mxu0 %v252
    %344 = vmatpush.bf16.msra.mxu0 %v249
    %345 = vmatpush.bf16.msra.mxu0 %v246
    %346 = vmatpush.bf16.msra.mxu0 %v243
    %347 = vmatpush.bf16.msra.mxu0 %v240
    %348 = vmatpush.bf16.msra.mxu0 %v237
    %349 = vmatmul.bf16.gmra.mxu0 %v147
    %v350 = vpop.f32.mrf.mxu0
    %v351 = vadd.f32 %v127, %v350
    %v352 = vpop.f32.mrf.mxu0
    %v353 = vadd.f32 %v127, %v352
    %354 = vmatmul.bf16.gmra.mxu0 %v148
    %v355 = vpop.f32.mrf.mxu0
    %v356 = vadd.f32 %v127, %v355
    %v357 = vpop.f32.mrf.mxu0
    %v358 = vadd.f32 %v127, %v357
    %359 = vmatmul.bf16.gmra.mxu0 %v149
    %v360 = vpop.f32.mrf.mxu0
    %v361 = vadd.f32 %v127, %v360
    %v362 = vpop.f32.mrf.mxu0
    %v363 = vadd.f32 %v127, %v362
    %364 = vmatmul.bf16.gmra.mxu0 %v150
    %v365 = vpop.f32.mrf.mxu0
    %v366 = vadd.f32 %v127, %v365
    %v367 = vpop.f32.mrf.mxu0
    %v368 = vadd.f32 %v127, %v367
    %369 = vdwg.mxu0
    %370 = vst [vmem:[#allocation3] sm:$0xff] %v293
    %371 = vst [vmem:[#allocation3 + $0x8] sm:$0xff] %v322
    %372 = vst [vmem:[#allocation3 + $0x10] sm:$0xff] %v351
    %373 = vst [vmem:[#allocation3 + $0x18] sm:$0xff] %v295
    %374 = vst [vmem:[#allocation3 + $0x20] sm:$0xff] %v324
    %375 = vst [vmem:[#allocation3 + $0x28] sm:$0xff] %v353
    %376 = vst [vmem:[#allocation3 + $0x30] sm:$0xff] %v298
    %377 = vst [vmem:[#allocation3 + $0x38] sm:$0xff] %v327
    %378 = vst [vmem:[#allocation3 + $0x40] sm:$0xff] %v356
    %379 = vst [vmem:[#allocation3 + $0x48] sm:$0xff] %v300
    %380 = vst [vmem:[#allocation3 + $0x50] sm:$0xff] %v329
    %381 = vst [vmem:[#allocation3 + $0x58] sm:$0xff] %v358
    %382 = vst [vmem:[#allocation3 + $0x60] sm:$0xff] %v303
    %383 = vst [vmem:[#allocation3 + $0x68] sm:$0xff] %v332
    %384 = vst [vmem:[#allocation3 + $0x70] sm:$0xff] %v361
    %385 = vst [vmem:[#allocation3 + $0x78] sm:$0xff] %v305
    %386 = vst [vmem:[#allocation3 + $0x80] sm:$0xff] %v334
    %387 = vst [vmem:[#allocation3 + $0x88] sm:$0xff] %v363
    %388 = vst [vmem:[#allocation3 + $0x90] sm:$0xff] %v308
    %389 = vst [vmem:[#allocation3 + $0x98] sm:$0xff] %v337
    %390 = vst [vmem:[#allocation3 + $0xa0] sm:$0xff] %v366
    %391 = vst [vmem:[#allocation3 + $0xa8] sm:$0xff] %v310
    %392 = vst [vmem:[#allocation3 + $0xb0] sm:$0xff] %v339
    %393 = vst [vmem:[#allocation3 + $0xb8] sm:$0xff] %v368
    %v394 = vld [vmem:[%s0] sm:$0xff]
    %v395 = vld [vmem:[%s6] sm:$0x1]
    %v397 = vperm.slane %v395, 0
    %v399 = vld [vmem:[#allocation2] sm:$0xff]
    %v400 = vpack.c.bf16 %v399, %v399
    %v401 = vld [vmem:[#allocation10] sm:$0xff]
    %v402 = vld [vmem:[#allocation10 + $0x8] sm:$0xf]
    %v403 = vld [vmem:[#allocation10 + $0xc] sm:$0xff]
    %v404 = vld [vmem:[#allocation10 + $0x14] sm:$0xf]
    %v405 = vld [vmem:[#allocation10 + $0x18] sm:$0xff]
    %v406 = vld [vmem:[#allocation10 + $0x20] sm:$0xf]
    %v407 = vld [vmem:[#allocation10 + $0x24] sm:$0xff]
    %v408 = vld [vmem:[#allocation10 + $0x2c] sm:$0xf]
    %v409 = vld [vmem:[#allocation10 + $0x30] sm:$0xff]
    %v410 = vld [vmem:[#allocation10 + $0x38] sm:$0xf]
    %v411 = vld [vmem:[#allocation10 + $0x3c] sm:$0xff]
    %v412 = vld [vmem:[#allocation10 + $0x44] sm:$0xf]
    %v413 = vld [vmem:[#allocation10 + $0x48] sm:$0xff]
    %v414 = vld [vmem:[#allocation10 + $0x50] sm:$0xf]
    %v415 = vld [vmem:[#allocation10 + $0x54] sm:$0xff]
    %v416 = vld [vmem:[#allocation10 + $0x5c] sm:$0xf]
    %v417 = vld [vmem:[#allocation10 + $0x60] sm:$0xff]
    %v418 = vld [vmem:[#allocation10 + $0x68] sm:$0xf]
    %v419 = vld [vmem:[#allocation10 + $0x6c] sm:$0xff]
    %v420 = vld [vmem:[#allocation10 + $0x74] sm:$0xf]
    %v421 = vld [vmem:[#allocation10 + $0x78] sm:$0xff]
    %v422 = vld [vmem:[#allocation10 + $0x80] sm:$0xf]
    %v423 = vld [vmem:[#allocation10 + $0x84] sm:$0xff]
    %v424 = vld [vmem:[#allocation10 + $0x8c] sm:$0xf]
    %v425 = vld [vmem:[#allocation10 + $0x90] sm:$0xff]
    %v426 = vld [vmem:[#allocation10 + $0x98] sm:$0xf]
    %v427 = vld [vmem:[#allocation10 + $0x9c] sm:$0xff]
    %v428 = vld [vmem:[#allocation10 + $0xa4] sm:$0xf]
    %v429 = vld [vmem:[#allocation10 + $0xa8] sm:$0xff]
    %v430 = vld [vmem:[#allocation10 + $0xb0] sm:$0xf]
    %v431 = vld [vmem:[#allocation10 + $0xb4] sm:$0xff]
    %v432 = vld [vmem:[#allocation10 + $0xbc] sm:$0xf]
    %v465 = vunpack.c.l.b16 %v401
    %v466 = vunpack.c.h.b16 %v401
    %v467 = vunpack.c.l.b16 %v402
    %v468 = vunpack.c.l.b16 %v403
    %v469 = vunpack.c.h.b16 %v403
    %v470 = vunpack.c.l.b16 %v404
    %v471 = vunpack.c.l.b16 %v405
    %v472 = vunpack.c.h.b16 %v405
    %v473 = vunpack.c.l.b16 %v406
    %v474 = vunpack.c.l.b16 %v407
    %v475 = vunpack.c.h.b16 %v407
    %v476 = vunpack.c.l.b16 %v408
    %v477 = vunpack.c.l.b16 %v409
    %v478 = vunpack.c.h.b16 %v409
    %v479 = vunpack.c.l.b16 %v410
    %v480 = vunpack.c.l.b16 %v411
    %v481 = vunpack.c.h.b16 %v411
    %v482 = vunpack.c.l.b16 %v412
    %v483 = vunpack.c.l.b16 %v413
    %v484 = vunpack.c.h.b16 %v413
    %v485 = vunpack.c.l.b16 %v414
    %v486 = vunpack.c.l.b16 %v415
    %v487 = vunpack.c.h.b16 %v415
    %v488 = vunpack.c.l.b16 %v416
    %v489 = vunpack.c.l.b16 %v417
    %v490 = vunpack.c.h.b16 %v417
    %v491 = vunpack.c.l.b16 %v418
    %v492 = vunpack.c.l.b16 %v419
    %v493 = vunpack.c.h.b16 %v419
    %v494 = vunpack.c.l.b16 %v420
    %v495 = vunpack.c.l.b16 %v421
    %v496 = vunpack.c.h.b16 %v421
    %v497 = vunpack.c.l.b16 %v422
    %v498 = vunpack.c.l.b16 %v423
    %v499 = vunpack.c.h.b16 %v423
    %v500 = vunpack.c.l.b16 %v424
    %v501 = vunpack.c.l.b16 %v425
    %v502 = vunpack.c.h.b16 %v425
    %v503 = vunpack.c.l.b16 %v426
    %v504 = vunpack.c.l.b16 %v427
    %v505 = vunpack.c.h.b16 %v427
    %v506 = vunpack.c.l.b16 %v428
    %v507 = vunpack.c.l.b16 %v429
    %v508 = vunpack.c.h.b16 %v429
    %v509 = vunpack.c.l.b16 %v430
    %v510 = vunpack.c.l.b16 %v431
    %v511 = vunpack.c.h.b16 %v431
    %v512 = vunpack.c.l.b16 %v432
    %v513 = vpack.c.b16 %v468, %v465
    %v514 = vpack.c.b16 %v469, %v466
    %v515 = vpack.c.b16 %v470, %v467
    %v516 = vpack.c.b16 %v474, %v471
    %v517 = vpack.c.b16 %v475, %v472
    %v518 = vpack.c.b16 %v476, %v473
    %v519 = vpack.c.b16 %v480, %v477
    %v520 = vpack.c.b16 %v481, %v478
    %v521 = vpack.c.b16 %v482, %v479
    %v522 = vpack.c.b16 %v486, %v483
    %v523 = vpack.c.b16 %v487, %v484
    %v524 = vpack.c.b16 %v488, %v485
    %v525 = vpack.c.b16 %v492, %v489
    %v526 = vpack.c.b16 %v493, %v490
    %v527 = vpack.c.b16 %v494, %v491
    %v528 = vpack.c.b16 %v498, %v495
    %v529 = vpack.c.b16 %v499, %v496
    %v530 = vpack.c.b16 %v500, %v497
    %v531 = vpack.c.b16 %v504, %v501
    %v532 = vpack.c.b16 %v505, %v502
    %v533 = vpack.c.b16 %v506, %v503
    %v534 = vpack.c.b16 %v510, %v507
    %v535 = vpack.c.b16 %v511, %v508
    %v536 = vpack.c.b16 %v512, %v509
    %561 = vmatpush.bf16.msra.mxu0 %v534
    %562 = vmatpush.bf16.msra.mxu0 %v531
    %563 = vmatpush.bf16.msra.mxu0 %v528
    %564 = vmatpush.bf16.msra.mxu0 %v525
    %565 = vmatpush.bf16.msra.mxu0 %v522
    %566 = vmatpush.bf16.msra.mxu0 %v519
    %567 = vmatpush.bf16.msra.mxu0 %v516
    %568 = vmatpush.bf16.msra.mxu0 %v513
    %569 = vmatmul.bf16.gmra.mxu0 %v400
    %v570 = vpop.f32.mrf.mxu0
    %v571 = vadd.f32 0.0, %v570
    %v572 = vpop.f32.mrf.mxu0
    %573 = vdwg.mxu0
    %574 = vmatpush.bf16.msra.mxu0 %v535
    %575 = vmatpush.bf16.msra.mxu0 %v532
    %576 = vmatpush.bf16.msra.mxu0 %v529
    %577 = vmatpush.bf16.msra.mxu0 %v526
    %578 = vmatpush.bf16.msra.mxu0 %v523
    %579 = vmatpush.bf16.msra.mxu0 %v520
    %580 = vmatpush.bf16.msra.mxu0 %v517
    %581 = vmatpush.bf16.msra.mxu0 %v514
    %582 = vmatmul.bf16.gmra.mxu0 %v400
    %v583 = vpop.f32.mrf.mxu0
    %v584 = vadd.f32 0.0, %v583
    %v585 = vpop.f32.mrf.mxu0
    %586 = vdwg.mxu0
    %587 = vmatpush.bf16.msra.mxu0 %v536
    %588 = vmatpush.bf16.msra.mxu0 %v533
    %589 = vmatpush.bf16.msra.mxu0 %v530
    %590 = vmatpush.bf16.msra.mxu0 %v527
    %591 = vmatpush.bf16.msra.mxu0 %v524
    %592 = vmatpush.bf16.msra.mxu0 %v521
    %593 = vmatpush.bf16.msra.mxu0 %v518
    %594 = vmatpush.bf16.msra.mxu0 %v515
    %595 = vmatmul.bf16.gmra.mxu0 %v400
    %v596 = vpop.f32.mrf.mxu0
    %v597 = vadd.f32 0.0, %v596
    %v598 = vpop.f32.mrf.mxu0
    %599 = vdwg.mxu0
    %v600 = vld [vmem:[#allocation3] sm:$0xff]
    %v601 = vld [vmem:[#allocation3 + $0x8] sm:$0xff]
    %v602 = vld [vmem:[#allocation3 + $0x10] sm:$0xff]
    %v603 = vadd.f32 %v600, %v571
    %v604 = vxor.u32 %v603, 2147483648
    %v605 = vmul.f32 %v604, 1.442695
    %v606 = vpow.pop %v605
    %v607 = vadd.f32 %v606, 1.0
    %v608 = vrcp.pop %v607
    %v609 = vmul.f32 %v607, %v608
    %v610 = vsub.f32 1.0, %v609
    %v611 = vmul.f32 %v608, %v610
    %v612 = vadd.f32 %v608, %v611
    %vm613 = vweird.f32 %v607
    %vm614 = vweird.f32 %v608
    %vm615 = vmor %vm613, %vm614
    %v616 = vsel %vm615, %v608, %v612
    %v617 = vand.u32 2147483647, %v607
    %vm618 = vcmp.eq.f32.partialorder %v617, 8.507059e+37
    %v619 = vand.u32 %v607, 2147483648
    %v620 = vor.u32 1.1754944e-38, %v619
    %v621 = vsel %vm618, %v620, %v616
    %v622 = vmul.f32 1.0, %v621
    %v623 = vadd.f32 %v601, %v584
    %v624 = vxor.u32 %v623, 2147483648
    %v625 = vmul.f32 %v624, 1.442695
    %v626 = vpow.pop %v625
    %v627 = vadd.f32 %v626, 1.0
    %v628 = vrcp.pop %v627
    %v629 = vmul.f32 %v627, %v628
    %v630 = vsub.f32 1.0, %v629
    %v631 = vmul.f32 %v628, %v630
    %v632 = vadd.f32 %v628, %v631
    %vm633 = vweird.f32 %v627
    %vm634 = vweird.f32 %v628
    %vm635 = vmor %vm633, %vm634
    %v636 = vsel %vm635, %v628, %v632
    %v637 = vand.u32 2147483647, %v627
    %vm638 = vcmp.eq.f32.partialorder %v637, 8.507059e+37
    %v639 = vand.u32 %v627, 2147483648
    %v640 = vor.u32 1.1754944e-38, %v639
    %v641 = vsel %vm638, %v640, %v636
    %v642 = vmul.f32 1.0, %v641
    %v643 = vadd.f32 %v597, %v397
    %v644 = vmul.f32 %v622, %v643
    %v645 = vadd.f32 %v602, %v644
    %v646 = vtanh.pop %v645
    %v647 = vsub.f32 1.0, %v642
    %v648 = vmul.f32 %v647, %v646
    %v649 = vmul.f32 %v642, %v399
    %v650 = vadd.f32 %v648, %v649
    %s651 = smul.u32 0, 8
    %v652 = vstv %s651
    %vm653 = vcmp.lt.s32.totalorder %v652, %v394
    %v654 = vsel %vm653, 1, 0
    %655 = vset.pattern.permute.xlu0 0
    %656 = vperm.xlu0 %655, %v654
    %v657 = vpop.permute.xlu0 %656
    %vm658 = vcmp.eq.s32.totalorder %v657, 1
    %v659 = vsel %vm658, %v650, %v399
    %660 = vst [vmem:[#allocation2] sm:$0xff] %v659
    %v661 = vsel %vm658, %v650, 0.0
    %v662 = vpack.c.bf16 %v661, %v661
    %v664 = vrot.slane %v662, 3
    %vm665 = vcmask 1040384
    %v668 = vsel %vm665, %v662, %v664
    %vm670 = vcmask 1041409
    %v671 = vsel %vm670, %v662, %v664
    %v673 = vrot.slane %v671, 1
    %vm674 = vcmask 1042434
    %v675 = vsel %vm674, %v662, %v664
    %v677 = vrot.slane %v675, 2
    %vm678 = vcmask 1043459
    %v679 = vsel %vm678, %v662, %v664
    %v681 = vrot.slane %v679, 3
    %v682 = vunpack.i.l.s16 %v668
    %v683 = vunpack.i.h.s16 %v668
    %v684 = vunpack.i.l.s16 %v673
    %v685 = vunpack.i.h.s16 %v673
    %v686 = vunpack.i.l.s16 %v677
    %v687 = vunpack.i.h.s16 %v677
    %v688 = vunpack.i.l.s16 %v681
    %v689 = vunpack.i.h.s16 %v681
    %v690 = vpack.i.b16 %v682, %v682
    %v691 = vpack.i.b16 %v683, %v683
    %v692 = vpack.i.b16 %v684, %v684
    %v693 = vpack.i.b16 %v685, %v685
    %v694 = vpack.i.b16 %v686, %v686
    %v695 = vpack.i.b16 %v687, %v687
    %v696 = vpack.i.b16 %v688, %v688
    %v697 = vpack.i.b16 %v689, %v689
    %v699 = vunpack.c.l.s4 286326784
    %v700 = vunpack.c.0.s8 %v699
    %v701 = vperm.slane %v690, %v700
    %v703 = vunpack.c.l.s4 286326784
    %v704 = vunpack.c.0.s8 %v703
    %v705 = vperm.slane %v691, %v704
    %v707 = vunpack.c.l.s4 286326784
    %v708 = vunpack.c.0.s8 %v707
    %v709 = vperm.slane %v692, %v708
    %v711 = vunpack.c.l.s4 286326784
    %v712 = vunpack.c.0.s8 %v711
    %v713 = vperm.slane %v693, %v712
    %v715 = vunpack.c.l.s4 286326784
    %v716 = vunpack.c.0.s8 %v715
    %v717 = vperm.slane %v694, %v716
    %v719 = vunpack.c.l.s4 286326784
    %v720 = vunpack.c.0.s8 %v719
    %v721 = vperm.slane %v695, %v720
    %v723 = vunpack.c.l.s4 286326784
    %v724 = vunpack.c.0.s8 %v723
    %v725 = vperm.slane %v696, %v724
    %v727 = vunpack.c.l.s4 286326784
    %v728 = vunpack.c.0.s8 %v727
    %v729 = vperm.slane %v697, %v728
    %vm738 = vcmask 1040384
    %vm739 = vsmask.f32 256
    %vm740 = vmand %vm738, %vm739
    %v741 = vld [vmem:[#allocation4] sm:$0x1]
    %v742 = vsel %vm740, %v701, %v741
    %743 = vst [vmem:[#allocation4] sm:$0x1] %v742
    %v744 = vld [vmem:[#allocation4 + $0x4] sm:$0x1]
    %v745 = vsel %vm740, %v705, %v744
    %746 = vst [vmem:[#allocation4 + $0x4] sm:$0x1] %v745
    %v747 = vld [vmem:[#allocation4 + $0x8] sm:$0x1]
    %v748 = vsel %vm740, %v709, %v747
    %749 = vst [vmem:[#allocation4 + $0x8] sm:$0x1] %v748
    %v750 = vld [vmem:[#allocation4 + $0xc] sm:$0x1]
    %v751 = vsel %vm740, %v713, %v750
    %752 = vst [vmem:[#allocation4 + $0xc] sm:$0x1] %v751
    %v753 = vld [vmem:[#allocation4 + $0x10] sm:$0x1]
    %v754 = vsel %vm740, %v717, %v753
    %755 = vst [vmem:[#allocation4 + $0x10] sm:$0x1] %v754
    %v756 = vld [vmem:[#allocation4 + $0x14] sm:$0x1]
    %v757 = vsel %vm740, %v721, %v756
    %758 = vst [vmem:[#allocation4 + $0x14] sm:$0x1] %v757
    %v759 = vld [vmem:[#allocation4 + $0x18] sm:$0x1]
    %v760 = vsel %vm740, %v725, %v759
    %761 = vst [vmem:[#allocation4 + $0x18] sm:$0x1] %v760
    %v762 = vld [vmem:[#allocation4 + $0x1c] sm:$0x1]
    %v763 = vsel %vm740, %v729, %v762
    %764 = vst [vmem:[#allocation4 + $0x1c] sm:$0x1] %v763
    %v765 = vld [vmem:[#allocation2] sm:$0xff]
    %v766 = vpack.c.bf16 %v765, %v765
    %v767 = vld [vmem:[#allocation10] sm:$0xff]
    %v768 = vld [vmem:[#allocation10 + $0x8] sm:$0xf]
    %v769 = vld [vmem:[#allocation10 + $0xc] sm:$0xff]
    %v770 = vld [vmem:[#allocation10 + $0x14] sm:$0xf]
    %v771 = vld [vmem:[#allocation10 + $0x18] sm:$0xff]
    %v772 = vld [vmem:[#allocation10 + $0x20] sm:$0xf]
    %v773 = vld [vmem:[#allocation10 + $0x24] sm:$0xff]
    %v774 = vld [vmem:[#allocation10 + $0x2c] sm:$0xf]
    %v775 = vld [vmem:[#allocation10 + $0x30] sm:$0xff]
    %v776 = vld [vmem:[#allocation10 + $0x38] sm:$0xf]
    %v777 = vld [vmem:[#allocation10 + $0x3c] sm:$0xff]
    %v778 = vld [vmem:[#allocation10 + $0x44] sm:$0xf]
    %v779 = vld [vmem:[#allocation10 + $0x48] sm:$0xff]
    %v780 = vld [vmem:[#allocation10 + $0x50] sm:$0xf]
    %v781 = vld [vmem:[#allocation10 + $0x54] sm:$0xff]
    %v782 = vld [vmem:[#allocation10 + $0x5c] sm:$0xf]
    %v783 = vld [vmem:[#allocation10 + $0x60] sm:$0xff]
    %v784 = vld [vmem:[#allocation10 + $0x68] sm:$0xf]
    %v785 = vld [vmem:[#allocation10 + $0x6c] sm:$0xff]
    %v786 = vld [vmem:[#allocation10 + $0x74] sm:$0xf]
    %v787 = vld [vmem:[#allocation10 + $0x78] sm:$0xff]
    %v788 = vld [vmem:[#allocation10 + $0x80] sm:$0xf]
    %v789 = vld [vmem:[#allocation10 + $0x84] sm:$0xff]
    %v790 = vld [vmem:[#allocation10 + $0x8c] sm:$0xf]
    %v791 = vld [vmem:[#allocation10 + $0x90] sm:$0xff]
    %v792 = vld [vmem:[#allocation10 + $0x98] sm:$0xf]
    %v793 = vld [vmem:[#allocation10 + $0x9c] sm:$0xff]
    %v794 = vld [vmem:[#allocation10 + $0xa4] sm:$0xf]
    %v795 = vld [vmem:[#allocation10 + $0xa8] sm:$0xff]
    %v796 = vld [vmem:[#allocation10 + $0xb0] sm:$0xf]
    %v797 = vld [vmem:[#allocation10 + $0xb4] sm:$0xff]
    %v798 = vld [vmem:[#allocation10 + $0xbc] sm:$0xf]
    %v831 = vunpack.c.l.b16 %v767
    %v832 = vunpack.c.h.b16 %v767
    %v833 = vunpack.c.l.b16 %v768
    %v834 = vunpack.c.l.b16 %v769
    %v835 = vunpack.c.h.b16 %v769
    %v836 = vunpack.c.l.b16 %v770
    %v837 = vunpack.c.l.b16 %v771
    %v838 = vunpack.c.h.b16 %v771
    %v839 = vunpack.c.l.b16 %v772
    %v840 = vunpack.c.l.b16 %v773
    %v841 = vunpack.c.h.b16 %v773
    %v842 = vunpack.c.l.b16 %v774
    %v843 = vunpack.c.l.b16 %v775
    %v844 = vunpack.c.h.b16 %v775
    %v845 = vunpack.c.l.b16 %v776
    %v846 = vunpack.c.l.b16 %v777
    %v847 = vunpack.c.h.b16 %v777
    %v848 = vunpack.c.l.b16 %v778
    %v849 = vunpack.c.l.b16 %v779
    %v850 = vunpack.c.h.b16 %v779
    %v851 = vunpack.c.l.b16 %v780
    %v852 = vunpack.c.l.b16 %v781
    %v853 = vunpack.c.h.b16 %v781
    %v854 = vunpack.c.l.b16 %v782
    %v855 = vunpack.c.l.b16 %v783
    %v856 = vunpack.c.h.b16 %v783
    %v857 = vunpack.c.l.b16 %v784
    %v858 = vunpack.c.l.b16 %v785
    %v859 = vunpack.c.h.b16 %v785
    %v860 = vunpack.c.l.b16 %v786
    %v861 = vunpack.c.l.b16 %v787
    %v862 = vunpack.c.h.b16 %v787
    %v863 = vunpack.c.l.b16 %v788
    %v864 = vunpack.c.l.b16 %v789
    %v865 = vunpack.c.h.b16 %v789
    %v866 = vunpack.c.l.b16 %v790
    %v867 = vunpack.c.l.b16 %v791
    %v868 = vunpack.c.h.b16 %v791
    %v869 = vunpack.c.l.b16 %v792
    %v870 = vunpack.c.l.b16 %v793
    %v871 = vunpack.c.h.b16 %v793
    %v872 = vunpack.c.l.b16 %v794
    %v873 = vunpack.c.l.b16 %v795
    %v874 = vunpack.c.h.b16 %v795
    %v875 = vunpack.c.l.b16 %v796
    %v876 = vunpack.c.l.b16 %v797
    %v877 = vunpack.c.h.b16 %v797
    %v878 = vunpack.c.l.b16 %v798
    %v879 = vpack.c.b16 %v834, %v831
    %v880 = vpack.c.b16 %v835, %v832
    %v881 = vpack.c.b16 %v836, %v833
    %v882 = vpack.c.b16 %v840, %v837
    %v883 = vpack.c.b16 %v841, %v838
    %v884 = vpack.c.b16 %v842, %v839
    %v885 = vpack.c.b16 %v846, %v843
    %v886 = vpack.c.b16 %v847, %v844
    %v887 = vpack.c.b16 %v848, %v845
    %v888 = vpack.c.b16 %v852, %v849
    %v889 = vpack.c.b16 %v853, %v850
    %v890 = vpack.c.b16 %v854, %v851
    %v891 = vpack.c.b16 %v858, %v855
    %v892 = vpack.c.b16 %v859, %v856
    %v893 = vpack.c.b16 %v860, %v857
    %v894 = vpack.c.b16 %v864, %v861
    %v895 = vpack.c.b16 %v865, %v862
    %v896 = vpack.c.b16 %v866, %v863
    %v897 = vpack.c.b16 %v870, %v867
    %v898 = vpack.c.b16 %v871, %v868
    %v899 = vpack.c.b16 %v872, %v869
    %v900 = vpack.c.b16 %v876, %v873
    %v901 = vpack.c.b16 %v877, %v874
    %v902 = vpack.c.b16 %v878, %v875
    %927 = vmatpush.bf16.msra.mxu0 %v900
    %928 = vmatpush.bf16.msra.mxu0 %v897
    %929 = vmatpush.bf16.msra.mxu0 %v894
    %930 = vmatpush.bf16.msra.mxu0 %v891
    %931 = vmatpush.bf16.msra.mxu0 %v888
    %932 = vmatpush.bf16.msra.mxu0 %v885
    %933 = vmatpush.bf16.msra.mxu0 %v882
    %934 = vmatpush.bf16.msra.mxu0 %v879
    %935 = vmatmul.bf16.gmra.mxu0 %v766
    %v936 = vpop.f32.mrf.mxu0
    %v937 = vadd.f32 0.0, %v936
    %v938 = vpop.f32.mrf.mxu0
    %939 = vdwg.mxu0
    %940 = vmatpush.bf16.msra.mxu0 %v901
    %941 = vmatpush.bf16.msra.mxu0 %v898
    %942 = vmatpush.bf16.msra.mxu0 %v895
    %943 = vmatpush.bf16.msra.mxu0 %v892
    %944 = vmatpush.bf16.msra.mxu0 %v889
    %945 = vmatpush.bf16.msra.mxu0 %v886
    %946 = vmatpush.bf16.msra.mxu0 %v883
    %947 = vmatpush.bf16.msra.mxu0 %v880
    %948 = vmatmul.bf16.gmra.mxu0 %v766
    %v949 = vpop.f32.mrf.mxu0
    %v950 = vadd.f32 0.0, %v949
    %v951 = vpop.f32.mrf.mxu0
    %952 = vdwg.mxu0
    %953 = vmatpush.bf16.msra.mxu0 %v902
    %954 = vmatpush.bf16.msra.mxu0 %v899
    %955 = vmatpush.bf16.msra.mxu0 %v896
    %956 = vmatpush.bf16.msra.mxu0 %v893
    %957 = vmatpush.bf16.msra.mxu0 %v890
    %958 = vmatpush.bf16.msra.mxu0 %v887
    %959 = vmatpush.bf16.msra.mxu0 %v884
    %960 = vmatpush.bf16.msra.mxu0 %v881
    %961 = vmatmul.bf16.gmra.mxu0 %v766
    %v962 = vpop.f32.mrf.mxu0
    %v963 = vadd.f32 0.0, %v962
    %v964 = vpop.f32.mrf.mxu0
    %965 = vdwg.mxu0
    %s966 = scalar_lea.vmem [#allocation3], 24
    %v967 = vld [vmem:[%s966] sm:$0xff]
    %v968 = vld [vmem:[%s966 + $0x8] sm:$0xff]
    %v969 = vld [vmem:[%s966 + $0x10] sm:$0xff]
    %v970 = vadd.f32 %v967, %v937
    %v971 = vxor.u32 %v970, 2147483648
    %v972 = vmul.f32 %v971, 1.442695
    %v973 = vpow.pop %v972
    %v974 = vadd.f32 %v973, 1.0
    %v975 = vrcp.pop %v974
    %v976 = vmul.f32 %v974, %v975
    %v977 = vsub.f32 1.0, %v976
    %v978 = vmul.f32 %v975, %v977
    %v979 = vadd.f32 %v975, %v978
    %vm980 = vweird.f32 %v974
    %vm981 = vweird.f32 %v975
    %vm982 = vmor %vm980, %vm981
    %v983 = vsel %vm982, %v975, %v979
    %v984 = vand.u32 2147483647, %v974
    %vm985 = vcmp.eq.f32.partialorder %v984, 8.507059e+37
    %v986 = vand.u32 %v974, 2147483648
    %v987 = vor.u32 1.1754944e-38, %v986
    %v988 = vsel %vm985, %v987, %v983
    %v989 = vmul.f32 1.0, %v988
    %v990 = vadd.f32 %v968, %v950
    %v991 = vxor.u32 %v990, 2147483648
    %v992 = vmul.f32 %v991, 1.442695
    %v993 = vpow.pop %v992
    %v994 = vadd.f32 %v993, 1.0
    %v995 = vrcp.pop %v994
    %v996 = vmul.f32 %v994, %v995
    %v997 = vsub.f32 1.0, %v996
    %v998 = vmul.f32 %v995, %v997
    %v999 = vadd.f32 %v995, %v998
    %vm1000 = vweird.f32 %v994
    %vm1001 = vweird.f32 %v995
    %vm1002 = vmor %vm1000, %vm1001
    %v1003 = vsel %vm1002, %v995, %v999
    %v1004 = vand.u32 2147483647, %v994
    %vm1005 = vcmp.eq.f32.partialorder %v1004, 8.507059e+37
    %v1006 = vand.u32 %v994, 2147483648
    %v1007 = vor.u32 1.1754944e-38, %v1006
    %v1008 = vsel %vm1005, %v1007, %v1003
    %v1009 = vmul.f32 1.0, %v1008
    %v1010 = vadd.f32 %v963, %v397
    %v1011 = vmul.f32 %v989, %v1010
    %v1012 = vadd.f32 %v969, %v1011
    %v1013 = vtanh.pop %v1012
    %v1014 = vsub.f32 1.0, %v1009
    %v1015 = vmul.f32 %v1014, %v1013
    %v1016 = vmul.f32 %v1009, %v765
    %v1017 = vadd.f32 %v1015, %v1016
    %s1018 = sadd.s32 %s651, 1
    %v1019 = vstv %s1018
    %vm1020 = vcmp.lt.s32.totalorder %v1019, %v394
    %v1021 = vsel %vm1020, 1, 0
    %1022 = vset.pattern.permute.xlu0 0
    %1023 = vperm.xlu0 %1022, %v1021
    %v1024 = vpop.permute.xlu0 %1023
    %vm1025 = vcmp.eq.s32.totalorder %v1024, 1
    %v1026 = vsel %vm1025, %v1017, %v765
    %1027 = vst [vmem:[#allocation2] sm:$0xff] %v1026
    %v1028 = vsel %vm1025, %v1017, 0.0
    %v1029 = vpack.c.bf16 %v1028, %v1028
    %v1031 = vrot.slane %v1029, 3
    %v1034 = vsel %vm665, %v1029, %v1031
    %v1036 = vsel %vm670, %v1029, %v1031
    %v1038 = vrot.slane %v1036, 1
    %v1039 = vsel %vm674, %v1029, %v1031
    %v1041 = vrot.slane %v1039, 2
    %v1042 = vsel %vm678, %v1029, %v1031
    %v1044 = vrot.slane %v1042, 3
    %v1045 = vunpack.i.l.s16 %v1034
    %v1046 = vunpack.i.h.s16 %v1034
    %v1047 = vunpack.i.l.s16 %v1038
    %v1048 = vunpack.i.h.s16 %v1038
    %v1049 = vunpack.i.l.s16 %v1041
    %v1050 = vunpack.i.h.s16 %v1041
    %v1051 = vunpack.i.l.s16 %v1044
    %v1052 = vunpack.i.h.s16 %v1044
    %v1053 = vpack.i.b16 %v1045, %v1045
    %v1054 = vpack.i.b16 %v1046, %v1046
    %v1055 = vpack.i.b16 %v1047, %v1047
    %v1056 = vpack.i.b16 %v1048, %v1048
    %v1057 = vpack.i.b16 %v1049, %v1049
    %v1058 = vpack.i.b16 %v1050, %v1050
    %v1059 = vpack.i.b16 %v1051, %v1051
    %v1060 = vpack.i.b16 %v1052, %v1052
    %v1062 = vunpack.c.l.s4 286326784
    %v1063 = vunpack.c.0.s8 %v1062
    %v1064 = vperm.slane %v1053, %v1063
    %v1066 = vunpack.c.l.s4 286326784
    %v1067 = vunpack.c.0.s8 %v1066
    %v1068 = vperm.slane %v1054, %v1067
    %v1070 = vunpack.c.l.s4 286326784
    %v1071 = vunpack.c.0.s8 %v1070
    %v1072 = vperm.slane %v1055, %v1071
    %v1074 = vunpack.c.l.s4 286326784
    %v1075 = vunpack.c.0.s8 %v1074
    %v1076 = vperm.slane %v1056, %v1075
    %v1078 = vunpack.c.l.s4 286326784
    %v1079 = vunpack.c.0.s8 %v1078
    %v1080 = vperm.slane %v1057, %v1079
    %v1082 = vunpack.c.l.s4 286326784
    %v1083 = vunpack.c.0.s8 %v1082
    %v1084 = vperm.slane %v1058, %v1083
    %v1086 = vunpack.c.l.s4 286326784
    %v1087 = vunpack.c.0.s8 %v1086
    %v1088 = vperm.slane %v1059, %v1087
    %v1090 = vunpack.c.l.s4 286326784
    %v1091 = vunpack.c.0.s8 %v1090
    %v1092 = vperm.slane %v1060, %v1091
    %vm1101 = vsmask.f32 7938
    %vm1102 = vmand %vm738, %vm1101
    %v1103 = vld [vmem:[#allocation4] sm:$0x1]
    %v1104 = vsel %vm1102, %v1064, %v1103
    %1105 = vst [vmem:[#allocation4] sm:$0x1] %v1104
    %v1106 = vld [vmem:[#allocation4 + $0x4] sm:$0x1]
    %v1107 = vsel %vm1102, %v1068, %v1106
    %1108 = vst [vmem:[#allocation4 + $0x4] sm:$0x1] %v1107
    %v1109 = vld [vmem:[#allocation4 + $0x8] sm:$0x1]
    %v1110 = vsel %vm1102, %v1072, %v1109
    %1111 = vst [vmem:[#allocation4 + $0x8] sm:$0x1] %v1110
    %v1112 = vld [vmem:[#allocation4 + $0xc] sm:$0x1]
    %v1113 = vsel %vm1102, %v1076, %v1112
    %1114 = vst [vmem:[#allocation4 + $0xc] sm:$0x1] %v1113
    %v1115 = vld [vmem:[#allocation4 + $0x10] sm:$0x1]
    %v1116 = vsel %vm1102, %v1080, %v1115
    %1117 = vst [vmem:[#allocation4 + $0x10] sm:$0x1] %v1116
    %v1118 = vld [vmem:[#allocation4 + $0x14] sm:$0x1]
    %v1119 = vsel %vm1102, %v1084, %v1118
    %1120 = vst [vmem:[#allocation4 + $0x14] sm:$0x1] %v1119
    %v1121 = vld [vmem:[#allocation4 + $0x18] sm:$0x1]
    %v1122 = vsel %vm1102, %v1088, %v1121
    %1123 = vst [vmem:[#allocation4 + $0x18] sm:$0x1] %v1122
    %v1124 = vld [vmem:[#allocation4 + $0x1c] sm:$0x1]
    %v1125 = vsel %vm1102, %v1092, %v1124
    %1126 = vst [vmem:[#allocation4 + $0x1c] sm:$0x1] %v1125
    %v1127 = vld [vmem:[#allocation2] sm:$0xff]
    %v1128 = vpack.c.bf16 %v1127, %v1127
    %v1129 = vld [vmem:[#allocation10] sm:$0xff]
    %v1130 = vld [vmem:[#allocation10 + $0x8] sm:$0xf]
    %v1131 = vld [vmem:[#allocation10 + $0xc] sm:$0xff]
    %v1132 = vld [vmem:[#allocation10 + $0x14] sm:$0xf]
    %v1133 = vld [vmem:[#allocation10 + $0x18] sm:$0xff]
    %v1134 = vld [vmem:[#allocation10 + $0x20] sm:$0xf]
    %v1135 = vld [vmem:[#allocation10 + $0x24] sm:$0xff]
    %v1136 = vld [vmem:[#allocation10 + $0x2c] sm:$0xf]
    %v1137 = vld [vmem:[#allocation10 + $0x30] sm:$0xff]
    %v1138 = vld [vmem:[#allocation10 + $0x38] sm:$0xf]
    %v1139 = vld [vmem:[#allocation10 + $0x3c] sm:$0xff]
    %v1140 = vld [vmem:[#allocation10 + $0x44] sm:$0xf]
    %v1141 = vld [vmem:[#allocation10 + $0x48] sm:$0xff]
    %v1142 = vld [vmem:[#allocation10 + $0x50] sm:$0xf]
    %v1143 = vld [vmem:[#allocation10 + $0x54] sm:$0xff]
    %v1144 = vld [vmem:[#allocation10 + $0x5c] sm:$0xf]
    %v1145 = vld [vmem:[#allocation10 + $0x60] sm:$0xff]
    %v1146 = vld [vmem:[#allocation10 + $0x68] sm:$0xf]
    %v1147 = vld [vmem:[#allocation10 + $0x6c] sm:$0xff]
    %v1148 = vld [vmem:[#allocation10 + $0x74] sm:$0xf]
    %v1149 = vld [vmem:[#allocation10 + $0x78] sm:$0xff]
    %v1150 = vld [vmem:[#allocation10 + $0x80] sm:$0xf]
    %v1151 = vld [vmem:[#allocation10 + $0x84] sm:$0xff]
    %v1152 = vld [vmem:[#allocation10 + $0x8c] sm:$0xf]
    %v1153 = vld [vmem:[#allocation10 + $0x90] sm:$0xff]
    %v1154 = vld [vmem:[#allocation10 + $0x98] sm:$0xf]
    %v1155 = vld [vmem:[#allocation10 + $0x9c] sm:$0xff]
    %v1156 = vld [vmem:[#allocation10 + $0xa4] sm:$0xf]
    %v1157 = vld [vmem:[#allocation10 + $0xa8] sm:$0xff]
    %v1158 = vld [vmem:[#allocation10 + $0xb0] sm:$0xf]
    %v1159 = vld [vmem:[#allocation10 + $0xb4] sm:$0xff]
    %v1160 = vld [vmem:[#allocation10 + $0xbc] sm:$0xf]
    %v1193 = vunpack.c.l.b16 %v1129
    %v1194 = vunpack.c.h.b16 %v1129
    %v1195 = vunpack.c.l.b16 %v1130
    %v1196 = vunpack.c.l.b16 %v1131
    %v1197 = vunpack.c.h.b16 %v1131
    %v1198 = vunpack.c.l.b16 %v1132
    %v1199 = vunpack.c.l.b16 %v1133
    %v1200 = vunpack.c.h.b16 %v1133
    %v1201 = vunpack.c.l.b16 %v1134
    %v1202 = vunpack.c.l.b16 %v1135
    %v1203 = vunpack.c.h.b16 %v1135
    %v1204 = vunpack.c.l.b16 %v1136
    %v1205 = vunpack.c.l.b16 %v1137
    %v1206 = vunpack.c.h.b16 %v1137
    %v1207 = vunpack.c.l.b16 %v1138
    %v1208 = vunpack.c.l.b16 %v1139
    %v1209 = vunpack.c.h.b16 %v1139
    %v1210 = vunpack.c.l.b16 %v1140
    %v1211 = vunpack.c.l.b16 %v1141
    %v1212 = vunpack.c.h.b16 %v1141
    %v1213 = vunpack.c.l.b16 %v1142
    %v1214 = vunpack.c.l.b16 %v1143
    %v1215 = vunpack.c.h.b16 %v1143
    %v1216 = vunpack.c.l.b16 %v1144
    %v1217 = vunpack.c.l.b16 %v1145
    %v1218 = vunpack.c.h.b16 %v1145
    %v1219 = vunpack.c.l.b16 %v1146
    %v1220 = vunpack.c.l.b16 %v1147
    %v1221 = vunpack.c.h.b16 %v1147
    %v1222 = vunpack.c.l.b16 %v1148
    %v1223 = vunpack.c.l.b16 %v1149
    %v1224 = vunpack.c.h.b16 %v1149
    %v1225 = vunpack.c.l.b16 %v1150
    %v1226 = vunpack.c.l.b16 %v1151
    %v1227 = vunpack.c.h.b16 %v1151
    %v1228 = vunpack.c.l.b16 %v1152
    %v1229 = vunpack.c.l.b16 %v1153
    %v1230 = vunpack.c.h.b16 %v1153
    %v1231 = vunpack.c.l.b16 %v1154
    %v1232 = vunpack.c.l.b16 %v1155
    %v1233 = vunpack.c.h.b16 %v1155
    %v1234 = vunpack.c.l.b16 %v1156
    %v1235 = vunpack.c.l.b16 %v1157
    %v1236 = vunpack.c.h.b16 %v1157
    %v1237 = vunpack.c.l.b16 %v1158
    %v1238 = vunpack.c.l.b16 %v1159
    %v1239 = vunpack.c.h.b16 %v1159
    %v1240 = vunpack.c.l.b16 %v1160
    %v1241 = vpack.c.b16 %v1196, %v1193
    %v1242 = vpack.c.b16 %v1197, %v1194
    %v1243 = vpack.c.b16 %v1198, %v1195
    %v1244 = vpack.c.b16 %v1202, %v1199
    %v1245 = vpack.c.b16 %v1203, %v1200
    %v1246 = vpack.c.b16 %v1204, %v1201
    %v1247 = vpack.c.b16 %v1208, %v1205
    %v1248 = vpack.c.b16 %v1209, %v1206
    %v1249 = vpack.c.b16 %v1210, %v1207
    %v1250 = vpack.c.b16 %v1214, %v1211
    %v1251 = vpack.c.b16 %v1215, %v1212
    %v1252 = vpack.c.b16 %v1216, %v1213
    %v1253 = vpack.c.b16 %v1220, %v1217
    %v1254 = vpack.c.b16 %v1221, %v1218
    %v1255 = vpack.c.b16 %v1222, %v1219
    %v1256 = vpack.c.b16 %v1226, %v1223
    %v1257 = vpack.c.b16 %v1227, %v1224
    %v1258 = vpack.c.b16 %v1228, %v1225
    %v1259 = vpack.c.b16 %v1232, %v1229
    %v1260 = vpack.c.b16 %v1233, %v1230
    %v1261 = vpack.c.b16 %v1234, %v1231
    %v1262 = vpack.c.b16 %v1238, %v1235
    %v1263 = vpack.c.b16 %v1239, %v1236
    %v1264 = vpack.c.b16 %v1240, %v1237
    %1289 = vmatpush.bf16.msra.mxu0 %v1262
    %1290 = vmatpush.bf16.msra.mxu0 %v1259
    %1291 = vmatpush.bf16.msra.mxu0 %v1256
    %1292 = vmatpush.bf16.msra.mxu0 %v1253
    %1293 = vmatpush.bf16.msra.mxu0 %v1250
    %1294 = vmatpush.bf16.msra.mxu0 %v1247
    %1295 = vmatpush.bf16.msra.mxu0 %v1244
    %1296 = vmatpush.bf16.msra.mxu0 %v1241
    %1297 = vmatmul.bf16.gmra.mxu0 %v1128
    %v1298 = vpop.f32.mrf.mxu0
    %v1299 = vadd.f32 0.0, %v1298
    %v1300 = vpop.f32.mrf.mxu0
    %1301 = vdwg.mxu0
    %1302 = vmatpush.bf16.msra.mxu0 %v1263
    %1303 = vmatpush.bf16.msra.mxu0 %v1260
    %1304 = vmatpush.bf16.msra.mxu0 %v1257
    %1305 = vmatpush.bf16.msra.mxu0 %v1254
    %1306 = vmatpush.bf16.msra.mxu0 %v1251
    %1307 = vmatpush.bf16.msra.mxu0 %v1248
    %1308 = vmatpush.bf16.msra.mxu0 %v1245
    %1309 = vmatpush.bf16.msra.mxu0 %v1242
    %1310 = vmatmul.bf16.gmra.mxu0 %v1128
    %v1311 = vpop.f32.mrf.mxu0
    %v1312 = vadd.f32 0.0, %v1311
    %v1313 = vpop.f32.mrf.mxu0
    %1314 = vdwg.mxu0
    %1315 = vmatpush.bf16.msra.mxu0 %v1264
    %1316 = vmatpush.bf16.msra.mxu0 %v1261
    %1317 = vmatpush.bf16.msra.mxu0 %v1258
    %1318 = vmatpush.bf16.msra.mxu0 %v1255
    %1319 = vmatpush.bf16.msra.mxu0 %v1252
    %1320 = vmatpush.bf16.msra.mxu0 %v1249
    %1321 = vmatpush.bf16.msra.mxu0 %v1246
    %1322 = vmatpush.bf16.msra.mxu0 %v1243
    %1323 = vmatmul.bf16.gmra.mxu0 %v1128
    %v1324 = vpop.f32.mrf.mxu0
    %v1325 = vadd.f32 0.0, %v1324
    %v1326 = vpop.f32.mrf.mxu0
    %1327 = vdwg.mxu0
    %s1328 = scalar_lea.vmem [#allocation3], 48
    %v1329 = vld [vmem:[%s1328] sm:$0xff]
    %v1330 = vld [vmem:[%s1328 + $0x8] sm:$0xff]
    %v1331 = vld [vmem:[%s1328 + $0x10] sm:$0xff]
    %v1332 = vadd.f32 %v1329, %v1299
    %v1333 = vxor.u32 %v1332, 2147483648
    %v1334 = vmul.f32 %v1333, 1.442695
    %v1335 = vpow.pop %v1334
    %v1336 = vadd.f32 %v1335, 1.0
    %v1337 = vrcp.pop %v1336
    %v1338 = vmul.f32 %v1336, %v1337
    %v1339 = vsub.f32 1.0, %v1338
    %v1340 = vmul.f32 %v1337, %v1339
    %v1341 = vadd.f32 %v1337, %v1340
    %vm1342 = vweird.f32 %v1336
    %vm1343 = vweird.f32 %v1337
    %vm1344 = vmor %vm1342, %vm1343
    %v1345 = vsel %vm1344, %v1337, %v1341
    %v1346 = vand.u32 2147483647, %v1336
    %vm1347 = vcmp.eq.f32.partialorder %v1346, 8.507059e+37
    %v1348 = vand.u32 %v1336, 2147483648
    %v1349 = vor.u32 1.1754944e-38, %v1348
    %v1350 = vsel %vm1347, %v1349, %v1345
    %v1351 = vmul.f32 1.0, %v1350
    %v1352 = vadd.f32 %v1330, %v1312
    %v1353 = vxor.u32 %v1352, 2147483648
    %v1354 = vmul.f32 %v1353, 1.442695
    %v1355 = vpow.pop %v1354
    %v1356 = vadd.f32 %v1355, 1.0
    %v1357 = vrcp.pop %v1356
    %v1358 = vmul.f32 %v1356, %v1357
    %v1359 = vsub.f32 1.0, %v1358
    %v1360 = vmul.f32 %v1357, %v1359
    %v1361 = vadd.f32 %v1357, %v1360
    %vm1362 = vweird.f32 %v1356
    %vm1363 = vweird.f32 %v1357
    %vm1364 = vmor %vm1362, %vm1363
    %v1365 = vsel %vm1364, %v1357, %v1361
    %v1366 = vand.u32 2147483647, %v1356
    %vm1367 = vcmp.eq.f32.partialorder %v1366, 8.507059e+37
    %v1368 = vand.u32 %v1356, 2147483648
    %v1369 = vor.u32 1.1754944e-38, %v1368
    %v1370 = vsel %vm1367, %v1369, %v1365
    %v1371 = vmul.f32 1.0, %v1370
    %v1372 = vadd.f32 %v1325, %v397
    %v1373 = vmul.f32 %v1351, %v1372
    %v1374 = vadd.f32 %v1331, %v1373
    %v1375 = vtanh.pop %v1374
    %v1376 = vsub.f32 1.0, %v1371
    %v1377 = vmul.f32 %v1376, %v1375
    %v1378 = vmul.f32 %v1371, %v1127
    %v1379 = vadd.f32 %v1377, %v1378
    %s1380 = sadd.s32 %s651, 2
    %v1381 = vstv %s1380
    %vm1382 = vcmp.lt.s32.totalorder %v1381, %v394
    %v1383 = vsel %vm1382, 1, 0
    %1384 = vset.pattern.permute.xlu0 0
    %1385 = vperm.xlu0 %1384, %v1383
    %v1386 = vpop.permute.xlu0 %1385
    %vm1387 = vcmp.eq.s32.totalorder %v1386, 1
    %v1388 = vsel %vm1387, %v1379, %v1127
    %1389 = vst [vmem:[#allocation2] sm:$0xff] %v1388
    %v1390 = vsel %vm1387, %v1379, 0.0
    %v1391 = vpack.c.bf16 %v1390, %v1390
    %v1393 = vrot.slane %v1391, 3
    %v1396 = vsel %vm665, %v1391, %v1393
    %v1398 = vsel %vm670, %v1391, %v1393
    %v1400 = vrot.slane %v1398, 1
    %v1401 = vsel %vm674, %v1391, %v1393
    %v1403 = vrot.slane %v1401, 2
    %v1404 = vsel %vm678, %v1391, %v1393
    %v1406 = vrot.slane %v1404, 3
    %v1407 = vunpack.i.l.s16 %v1396
    %v1408 = vunpack.i.h.s16 %v1396
    %v1409 = vunpack.i.l.s16 %v1400
    %v1410 = vunpack.i.h.s16 %v1400
    %v1411 = vunpack.i.l.s16 %v1403
    %v1412 = vunpack.i.h.s16 %v1403
    %v1413 = vunpack.i.l.s16 %v1406
    %v1414 = vunpack.i.h.s16 %v1406
    %v1415 = vpack.i.b16 %v1407, %v1407
    %v1416 = vpack.i.b16 %v1408, %v1408
    %v1417 = vpack.i.b16 %v1409, %v1409
    %v1418 = vpack.i.b16 %v1410, %v1410
    %v1419 = vpack.i.b16 %v1411, %v1411
    %v1420 = vpack.i.b16 %v1412, %v1412
    %v1421 = vpack.i.b16 %v1413, %v1413
    %v1422 = vpack.i.b16 %v1414, %v1414
    %v1424 = vunpack.c.l.s4 286326784
    %v1425 = vunpack.c.0.s8 %v1424
    %v1426 = vperm.slane %v1415, %v1425
    %v1428 = vunpack.c.l.s4 286326784
    %v1429 = vunpack.c.0.s8 %v1428
    %v1430 = vperm.slane %v1416, %v1429
    %v1432 = vunpack.c.l.s4 286326784
    %v1433 = vunpack.c.0.s8 %v1432
    %v1434 = vperm.slane %v1417, %v1433
    %v1436 = vunpack.c.l.s4 286326784
    %v1437 = vunpack.c.0.s8 %v1436
    %v1438 = vperm.slane %v1418, %v1437
    %v1440 = vunpack.c.l.s4 286326784
    %v1441 = vunpack.c.0.s8 %v1440
    %v1442 = vperm.slane %v1419, %v1441
    %v1444 = vunpack.c.l.s4 286326784
    %v1445 = vunpack.c.0.s8 %v1444
    %v1446 = vperm.slane %v1420, %v1445
    %v1448 = vunpack.c.l.s4 286326784
    %v1449 = vunpack.c.0.s8 %v1448
    %v1450 = vperm.slane %v1421, %v1449
    %v1452 = vunpack.c.l.s4 286326784
    %v1453 = vunpack.c.0.s8 %v1452
    %v1454 = vperm.slane %v1422, %v1453
    %vm1463 = vcmask 1041409
    %vm1464 = vsmask.f32 1280
    %vm1465 = vmand %vm1463, %vm1464
    %v1466 = vld [vmem:[#allocation4] sm:$0x2]
    %v1467 = vsel %vm1465, %v1426, %v1466
    %1468 = vst [vmem:[#allocation4] sm:$0x2] %v1467
    %v1469 = vld [vmem:[#allocation4 + $0x4] sm:$0x2]
    %v1470 = vsel %vm1465, %v1430, %v1469
    %1471 = vst [vmem:[#allocation4 + $0x4] sm:$0x2] %v1470
    %v1472 = vld [vmem:[#allocation4 + $0x8] sm:$0x2]
    %v1473 = vsel %vm1465, %v1434, %v1472
    %1474 = vst [vmem:[#allocation4 + $0x8] sm:$0x2] %v1473
    %v1475 = vld [vmem:[#allocation4 + $0xc] sm:$0x2]
    %v1476 = vsel %vm1465, %v1438, %v1475
    %1477 = vst [vmem:[#allocation4 + $0xc] sm:$0x2] %v1476
    %v1478 = vld [vmem:[#allocation4 + $0x10] sm:$0x2]
    %v1479 = vsel %vm1465, %v1442, %v1478
    %1480 = vst [vmem:[#allocation4 + $0x10] sm:$0x2] %v1479
    %v1481 = vld [vmem:[#allocation4 + $0x14] sm:$0x2]
    %v1482 = vsel %vm1465, %v1446, %v1481
    %1483 = vst [vmem:[#allocation4 + $0x14] sm:$0x2] %v1482
    %v1484 = vld [vmem:[#allocation4 + $0x18] sm:$0x2]
    %v1485 = vsel %vm1465, %v1450, %v1484
    %1486 = vst [vmem:[#allocation4 + $0x18] sm:$0x2] %v1485
    %v1487 = vld [vmem:[#allocation4 + $0x1c] sm:$0x2]
    %v1488 = vsel %vm1465, %v1454, %v1487
    %1489 = vst [vmem:[#allocation4 + $0x1c] sm:$0x2] %v1488
    %v1490 = vld [vmem:[#allocation2] sm:$0xff]
    %v1491 = vpack.c.bf16 %v1490, %v1490
    %v1492 = vld [vmem:[#allocation10] sm:$0xff]
    %v1493 = vld [vmem:[#allocation10 + $0x8] sm:$0xf]
    %v1494 = vld [vmem:[#allocation10 + $0xc] sm:$0xff]
    %v1495 = vld [vmem:[#allocation10 + $0x14] sm:$0xf]
    %v1496 = vld [vmem:[#allocation10 + $0x18] sm:$0xff]
    %v1497 = vld [vmem:[#allocation10 + $0x20] sm:$0xf]
    %v1498 = vld [vmem:[#allocation10 + $0x24] sm:$0xff]
    %v1499 = vld [vmem:[#allocation10 + $0x2c] sm:$0xf]
    %v1500 = vld [vmem:[#allocation10 + $0x30] sm:$0xff]
    %v1501 = vld [vmem:[#allocation10 + $0x38] sm:$0xf]
    %v1502 = vld [vmem:[#allocation10 + $0x3c] sm:$0xff]
    %v1503 = vld [vmem:[#allocation10 + $0x44] sm:$0xf]
    %v1504 = vld [vmem:[#allocation10 + $0x48] sm:$0xff]
    %v1505 = vld [vmem:[#allocation10 + $0x50] sm:$0xf]
    %v1506 = vld [vmem:[#allocation10 + $0x54] sm:$0xff]
    %v1507 = vld [vmem:[#allocation10 + $0x5c] sm:$0xf]
    %v1508 = vld [vmem:[#allocation10 + $0x60] sm:$0xff]
    %v1509 = vld [vmem:[#allocation10 + $0x68] sm:$0xf]
    %v1510 = vld [vmem:[#allocation10 + $0x6c] sm:$0xff]
    %v1511 = vld [vmem:[#allocation10 + $0x74] sm:$0xf]
    %v1512 = vld [vmem:[#allocation10 + $0x78] sm:$0xff]
    %v1513 = vld [vmem:[#allocation10 + $0x80] sm:$0xf]
    %v1514 = vld [vmem:[#allocation10 + $0x84] sm:$0xff]
    %v1515 = vld [vmem:[#allocation10 + $0x8c] sm:$0xf]
    %v1516 = vld [vmem:[#allocation10 + $0x90] sm:$0xff]
    %v1517 = vld [vmem:[#allocation10 + $0x98] sm:$0xf]
    %v1518 = vld [vmem:[#allocation10 + $0x9c] sm:$0xff]
    %v1519 = vld [vmem:[#allocation10 + $0xa4] sm:$0xf]
    %v1520 = vld [vmem:[#allocation10 + $0xa8] sm:$0xff]
    %v1521 = vld [vmem:[#allocation10 + $0xb0] sm:$0xf]
    %v1522 = vld [vmem:[#allocation10 + $0xb4] sm:$0xff]
    %v1523 = vld [vmem:[#allocation10 + $0xbc] sm:$0xf]
    %v1556 = vunpack.c.l.b16 %v1492
    %v1557 = vunpack.c.h.b16 %v1492
    %v1558 = vunpack.c.l.b16 %v1493
    %v1559 = vunpack.c.l.b16 %v1494
    %v1560 = vunpack.c.h.b16 %v1494
    %v1561 = vunpack.c.l.b16 %v1495
    %v1562 = vunpack.c.l.b16 %v1496
    %v1563 = vunpack.c.h.b16 %v1496
    %v1564 = vunpack.c.l.b16 %v1497
    %v1565 = vunpack.c.l.b16 %v1498
    %v1566 = vunpack.c.h.b16 %v1498
    %v1567 = vunpack.c.l.b16 %v1499
    %v1568 = vunpack.c.l.b16 %v1500
    %v1569 = vunpack.c.h.b16 %v1500
    %v1570 = vunpack.c.l.b16 %v1501
    %v1571 = vunpack.c.l.b16 %v1502
    %v1572 = vunpack.c.h.b16 %v1502
    %v1573 = vunpack.c.l.b16 %v1503
    %v1574 = vunpack.c.l.b16 %v1504
    %v1575 = vunpack.c.h.b16 %v1504
    %v1576 = vunpack.c.l.b16 %v1505
    %v1577 = vunpack.c.l.b16 %v1506
    %v1578 = vunpack.c.h.b16 %v1506
    %v1579 = vunpack.c.l.b16 %v1507
    %v1580 = vunpack.c.l.b16 %v1508
    %v1581 = vunpack.c.h.b16 %v1508
    %v1582 = vunpack.c.l.b16 %v1509
    %v1583 = vunpack.c.l.b16 %v1510
    %v1584 = vunpack.c.h.b16 %v1510
    %v1585 = vunpack.c.l.b16 %v1511
    %v1586 = vunpack.c.l.b16 %v1512
    %v1587 = vunpack.c.h.b16 %v1512
    %v1588 = vunpack.c.l.b16 %v1513
    %v1589 = vunpack.c.l.b16 %v1514
    %v1590 = vunpack.c.h.b16 %v1514
    %v1591 = vunpack.c.l.b16 %v1515
    %v1592 = vunpack.c.l.b16 %v1516
    %v1593 = vunpack.c.h.b16 %v1516
    %v1594 = vunpack.c.l.b16 %v1517
    %v1595 = vunpack.c.l.b16 %v1518
    %v1596 = vunpack.c.h.b16 %v1518
    %v1597 = vunpack.c.l.b16 %v1519
    %v1598 = vunpack.c.l.b16 %v1520
    %v1599 = vunpack.c.h.b16 %v1520
    %v1600 = vunpack.c.l.b16 %v1521
    %v1601 = vunpack.c.l.b16 %v1522
    %v1602 = vunpack.c.h.b16 %v1522
    %v1603 = vunpack.c.l.b16 %v1523
    %v1604 = vpack.c.b16 %v1559, %v1556
    %v1605 = vpack.c.b16 %v1560, %v1557
    %v1606 = vpack.c.b16 %v1561, %v1558
    %v1607 = vpack.c.b16 %v1565, %v1562
    %v1608 = vpack.c.b16 %v1566, %v1563
    %v1609 = vpack.c.b16 %v1567, %v1564
    %v1610 = vpack.c.b16 %v1571, %v1568
    %v1611 = vpack.c.b16 %v1572, %v1569
    %v1612 = vpack.c.b16 %v1573, %v1570
    %v1613 = vpack.c.b16 %v1577, %v1574
    %v1614 = vpack.c.b16 %v1578, %v1575
    %v1615 = vpack.c.b16 %v1579, %v1576
    %v1616 = vpack.c.b16 %v1583, %v1580
    %v1617 = vpack.c.b16 %v1584, %v1581
    %v1618 = vpack.c.b16 %v1585, %v1582
    %v1619 = vpack.c.b16 %v1589, %v1586
    %v1620 = vpack.c.b16 %v1590, %v1587
    %v1621 = vpack.c.b16 %v1591, %v1588
    %v1622 = vpack.c.b16 %v1595, %v1592
    %v1623 = vpack.c.b16 %v1596, %v1593
    %v1624 = vpack.c.b16 %v1597, %v1594
    %v1625 = vpack.c.b16 %v1601, %v1598
    %v1626 = vpack.c.b16 %v1602, %v1599
    %v1627 = vpack.c.b16 %v1603, %v1600
    %1652 = vmatpush.bf16.msra.mxu0 %v1625
    %1653 = vmatpush.bf16.msra.mxu0 %v1622
    %1654 = vmatpush.bf16.msra.mxu0 %v1619
    %1655 = vmatpush.bf16.msra.mxu0 %v1616
    %1656 = vmatpush.bf16.msra.mxu0 %v1613
    %1657 = vmatpush.bf16.msra.mxu0 %v1610
    %1658 = vmatpush.bf16.msra.mxu0 %v1607
    %1659 = vmatpush.bf16.msra.mxu0 %v1604
    %1660 = vmatmul.bf16.gmra.mxu0 %v1491
    %v1661 = vpop.f32.mrf.mxu0
    %v1662 = vadd.f32 0.0, %v1661
    %v1663 = vpop.f32.mrf.mxu0
    %1664 = vdwg.mxu0
    %1665 = vmatpush.bf16.msra.mxu0 %v1626
    %1666 = vmatpush.bf16.msra.mxu0 %v1623
    %1667 = vmatpush.bf16.msra.mxu0 %v1620
    %1668 = vmatpush.bf16.msra.mxu0 %v1617
    %1669 = vmatpush.bf16.msra.mxu0 %v1614
    %1670 = vmatpush.bf16.msra.mxu0 %v1611
    %1671 = vmatpush.bf16.msra.mxu0 %v1608
    %1672 = vmatpush.bf16.msra.mxu0 %v1605
    %1673 = vmatmul.bf16.gmra.mxu0 %v1491
    %v1674 = vpop.f32.mrf.mxu0
    %v1675 = vadd.f32 0.0, %v1674
    %v1676 = vpop.f32.mrf.mxu0
    %1677 = vdwg.mxu0
    %1678 = vmatpush.bf16.msra.mxu0 %v1627
    %1679 = vmatpush.bf16.msra.mxu0 %v1624
    %1680 = vmatpush.bf16.msra.mxu0 %v1621
    %1681 = vmatpush.bf16.msra.mxu0 %v1618
    %1682 = vmatpush.bf16.msra.mxu0 %v1615
    %1683 = vmatpush.bf16.msra.mxu0 %v1612
    %1684 = vmatpush.bf16.msra.mxu0 %v1609
    %1685 = vmatpush.bf16.msra.mxu0 %v1606
    %1686 = vmatmul.bf16.gmra.mxu0 %v1491
    %v1687 = vpop.f32.mrf.mxu0
    %v1688 = vadd.f32 0.0, %v1687
    %v1689 = vpop.f32.mrf.mxu0
    %1690 = vdwg.mxu0
    %s1691 = scalar_lea.vmem [#allocation3], 72
    %v1692 = vld [vmem:[%s1691] sm:$0xff]
    %v1693 = vld [vmem:[%s1691 + $0x8] sm:$0xff]
    %v1694 = vld [vmem:[%s1691 + $0x10] sm:$0xff]
    %v1695 = vadd.f32 %v1692, %v1662
    %v1696 = vxor.u32 %v1695, 2147483648
    %v1697 = vmul.f32 %v1696, 1.442695
    %v1698 = vpow.pop %v1697
    %v1699 = vadd.f32 %v1698, 1.0
    %v1700 = vrcp.pop %v1699
    %v1701 = vmul.f32 %v1699, %v1700
    %v1702 = vsub.f32 1.0, %v1701
    %v1703 = vmul.f32 %v1700, %v1702
    %v1704 = vadd.f32 %v1700, %v1703
    %vm1705 = vweird.f32 %v1699
    %vm1706 = vweird.f32 %v1700
    %vm1707 = vmor %vm1705, %vm1706
    %v1708 = vsel %vm1707, %v1700, %v1704
    %v1709 = vand.u32 2147483647, %v1699
    %vm1710 = vcmp.eq.f32.partialorder %v1709, 8.507059e+37
    %v1711 = vand.u32 %v1699, 2147483648
    %v1712 = vor.u32 1.1754944e-38, %v1711
    %v1713 = vsel %vm1710, %v1712, %v1708
    %v1714 = vmul.f32 1.0, %v1713
    %v1715 = vadd.f32 %v1693, %v1675
    %v1716 = vxor.u32 %v1715, 2147483648
    %v1717 = vmul.f32 %v1716, 1.442695
    %v1718 = vpow.pop %v1717
    %v1719 = vadd.f32 %v1718, 1.0
    %v1720 = vrcp.pop %v1719
    %v1721 = vmul.f32 %v1719, %v1720
    %v1722 = vsub.f32 1.0, %v1721
    %v1723 = vmul.f32 %v1720, %v1722
    %v1724 = vadd.f32 %v1720, %v1723
    %vm1725 = vweird.f32 %v1719
    %vm1726 = vweird.f32 %v1720
    %vm1727 = vmor %vm1725, %vm1726
    %v1728 = vsel %vm1727, %v1720, %v1724
    %v1729 = vand.u32 2147483647, %v1719
    %vm1730 = vcmp.eq.f32.partialorder %v1729, 8.507059e+37
    %v1731 = vand.u32 %v1719, 2147483648
    %v1732 = vor.u32 1.1754944e-38, %v1731
    %v1733 = vsel %vm1730, %v1732, %v1728
    %v1734 = vmul.f32 1.0, %v1733
    %v1735 = vadd.f32 %v1688, %v397
    %v1736 = vmul.f32 %v1714, %v1735
    %v1737 = vadd.f32 %v1694, %v1736
    %v1738 = vtanh.pop %v1737
    %v1739 = vsub.f32 1.0, %v1734
    %v1740 = vmul.f32 %v1739, %v1738
    %v1741 = vmul.f32 %v1734, %v1490
    %v1742 = vadd.f32 %v1740, %v1741
    %s1743 = sadd.s32 %s651, 3
    %v1744 = vstv %s1743
    %vm1745 = vcmp.lt.s32.totalorder %v1744, %v394
    %v1746 = vsel %vm1745, 1, 0
    %1747 = vset.pattern.permute.xlu0 0
    %1748 = vperm.xlu0 %1747, %v1746
    %v1749 = vpop.permute.xlu0 %1748
    %vm1750 = vcmp.eq.s32.totalorder %v1749, 1
    %v1751 = vsel %vm1750, %v1742, %v1490
    %1752 = vst [vmem:[#allocation2] sm:$0xff] %v1751
    %v1753 = vsel %vm1750, %v1742, 0.0
    %v1754 = vpack.c.bf16 %v1753, %v1753
    %v1756 = vrot.slane %v1754, 3
    %v1759 = vsel %vm665, %v1754, %v1756
    %v1761 = vsel %vm670, %v1754, %v1756
    %v1763 = vrot.slane %v1761, 1
    %v1764 = vsel %vm674, %v1754, %v1756
    %v1766 = vrot.slane %v1764, 2
    %v1767 = vsel %vm678, %v1754, %v1756
    %v1769 = vrot.slane %v1767, 3
    %v1770 = vunpack.i.l.s16 %v1759
    %v1771 = vunpack.i.h.s16 %v1759
    %v1772 = vunpack.i.l.s16 %v1763
    %v1773 = vunpack.i.h.s16 %v1763
    %v1774 = vunpack.i.l.s16 %v1766
    %v1775 = vunpack.i.h.s16 %v1766
    %v1776 = vunpack.i.l.s16 %v1769
    %v1777 = vunpack.i.h.s16 %v1769
    %v1778 = vpack.i.b16 %v1770, %v1770
    %v1779 = vpack.i.b16 %v1771, %v1771
    %v1780 = vpack.i.b16 %v1772, %v1772
    %v1781 = vpack.i.b16 %v1773, %v1773
    %v1782 = vpack.i.b16 %v1774, %v1774
    %v1783 = vpack.i.b16 %v1775, %v1775
    %v1784 = vpack.i.b16 %v1776, %v1776
    %v1785 = vpack.i.b16 %v1777, %v1777
    %v1787 = vunpack.c.l.s4 286326784
    %v1788 = vunpack.c.0.s8 %v1787
    %v1789 = vperm.slane %v1778, %v1788
    %v1791 = vunpack.c.l.s4 286326784
    %v1792 = vunpack.c.0.s8 %v1791
    %v1793 = vperm.slane %v1779, %v1792
    %v1795 = vunpack.c.l.s4 286326784
    %v1796 = vunpack.c.0.s8 %v1795
    %v1797 = vperm.slane %v1780, %v1796
    %v1799 = vunpack.c.l.s4 286326784
    %v1800 = vunpack.c.0.s8 %v1799
    %v1801 = vperm.slane %v1781, %v1800
    %v1803 = vunpack.c.l.s4 286326784
    %v1804 = vunpack.c.0.s8 %v1803
    %v1805 = vperm.slane %v1782, %v1804
    %v1807 = vunpack.c.l.s4 286326784
    %v1808 = vunpack.c.0.s8 %v1807
    %v1809 = vperm.slane %v1783, %v1808
    %v1811 = vunpack.c.l.s4 286326784
    %v1812 = vunpack.c.0.s8 %v1811
    %v1813 = vperm.slane %v1784, %v1812
    %v1815 = vunpack.c.l.s4 286326784
    %v1816 = vunpack.c.0.s8 %v1815
    %v1817 = vperm.slane %v1785, %v1816
    %vm1826 = vsmask.f32 7942
    %vm1827 = vmand %vm1463, %vm1826
    %v1828 = vld [vmem:[#allocation4] sm:$0x2]
    %v1829 = vsel %vm1827, %v1789, %v1828
    %1830 = vst [vmem:[#allocation4] sm:$0x2] %v1829
    %v1831 = vld [vmem:[#allocation4 + $0x4] sm:$0x2]
    %v1832 = vsel %vm1827, %v1793, %v1831
    %1833 = vst [vmem:[#allocation4 + $0x4] sm:$0x2] %v1832
    %v1834 = vld [vmem:[#allocation4 + $0x8] sm:$0x2]
    %v1835 = vsel %vm1827, %v1797, %v1834
    %1836 = vst [vmem:[#allocation4 + $0x8] sm:$0x2] %v1835
    %v1837 = vld [vmem:[#allocation4 + $0xc] sm:$0x2]
    %v1838 = vsel %vm1827, %v1801, %v1837
    %1839 = vst [vmem:[#allocation4 + $0xc] sm:$0x2] %v1838
    %v1840 = vld [vmem:[#allocation4 + $0x10] sm:$0x2]
    %v1841 = vsel %vm1827, %v1805, %v1840
    %1842 = vst [vmem:[#allocation4 + $0x10] sm:$0x2] %v1841
    %v1843 = vld [vmem:[#allocation4 + $0x14] sm:$0x2]
    %v1844 = vsel %vm1827, %v1809, %v1843
    %1845 = vst [vmem:[#allocation4 + $0x14] sm:$0x2] %v1844
    %v1846 = vld [vmem:[#allocation4 + $0x18] sm:$0x2]
    %v1847 = vsel %vm1827, %v1813, %v1846
    %1848 = vst [vmem:[#allocation4 + $0x18] sm:$0x2] %v1847
    %v1849 = vld [vmem:[#allocation4 + $0x1c] sm:$0x2]
    %v1850 = vsel %vm1827, %v1817, %v1849
    %1851 = vst [vmem:[#allocation4 + $0x1c] sm:$0x2] %v1850
    %v1852 = vld [vmem:[#allocation2] sm:$0xff]
    %v1853 = vpack.c.bf16 %v1852, %v1852
    %v1854 = vld [vmem:[#allocation10] sm:$0xff]
    %v1855 = vld [vmem:[#allocation10 + $0x8] sm:$0xf]
    %v1856 = vld [vmem:[#allocation10 + $0xc] sm:$0xff]
    %v1857 = vld [vmem:[#allocation10 + $0x14] sm:$0xf]
    %v1858 = vld [vmem:[#allocation10 + $0x18] sm:$0xff]
    %v1859 = vld [vmem:[#allocation10 + $0x20] sm:$0xf]
    %v1860 = vld [vmem:[#allocation10 + $0x24] sm:$0xff]
    %v1861 = vld [vmem:[#allocation10 + $0x2c] sm:$0xf]
    %v1862 = vld [vmem:[#allocation10 + $0x30] sm:$0xff]
    %v1863 = vld [vmem:[#allocation10 + $0x38] sm:$0xf]
    %v1864 = vld [vmem:[#allocation10 + $0x3c] sm:$0xff]
    %v1865 = vld [vmem:[#allocation10 + $0x44] sm:$0xf]
    %v1866 = vld [vmem:[#allocation10 + $0x48] sm:$0xff]
    %v1867 = vld [vmem:[#allocation10 + $0x50] sm:$0xf]
    %v1868 = vld [vmem:[#allocation10 + $0x54] sm:$0xff]
    %v1869 = vld [vmem:[#allocation10 + $0x5c] sm:$0xf]
    %v1870 = vld [vmem:[#allocation10 + $0x60] sm:$0xff]
    %v1871 = vld [vmem:[#allocation10 + $0x68] sm:$0xf]
    %v1872 = vld [vmem:[#allocation10 + $0x6c] sm:$0xff]
    %v1873 = vld [vmem:[#allocation10 + $0x74] sm:$0xf]
    %v1874 = vld [vmem:[#allocation10 + $0x78] sm:$0xff]
    %v1875 = vld [vmem:[#allocation10 + $0x80] sm:$0xf]
    %v1876 = vld [vmem:[#allocation10 + $0x84] sm:$0xff]
    %v1877 = vld [vmem:[#allocation10 + $0x8c] sm:$0xf]
    %v1878 = vld [vmem:[#allocation10 + $0x90] sm:$0xff]
    %v1879 = vld [vmem:[#allocation10 + $0x98] sm:$0xf]
    %v1880 = vld [vmem:[#allocation10 + $0x9c] sm:$0xff]
    %v1881 = vld [vmem:[#allocation10 + $0xa4] sm:$0xf]
    %v1882 = vld [vmem:[#allocation10 + $0xa8] sm:$0xff]
    %v1883 = vld [vmem:[#allocation10 + $0xb0] sm:$0xf]
    %v1884 = vld [vmem:[#allocation10 + $0xb4] sm:$0xff]
    %v1885 = vld [vmem:[#allocation10 + $0xbc] sm:$0xf]
    %v1918 = vunpack.c.l.b16 %v1854
    %v1919 = vunpack.c.h.b16 %v1854
    %v1920 = vunpack.c.l.b16 %v1855
    %v1921 = vunpack.c.l.b16 %v1856
    %v1922 = vunpack.c.h.b16 %v1856
    %v1923 = vunpack.c.l.b16 %v1857
    %v1924 = vunpack.c.l.b16 %v1858
    %v1925 = vunpack.c.h.b16 %v1858
    %v1926 = vunpack.c.l.b16 %v1859
    %v1927 = vunpack.c.l.b16 %v1860
    %v1928 = vunpack.c.h.b16 %v1860
    %v1929 = vunpack.c.l.b16 %v1861
    %v1930 = vunpack.c.l.b16 %v1862
    %v1931 = vunpack.c.h.b16 %v1862
    %v1932 = vunpack.c.l.b16 %v1863
    %v1933 = vunpack.c.l.b16 %v1864
    %v1934 = vunpack.c.h.b16 %v1864
    %v1935 = vunpack.c.l.b16 %v1865
    %v1936 = vunpack.c.l.b16 %v1866
    %v1937 = vunpack.c.h.b16 %v1866
    %v1938 = vunpack.c.l.b16 %v1867
    %v1939 = vunpack.c.l.b16 %v1868
    %v1940 = vunpack.c.h.b16 %v1868
    %v1941 = vunpack.c.l.b16 %v1869
    %v1942 = vunpack.c.l.b16 %v1870
    %v1943 = vunpack.c.h.b16 %v1870
    %v1944 = vunpack.c.l.b16 %v1871
    %v1945 = vunpack.c.l.b16 %v1872
    %v1946 = vunpack.c.h.b16 %v1872
    %v1947 = vunpack.c.l.b16 %v1873
    %v1948 = vunpack.c.l.b16 %v1874
    %v1949 = vunpack.c.h.b16 %v1874
    %v1950 = vunpack.c.l.b16 %v1875
    %v1951 = vunpack.c.l.b16 %v1876
    %v1952 = vunpack.c.h.b16 %v1876
    %v1953 = vunpack.c.l.b16 %v1877
    %v1954 = vunpack.c.l.b16 %v1878
    %v1955 = vunpack.c.h.b16 %v1878
    %v1956 = vunpack.c.l.b16 %v1879
    %v1957 = vunpack.c.l.b16 %v1880
    %v1958 = vunpack.c.h.b16 %v1880
    %v1959 = vunpack.c.l.b16 %v1881
    %v1960 = vunpack.c.l.b16 %v1882
    %v1961 = vunpack.c.h.b16 %v1882
    %v1962 = vunpack.c.l.b16 %v1883
    %v1963 = vunpack.c.l.b16 %v1884
    %v1964 = vunpack.c.h.b16 %v1884
    %v1965 = vunpack.c.l.b16 %v1885
    %v1966 = vpack.c.b16 %v1921, %v1918
    %v1967 = vpack.c.b16 %v1922, %v1919
    %v1968 = vpack.c.b16 %v1923, %v1920
    %v1969 = vpack.c.b16 %v1927, %v1924
    %v1970 = vpack.c.b16 %v1928, %v1925
    %v1971 = vpack.c.b16 %v1929, %v1926
    %v1972 = vpack.c.b16 %v1933, %v1930
    %v1973 = vpack.c.b16 %v1934, %v1931
    %v1974 = vpack.c.b16 %v1935, %v1932
    %v1975 = vpack.c.b16 %v1939, %v1936
    %v1976 = vpack.c.b16 %v1940, %v1937
    %v1977 = vpack.c.b16 %v1941, %v1938
    %v1978 = vpack.c.b16 %v1945, %v1942
    %v1979 = vpack.c.b16 %v1946, %v1943
    %v1980 = vpack.c.b16 %v1947, %v1944
    %v1981 = vpack.c.b16 %v1951, %v1948
    %v1982 = vpack.c.b16 %v1952, %v1949
    %v1983 = vpack.c.b16 %v1953, %v1950
    %v1984 = vpack.c.b16 %v1957, %v1954
    %v1985 = vpack.c.b16 %v1958, %v1955
    %v1986 = vpack.c.b16 %v1959, %v1956
    %v1987 = vpack.c.b16 %v1963, %v1960
    %v1988 = vpack.c.b16 %v1964, %v1961
    %v1989 = vpack.c.b16 %v1965, %v1962
    %2014 = vmatpush.bf16.msra.mxu0 %v1987
    %2015 = vmatpush.bf16.msra.mxu0 %v1984
    %2016 = vmatpush.bf16.msra.mxu0 %v1981
    %2017 = vmatpush.bf16.msra.mxu0 %v1978
    %2018 = vmatpush.bf16.msra.mxu0 %v1975
    %2019 = vmatpush.bf16.msra.mxu0 %v1972
    %2020 = vmatpush.bf16.msra.mxu0 %v1969
    %2021 = vmatpush.bf16.msra.mxu0 %v1966
    %2022 = vmatmul.bf16.gmra.mxu0 %v1853
    %v2023 = vpop.f32.mrf.mxu0
    %v2024 = vadd.f32 0.0, %v2023
    %v2025 = vpop.f32.mrf.mxu0
    %2026 = vdwg.mxu0
    %2027 = vmatpush.bf16.msra.mxu0 %v1988
    %2028 = vmatpush.bf16.msra.mxu0 %v1985
    %2029 = vmatpush.bf16.msra.mxu0 %v1982
    %2030 = vmatpush.bf16.msra.mxu0 %v1979
    %2031 = vmatpush.bf16.msra.mxu0 %v1976
    %2032 = vmatpush.bf16.msra.mxu0 %v1973
    %2033 = vmatpush.bf16.msra.mxu0 %v1970
    %2034 = vmatpush.bf16.msra.mxu0 %v1967
    %2035 = vmatmul.bf16.gmra.mxu0 %v1853
    %v2036 = vpop.f32.mrf.mxu0
    %v2037 = vadd.f32 0.0, %v2036
    %v2038 = vpop.f32.mrf.mxu0
    %2039 = vdwg.mxu0
    %2040 = vmatpush.bf16.msra.mxu0 %v1989
    %2041 = vmatpush.bf16.msra.mxu0 %v1986
    %2042 = vmatpush.bf16.msra.mxu0 %v1983
    %2043 = vmatpush.bf16.msra.mxu0 %v1980
    %2044 = vmatpush.bf16.msra.mxu0 %v1977
    %2045 = vmatpush.bf16.msra.mxu0 %v1974
    %2046 = vmatpush.bf16.msra.mxu0 %v1971
    %2047 = vmatpush.bf16.msra.mxu0 %v1968
    %2048 = vmatmul.bf16.gmra.mxu0 %v1853
    %v2049 = vpop.f32.mrf.mxu0
    %v2050 = vadd.f32 0.0, %v2049
    %v2051 = vpop.f32.mrf.mxu0
    %2052 = vdwg.mxu0
    %s2053 = scalar_lea.vmem [#allocation3], 96
    %v2054 = vld [vmem:[%s2053] sm:$0xff]
    %v2055 = vld [vmem:[%s2053 + $0x8] sm:$0xff]
    %v2056 = vld [vmem:[%s2053 + $0x10] sm:$0xff]
    %v2057 = vadd.f32 %v2054, %v2024
    %v2058 = vxor.u32 %v2057, 2147483648
    %v2059 = vmul.f32 %v2058, 1.442695
    %v2060 = vpow.pop %v2059
    %v2061 = vadd.f32 %v2060, 1.0
    %v2062 = vrcp.pop %v2061
    %v2063 = vmul.f32 %v2061, %v2062
    %v2064 = vsub.f32 1.0, %v2063
    %v2065 = vmul.f32 %v2062, %v2064
    %v2066 = vadd.f32 %v2062, %v2065
    %vm2067 = vweird.f32 %v2061
    %vm2068 = vweird.f32 %v2062
    %vm2069 = vmor %vm2067, %vm2068
    %v2070 = vsel %vm2069, %v2062, %v2066
    %v2071 = vand.u32 2147483647, %v2061
    %vm2072 = vcmp.eq.f32.partialorder %v2071, 8.507059e+37
    %v2073 = vand.u32 %v2061, 2147483648
    %v2074 = vor.u32 1.1754944e-38, %v2073
    %v2075 = vsel %vm2072, %v2074, %v2070
    %v2076 = vmul.f32 1.0, %v2075
    %v2077 = vadd.f32 %v2055, %v2037
    %v2078 = vxor.u32 %v2077, 2147483648
    %v2079 = vmul.f32 %v2078, 1.442695
    %v2080 = vpow.pop %v2079
    %v2081 = vadd.f32 %v2080, 1.0
    %v2082 = vrcp.pop %v2081
    %v2083 = vmul.f32 %v2081, %v2082
    %v2084 = vsub.f32 1.0, %v2083
    %v2085 = vmul.f32 %v2082, %v2084
    %v2086 = vadd.f32 %v2082, %v2085
    %vm2087 = vweird.f32 %v2081
    %vm2088 = vweird.f32 %v2082
    %vm2089 = vmor %vm2087, %vm2088
    %v2090 = vsel %vm2089, %v2082, %v2086
    %v2091 = vand.u32 2147483647, %v2081
    %vm2092 = vcmp.eq.f32.partialorder %v2091, 8.507059e+37
    %v2093 = vand.u32 %v2081, 2147483648
    %v2094 = vor.u32 1.1754944e-38, %v2093
    %v2095 = vsel %vm2092, %v2094, %v2090
    %v2096 = vmul.f32 1.0, %v2095
    %v2097 = vadd.f32 %v2050, %v397
    %v2098 = vmul.f32 %v2076, %v2097
    %v2099 = vadd.f32 %v2056, %v2098
    %v2100 = vtanh.pop %v2099
    %v2101 = vsub.f32 1.0, %v2096
    %v2102 = vmul.f32 %v2101, %v2100
    %v2103 = vmul.f32 %v2096, %v1852
    %v2104 = vadd.f32 %v2102, %v2103
    %s2105 = sadd.s32 %s651, 4
    %v2106 = vstv %s2105
    %vm2107 = vcmp.lt.s32.totalorder %v2106, %v394
    %v2108 = vsel %vm2107, 1, 0
    %2109 = vset.pattern.permute.xlu0 0
    %2110 = vperm.xlu0 %2109, %v2108
    %v2111 = vpop.permute.xlu0 %2110
    %vm2112 = vcmp.eq.s32.totalorder %v2111, 1
    %v2113 = vsel %vm2112, %v2104, %v1852
    %2114 = vst [vmem:[#allocation2] sm:$0xff] %v2113
    %v2115 = vsel %vm2112, %v2104, 0.0
    %v2116 = vpack.c.bf16 %v2115, %v2115
    %v2118 = vrot.slane %v2116, 3
    %v2121 = vsel %vm665, %v2116, %v2118
    %v2123 = vsel %vm670, %v2116, %v2118
    %v2125 = vrot.slane %v2123, 1
    %v2126 = vsel %vm674, %v2116, %v2118
    %v2128 = vrot.slane %v2126, 2
    %v2129 = vsel %vm678, %v2116, %v2118
    %v2131 = vrot.slane %v2129, 3
    %v2132 = vunpack.i.l.s16 %v2121
    %v2133 = vunpack.i.h.s16 %v2121
    %v2134 = vunpack.i.l.s16 %v2125
    %v2135 = vunpack.i.h.s16 %v2125
    %v2136 = vunpack.i.l.s16 %v2128
    %v2137 = vunpack.i.h.s16 %v2128
    %v2138 = vunpack.i.l.s16 %v2131
    %v2139 = vunpack.i.h.s16 %v2131
    %v2140 = vpack.i.b16 %v2132, %v2132
    %v2141 = vpack.i.b16 %v2133, %v2133
    %v2142 = vpack.i.b16 %v2134, %v2134
    %v2143 = vpack.i.b16 %v2135, %v2135
    %v2144 = vpack.i.b16 %v2136, %v2136
    %v2145 = vpack.i.b16 %v2137, %v2137
    %v2146 = vpack.i.b16 %v2138, %v2138
    %v2147 = vpack.i.b16 %v2139, %v2139
    %v2149 = vunpack.c.l.s4 286326784
    %v2150 = vunpack.c.0.s8 %v2149
    %v2151 = vperm.slane %v2140, %v2150
    %v2153 = vunpack.c.l.s4 286326784
    %v2154 = vunpack.c.0.s8 %v2153
    %v2155 = vperm.slane %v2141, %v2154
    %v2157 = vunpack.c.l.s4 286326784
    %v2158 = vunpack.c.0.s8 %v2157
    %v2159 = vperm.slane %v2142, %v2158
    %v2161 = vunpack.c.l.s4 286326784
    %v2162 = vunpack.c.0.s8 %v2161
    %v2163 = vperm.slane %v2143, %v2162
    %v2165 = vunpack.c.l.s4 286326784
    %v2166 = vunpack.c.0.s8 %v2165
    %v2167 = vperm.slane %v2144, %v2166
    %v2169 = vunpack.c.l.s4 286326784
    %v2170 = vunpack.c.0.s8 %v2169
    %v2171 = vperm.slane %v2145, %v2170
    %v2173 = vunpack.c.l.s4 286326784
    %v2174 = vunpack.c.0.s8 %v2173
    %v2175 = vperm.slane %v2146, %v2174
    %v2177 = vunpack.c.l.s4 286326784
    %v2178 = vunpack.c.0.s8 %v2177
    %v2179 = vperm.slane %v2147, %v2178
    %vm2188 = vcmask 1042434
    %vm2189 = vsmask.f32 2304
    %vm2190 = vmand %vm2188, %vm2189
    %v2191 = vld [vmem:[#allocation4] sm:$0x4]
    %v2192 = vsel %vm2190, %v2151, %v2191
    %2193 = vst [vmem:[#allocation4] sm:$0x4] %v2192
    %v2194 = vld [vmem:[#allocation4 + $0x4] sm:$0x4]
    %v2195 = vsel %vm2190, %v2155, %v2194
    %2196 = vst [vmem:[#allocation4 + $0x4] sm:$0x4] %v2195
    %v2197 = vld [vmem:[#allocation4 + $0x8] sm:$0x4]
    %v2198 = vsel %vm2190, %v2159, %v2197
    %2199 = vst [vmem:[#allocation4 + $0x8] sm:$0x4] %v2198
    %v2200 = vld [vmem:[#allocation4 + $0xc] sm:$0x4]
    %v2201 = vsel %vm2190, %v2163, %v2200
    %2202 = vst [vmem:[#allocation4 + $0xc] sm:$0x4] %v2201
    %v2203 = vld [vmem:[#allocation4 + $0x10] sm:$0x4]
    %v2204 = vsel %vm2190, %v2167, %v2203
    %2205 = vst [vmem:[#allocation4 + $0x10] sm:$0x4] %v2204
    %v2206 = vld [vmem:[#allocation4 + $0x14] sm:$0x4]
    %v2207 = vsel %vm2190, %v2171, %v2206
    %2208 = vst [vmem:[#allocation4 + $0x14] sm:$0x4] %v2207
    %v2209 = vld [vmem:[#allocation4 + $0x18] sm:$0x4]
    %v2210 = vsel %vm2190, %v2175, %v2209
    %2211 = vst [vmem:[#allocation4 + $0x18] sm:$0x4] %v2210
    %v2212 = vld [vmem:[#allocation4 + $0x1c] sm:$0x4]
    %v2213 = vsel %vm2190, %v2179, %v2212
    %2214 = vst [vmem:[#allocation4 + $0x1c] sm:$0x4] %v2213
    %v2215 = vld [vmem:[#allocation2] sm:$0xff]
    %v2216 = vpack.c.bf16 %v2215, %v2215
    %v2217 = vld [vmem:[#allocation10] sm:$0xff]
    %v2218 = vld [vmem:[#allocation10 + $0x8] sm:$0xf]
    %v2219 = vld [vmem:[#allocation10 + $0xc] sm:$0xff]
    %v2220 = vld [vmem:[#allocation10 + $0x14] sm:$0xf]
    %v2221 = vld [vmem:[#allocation10 + $0x18] sm:$0xff]
    %v2222 = vld [vmem:[#allocation10 + $0x20] sm:$0xf]
    %v2223 = vld [vmem:[#allocation10 + $0x24] sm:$0xff]
    %v2224 = vld [vmem:[#allocation10 + $0x2c] sm:$0xf]
    %v2225 = vld [vmem:[#allocation10 + $0x30] sm:$0xff]
    %v2226 = vld [vmem:[#allocation10 + $0x38] sm:$0xf]
    %v2227 = vld [vmem:[#allocation10 + $0x3c] sm:$0xff]
    %v2228 = vld [vmem:[#allocation10 + $0x44] sm:$0xf]
    %v2229 = vld [vmem:[#allocation10 + $0x48] sm:$0xff]
    %v2230 = vld [vmem:[#allocation10 + $0x50] sm:$0xf]
    %v2231 = vld [vmem:[#allocation10 + $0x54] sm:$0xff]
    %v2232 = vld [vmem:[#allocation10 + $0x5c] sm:$0xf]
    %v2233 = vld [vmem:[#allocation10 + $0x60] sm:$0xff]
    %v2234 = vld [vmem:[#allocation10 + $0x68] sm:$0xf]
    %v2235 = vld [vmem:[#allocation10 + $0x6c] sm:$0xff]
    %v2236 = vld [vmem:[#allocation10 + $0x74] sm:$0xf]
    %v2237 = vld [vmem:[#allocation10 + $0x78] sm:$0xff]
    %v2238 = vld [vmem:[#allocation10 + $0x80] sm:$0xf]
    %v2239 = vld [vmem:[#allocation10 + $0x84] sm:$0xff]
    %v2240 = vld [vmem:[#allocation10 + $0x8c] sm:$0xf]
    %v2241 = vld [vmem:[#allocation10 + $0x90] sm:$0xff]
    %v2242 = vld [vmem:[#allocation10 + $0x98] sm:$0xf]
    %v2243 = vld [vmem:[#allocation10 + $0x9c] sm:$0xff]
    %v2244 = vld [vmem:[#allocation10 + $0xa4] sm:$0xf]
    %v2245 = vld [vmem:[#allocation10 + $0xa8] sm:$0xff]
    %v2246 = vld [vmem:[#allocation10 + $0xb0] sm:$0xf]
    %v2247 = vld [vmem:[#allocation10 + $0xb4] sm:$0xff]
    %v2248 = vld [vmem:[#allocation10 + $0xbc] sm:$0xf]
    %v2281 = vunpack.c.l.b16 %v2217
    %v2282 = vunpack.c.h.b16 %v2217
    %v2283 = vunpack.c.l.b16 %v2218
    %v2284 = vunpack.c.l.b16 %v2219
    %v2285 = vunpack.c.h.b16 %v2219
    %v2286 = vunpack.c.l.b16 %v2220
    %v2287 = vunpack.c.l.b16 %v2221
    %v2288 = vunpack.c.h.b16 %v2221
    %v2289 = vunpack.c.l.b16 %v2222
    %v2290 = vunpack.c.l.b16 %v2223
    %v2291 = vunpack.c.h.b16 %v2223
    %v2292 = vunpack.c.l.b16 %v2224
    %v2293 = vunpack.c.l.b16 %v2225
    %v2294 = vunpack.c.h.b16 %v2225
    %v2295 = vunpack.c.l.b16 %v2226
    %v2296 = vunpack.c.l.b16 %v2227
    %v2297 = vunpack.c.h.b16 %v2227
    %v2298 = vunpack.c.l.b16 %v2228
    %v2299 = vunpack.c.l.b16 %v2229
    %v2300 = vunpack.c.h.b16 %v2229
    %v2301 = vunpack.c.l.b16 %v2230
    %v2302 = vunpack.c.l.b16 %v2231
    %v2303 = vunpack.c.h.b16 %v2231
    %v2304 = vunpack.c.l.b16 %v2232
    %v2305 = vunpack.c.l.b16 %v2233
    %v2306 = vunpack.c.h.b16 %v2233
    %v2307 = vunpack.c.l.b16 %v2234
    %v2308 = vunpack.c.l.b16 %v2235
    %v2309 = vunpack.c.h.b16 %v2235
    %v2310 = vunpack.c.l.b16 %v2236
    %v2311 = vunpack.c.l.b16 %v2237
    %v2312 = vunpack.c.h.b16 %v2237
    %v2313 = vunpack.c.l.b16 %v2238
    %v2314 = vunpack.c.l.b16 %v2239
    %v2315 = vunpack.c.h.b16 %v2239
    %v2316 = vunpack.c.l.b16 %v2240
    %v2317 = vunpack.c.l.b16 %v2241
    %v2318 = vunpack.c.h.b16 %v2241
    %v2319 = vunpack.c.l.b16 %v2242
    %v2320 = vunpack.c.l.b16 %v2243
    %v2321 = vunpack.c.h.b16 %v2243
    %v2322 = vunpack.c.l.b16 %v2244
    %v2323 = vunpack.c.l.b16 %v2245
    %v2324 = vunpack.c.h.b16 %v2245
    %v2325 = vunpack.c.l.b16 %v2246
    %v2326 = vunpack.c.l.b16 %v2247
    %v2327 = vunpack.c.h.b16 %v2247
    %v2328 = vunpack.c.l.b16 %v2248
    %v2329 = vpack.c.b16 %v2284, %v2281
    %v2330 = vpack.c.b16 %v2285, %v2282
    %v2331 = vpack.c.b16 %v2286, %v2283
    %v2332 = vpack.c.b16 %v2290, %v2287
    %v2333 = vpack.c.b16 %v2291, %v2288
    %v2334 = vpack.c.b16 %v2292, %v2289
    %v2335 = vpack.c.b16 %v2296, %v2293
    %v2336 = vpack.c.b16 %v2297, %v2294
    %v2337 = vpack.c.b16 %v2298, %v2295
    %v2338 = vpack.c.b16 %v2302, %v2299
    %v2339 = vpack.c.b16 %v2303, %v2300
    %v2340 = vpack.c.b16 %v2304, %v2301
    %v2341 = vpack.c.b16 %v2308, %v2305
    %v2342 = vpack.c.b16 %v2309, %v2306
    %v2343 = vpack.c.b16 %v2310, %v2307
    %v2344 = vpack.c.b16 %v2314, %v2311
    %v2345 = vpack.c.b16 %v2315, %v2312
    %v2346 = vpack.c.b16 %v2316, %v2313
    %v2347 = vpack.c.b16 %v2320, %v2317
    %v2348 = vpack.c.b16 %v2321, %v2318
    %v2349 = vpack.c.b16 %v2322, %v2319
    %v2350 = vpack.c.b16 %v2326, %v2323
    %v2351 = vpack.c.b16 %v2327, %v2324
    %v2352 = vpack.c.b16 %v2328, %v2325
    %2377 = vmatpush.bf16.msra.mxu0 %v2350
    %2378 = vmatpush.bf16.msra.mxu0 %v2347
    %2379 = vmatpush.bf16.msra.mxu0 %v2344
    %2380 = vmatpush.bf16.msra.mxu0 %v2341
    %2381 = vmatpush.bf16.msra.mxu0 %v2338
    %2382 = vmatpush.bf16.msra.mxu0 %v2335
    %2383 = vmatpush.bf16.msra.mxu0 %v2332
    %2384 = vmatpush.bf16.msra.mxu0 %v2329
    %2385 = vmatmul.bf16.gmra.mxu0 %v2216
    %v2386 = vpop.f32.mrf.mxu0
    %v2387 = vadd.f32 0.0, %v2386
    %v2388 = vpop.f32.mrf.mxu0
    %2389 = vdwg.mxu0
    %2390 = vmatpush.bf16.msra.mxu0 %v2351
    %2391 = vmatpush.bf16.msra.mxu0 %v2348
    %2392 = vmatpush.bf16.msra.mxu0 %v2345
    %2393 = vmatpush.bf16.msra.mxu0 %v2342
    %2394 = vmatpush.bf16.msra.mxu0 %v2339
    %2395 = vmatpush.bf16.msra.mxu0 %v2336
    %2396 = vmatpush.bf16.msra.mxu0 %v2333
    %2397 = vmatpush.bf16.msra.mxu0 %v2330
    %2398 = vmatmul.bf16.gmra.mxu0 %v2216
    %v2399 = vpop.f32.mrf.mxu0
    %v2400 = vadd.f32 0.0, %v2399
    %v2401 = vpop.f32.mrf.mxu0
    %2402 = vdwg.mxu0
    %2403 = vmatpush.bf16.msra.mxu0 %v2352
    %2404 = vmatpush.bf16.msra.mxu0 %v2349
    %2405 = vmatpush.bf16.msra.mxu0 %v2346
    %2406 = vmatpush.bf16.msra.mxu0 %v2343
    %2407 = vmatpush.bf16.msra.mxu0 %v2340
    %2408 = vmatpush.bf16.msra.mxu0 %v2337
    %2409 = vmatpush.bf16.msra.mxu0 %v2334
    %2410 = vmatpush.bf16.msra.mxu0 %v2331
    %2411 = vmatmul.bf16.gmra.mxu0 %v2216
    %v2412 = vpop.f32.mrf.mxu0
    %v2413 = vadd.f32 0.0, %v2412
    %v2414 = vpop.f32.mrf.mxu0
    %2415 = vdwg.mxu0
    %s2416 = scalar_lea.vmem [#allocation3], 120
    %v2417 = vld [vmem:[%s2416] sm:$0xff]
    %v2418 = vld [vmem:[%s2416 + $0x8] sm:$0xff]
    %v2419 = vld [vmem:[%s2416 + $0x10] sm:$0xff]
    %v2420 = vadd.f32 %v2417, %v2387
    %v2421 = vxor.u32 %v2420, 2147483648
    %v2422 = vmul.f32 %v2421, 1.442695
    %v2423 = vpow.pop %v2422
    %v2424 = vadd.f32 %v2423, 1.0
    %v2425 = vrcp.pop %v2424
    %v2426 = vmul.f32 %v2424, %v2425
    %v2427 = vsub.f32 1.0, %v2426
    %v2428 = vmul.f32 %v2425, %v2427
    %v2429 = vadd.f32 %v2425, %v2428
    %vm2430 = vweird.f32 %v2424
    %vm2431 = vweird.f32 %v2425
    %vm2432 = vmor %vm2430, %vm2431
    %v2433 = vsel %vm2432, %v2425, %v2429
    %v2434 = vand.u32 2147483647, %v2424
    %vm2435 = vcmp.eq.f32.partialorder %v2434, 8.507059e+37
    %v2436 = vand.u32 %v2424, 2147483648
    %v2437 = vor.u32 1.1754944e-38, %v2436
    %v2438 = vsel %vm2435, %v2437, %v2433
    %v2439 = vmul.f32 1.0, %v2438
    %v2440 = vadd.f32 %v2418, %v2400
    %v2441 = vxor.u32 %v2440, 2147483648
    %v2442 = vmul.f32 %v2441, 1.442695
    %v2443 = vpow.pop %v2442
    %v2444 = vadd.f32 %v2443, 1.0
    %v2445 = vrcp.pop %v2444
    %v2446 = vmul.f32 %v2444, %v2445
    %v2447 = vsub.f32 1.0, %v2446
    %v2448 = vmul.f32 %v2445, %v2447
    %v2449 = vadd.f32 %v2445, %v2448
    %vm2450 = vweird.f32 %v2444
    %vm2451 = vweird.f32 %v2445
    %vm2452 = vmor %vm2450, %vm2451
    %v2453 = vsel %vm2452, %v2445, %v2449
    %v2454 = vand.u32 2147483647, %v2444
    %vm2455 = vcmp.eq.f32.partialorder %v2454, 8.507059e+37
    %v2456 = vand.u32 %v2444, 2147483648
    %v2457 = vor.u32 1.1754944e-38, %v2456
    %v2458 = vsel %vm2455, %v2457, %v2453
    %v2459 = vmul.f32 1.0, %v2458
    %v2460 = vadd.f32 %v2413, %v397
    %v2461 = vmul.f32 %v2439, %v2460
    %v2462 = vadd.f32 %v2419, %v2461
    %v2463 = vtanh.pop %v2462
    %v2464 = vsub.f32 1.0, %v2459
    %v2465 = vmul.f32 %v2464, %v2463
    %v2466 = vmul.f32 %v2459, %v2215
    %v2467 = vadd.f32 %v2465, %v2466
    %s2468 = sadd.s32 %s651, 5
    %v2469 = vstv %s2468
    %vm2470 = vcmp.lt.s32.totalorder %v2469, %v394
    %v2471 = vsel %vm2470, 1, 0
    %2472 = vset.pattern.permute.xlu0 0
    %2473 = vperm.xlu0 %2472, %v2471
    %v2474 = vpop.permute.xlu0 %2473
    %vm2475 = vcmp.eq.s32.totalorder %v2474, 1
    %v2476 = vsel %vm2475, %v2467, %v2215
    %2477 = vst [vmem:[#allocation2] sm:$0xff] %v2476
    %v2478 = vsel %vm2475, %v2467, 0.0
    %v2479 = vpack.c.bf16 %v2478, %v2478
    %v2481 = vrot.slane %v2479, 3
    %v2484 = vsel %vm665, %v2479, %v2481
    %v2486 = vsel %vm670, %v2479, %v2481
    %v2488 = vrot.slane %v2486, 1
    %v2489 = vsel %vm674, %v2479, %v2481
    %v2491 = vrot.slane %v2489, 2
    %v2492 = vsel %vm678, %v2479, %v2481
    %v2494 = vrot.slane %v2492, 3
    %v2495 = vunpack.i.l.s16 %v2484
    %v2496 = vunpack.i.h.s16 %v2484
    %v2497 = vunpack.i.l.s16 %v2488
    %v2498 = vunpack.i.h.s16 %v2488
    %v2499 = vunpack.i.l.s16 %v2491
    %v2500 = vunpack.i.h.s16 %v2491
    %v2501 = vunpack.i.l.s16 %v2494
    %v2502 = vunpack.i.h.s16 %v2494
    %v2503 = vpack.i.b16 %v2495, %v2495
    %v2504 = vpack.i.b16 %v2496, %v2496
    %v2505 = vpack.i.b16 %v2497, %v2497
    %v2506 = vpack.i.b16 %v2498, %v2498
    %v2507 = vpack.i.b16 %v2499, %v2499
    %v2508 = vpack.i.b16 %v2500, %v2500
    %v2509 = vpack.i.b16 %v2501, %v2501
    %v2510 = vpack.i.b16 %v2502, %v2502
    %v2512 = vunpack.c.l.s4 286326784
    %v2513 = vunpack.c.0.s8 %v2512
    %v2514 = vperm.slane %v2503, %v2513
    %v2516 = vunpack.c.l.s4 286326784
    %v2517 = vunpack.c.0.s8 %v2516
    %v2518 = vperm.slane %v2504, %v2517
    %v2520 = vunpack.c.l.s4 286326784
    %v2521 = vunpack.c.0.s8 %v2520
    %v2522 = vperm.slane %v2505, %v2521
    %v2524 = vunpack.c.l.s4 286326784
    %v2525 = vunpack.c.0.s8 %v2524
    %v2526 = vperm.slane %v2506, %v2525
    %v2528 = vunpack.c.l.s4 286326784
    %v2529 = vunpack.c.0.s8 %v2528
    %v2530 = vperm.slane %v2507, %v2529
    %v2532 = vunpack.c.l.s4 286326784
    %v2533 = vunpack.c.0.s8 %v2532
    %v2534 = vperm.slane %v2508, %v2533
    %v2536 = vunpack.c.l.s4 286326784
    %v2537 = vunpack.c.0.s8 %v2536
    %v2538 = vperm.slane %v2509, %v2537
    %v2540 = vunpack.c.l.s4 286326784
    %v2541 = vunpack.c.0.s8 %v2540
    %v2542 = vperm.slane %v2510, %v2541
    %vm2551 = vsmask.f32 7946
    %vm2552 = vmand %vm2188, %vm2551
    %v2553 = vld [vmem:[#allocation4] sm:$0x4]
    %v2554 = vsel %vm2552, %v2514, %v2553
    %2555 = vst [vmem:[#allocation4] sm:$0x4] %v2554
    %v2556 = vld [vmem:[#allocation4 + $0x4] sm:$0x4]
    %v2557 = vsel %vm2552, %v2518, %v2556
    %2558 = vst [vmem:[#allocation4 + $0x4] sm:$0x4] %v2557
    %v2559 = vld [vmem:[#allocation4 + $0x8] sm:$0x4]
    %v2560 = vsel %vm2552, %v2522, %v2559
    %2561 = vst [vmem:[#allocation4 + $0x8] sm:$0x4] %v2560
    %v2562 = vld [vmem:[#allocation4 + $0xc] sm:$0x4]
    %v2563 = vsel %vm2552, %v2526, %v2562
    %2564 = vst [vmem:[#allocation4 + $0xc] sm:$0x4] %v2563
    %v2565 = vld [vmem:[#allocation4 + $0x10] sm:$0x4]
    %v2566 = vsel %vm2552, %v2530, %v2565
    %2567 = vst [vmem:[#allocation4 + $0x10] sm:$0x4] %v2566
    %v2568 = vld [vmem:[#allocation4 + $0x14] sm:$0x4]
    %v2569 = vsel %vm2552, %v2534, %v2568
    %2570 = vst [vmem:[#allocation4 + $0x14] sm:$0x4] %v2569
    %v2571 = vld [vmem:[#allocation4 + $0x18] sm:$0x4]
    %v2572 = vsel %vm2552, %v2538, %v2571
    %2573 = vst [vmem:[#allocation4 + $0x18] sm:$0x4] %v2572
    %v2574 = vld [vmem:[#allocation4 + $0x1c] sm:$0x4]
    %v2575 = vsel %vm2552, %v2542, %v2574
    %2576 = vst [vmem:[#allocation4 + $0x1c] sm:$0x4] %v2575
    %v2577 = vld [vmem:[#allocation2] sm:$0xff]
    %v2578 = vpack.c.bf16 %v2577, %v2577
    %v2579 = vld [vmem:[#allocation10] sm:$0xff]
    %v2580 = vld [vmem:[#allocation10 + $0x8] sm:$0xf]
    %v2581 = vld [vmem:[#allocation10 + $0xc] sm:$0xff]
    %v2582 = vld [vmem:[#allocation10 + $0x14] sm:$0xf]
    %v2583 = vld [vmem:[#allocation10 + $0x18] sm:$0xff]
    %v2584 = vld [vmem:[#allocation10 + $0x20] sm:$0xf]
    %v2585 = vld [vmem:[#allocation10 + $0x24] sm:$0xff]
    %v2586 = vld [vmem:[#allocation10 + $0x2c] sm:$0xf]
    %v2587 = vld [vmem:[#allocation10 + $0x30] sm:$0xff]
    %v2588 = vld [vmem:[#allocation10 + $0x38] sm:$0xf]
    %v2589 = vld [vmem:[#allocation10 + $0x3c] sm:$0xff]
    %v2590 = vld [vmem:[#allocation10 + $0x44] sm:$0xf]
    %v2591 = vld [vmem:[#allocation10 + $0x48] sm:$0xff]
    %v2592 = vld [vmem:[#allocation10 + $0x50] sm:$0xf]
    %v2593 = vld [vmem:[#allocation10 + $0x54] sm:$0xff]
    %v2594 = vld [vmem:[#allocation10 + $0x5c] sm:$0xf]
    %v2595 = vld [vmem:[#allocation10 + $0x60] sm:$0xff]
    %v2596 = vld [vmem:[#allocation10 + $0x68] sm:$0xf]
    %v2597 = vld [vmem:[#allocation10 + $0x6c] sm:$0xff]
    %v2598 = vld [vmem:[#allocation10 + $0x74] sm:$0xf]
    %v2599 = vld [vmem:[#allocation10 + $0x78] sm:$0xff]
    %v2600 = vld [vmem:[#allocation10 + $0x80] sm:$0xf]
    %v2601 = vld [vmem:[#allocation10 + $0x84] sm:$0xff]
    %v2602 = vld [vmem:[#allocation10 + $0x8c] sm:$0xf]
    %v2603 = vld [vmem:[#allocation10 + $0x90] sm:$0xff]
    %v2604 = vld [vmem:[#allocation10 + $0x98] sm:$0xf]
    %v2605 = vld [vmem:[#allocation10 + $0x9c] sm:$0xff]
    %v2606 = vld [vmem:[#allocation10 + $0xa4] sm:$0xf]
    %v2607 = vld [vmem:[#allocation10 + $0xa8] sm:$0xff]
    %v2608 = vld [vmem:[#allocation10 + $0xb0] sm:$0xf]
    %v2609 = vld [vmem:[#allocation10 + $0xb4] sm:$0xff]
    %v2610 = vld [vmem:[#allocation10 + $0xbc] sm:$0xf]
    %v2643 = vunpack.c.l.b16 %v2579
    %v2644 = vunpack.c.h.b16 %v2579
    %v2645 = vunpack.c.l.b16 %v2580
    %v2646 = vunpack.c.l.b16 %v2581
    %v2647 = vunpack.c.h.b16 %v2581
    %v2648 = vunpack.c.l.b16 %v2582
    %v2649 = vunpack.c.l.b16 %v2583
    %v2650 = vunpack.c.h.b16 %v2583
    %v2651 = vunpack.c.l.b16 %v2584
    %v2652 = vunpack.c.l.b16 %v2585
    %v2653 = vunpack.c.h.b16 %v2585
    %v2654 = vunpack.c.l.b16 %v2586
    %v2655 = vunpack.c.l.b16 %v2587
    %v2656 = vunpack.c.h.b16 %v2587
    %v2657 = vunpack.c.l.b16 %v2588
    %v2658 = vunpack.c.l.b16 %v2589
    %v2659 = vunpack.c.h.b16 %v2589
    %v2660 = vunpack.c.l.b16 %v2590
    %v2661 = vunpack.c.l.b16 %v2591
    %v2662 = vunpack.c.h.b16 %v2591
    %v2663 = vunpack.c.l.b16 %v2592
    %v2664 = vunpack.c.l.b16 %v2593
    %v2665 = vunpack.c.h.b16 %v2593
    %v2666 = vunpack.c.l.b16 %v2594
    %v2667 = vunpack.c.l.b16 %v2595
    %v2668 = vunpack.c.h.b16 %v2595
    %v2669 = vunpack.c.l.b16 %v2596
    %v2670 = vunpack.c.l.b16 %v2597
    %v2671 = vunpack.c.h.b16 %v2597
    %v2672 = vunpack.c.l.b16 %v2598
    %v2673 = vunpack.c.l.b16 %v2599
    %v2674 = vunpack.c.h.b16 %v2599
    %v2675 = vunpack.c.l.b16 %v2600
    %v2676 = vunpack.c.l.b16 %v2601
    %v2677 = vunpack.c.h.b16 %v2601
    %v2678 = vunpack.c.l.b16 %v2602
    %v2679 = vunpack.c.l.b16 %v2603
    %v2680 = vunpack.c.h.b16 %v2603
    %v2681 = vunpack.c.l.b16 %v2604
    %v2682 = vunpack.c.l.b16 %v2605
    %v2683 = vunpack.c.h.b16 %v2605
    %v2684 = vunpack.c.l.b16 %v2606
    %v2685 = vunpack.c.l.b16 %v2607
    %v2686 = vunpack.c.h.b16 %v2607
    %v2687 = vunpack.c.l.b16 %v2608
    %v2688 = vunpack.c.l.b16 %v2609
    %v2689 = vunpack.c.h.b16 %v2609
    %v2690 = vunpack.c.l.b16 %v2610
    %v2691 = vpack.c.b16 %v2646, %v2643
    %v2692 = vpack.c.b16 %v2647, %v2644
    %v2693 = vpack.c.b16 %v2648, %v2645
    %v2694 = vpack.c.b16 %v2652, %v2649
    %v2695 = vpack.c.b16 %v2653, %v2650
    %v2696 = vpack.c.b16 %v2654, %v2651
    %v2697 = vpack.c.b16 %v2658, %v2655
    %v2698 = vpack.c.b16 %v2659, %v2656
    %v2699 = vpack.c.b16 %v2660, %v2657
    %v2700 = vpack.c.b16 %v2664, %v2661
    %v2701 = vpack.c.b16 %v2665, %v2662
    %v2702 = vpack.c.b16 %v2666, %v2663
    %v2703 = vpack.c.b16 %v2670, %v2667
    %v2704 = vpack.c.b16 %v2671, %v2668
    %v2705 = vpack.c.b16 %v2672, %v2669
    %v2706 = vpack.c.b16 %v2676, %v2673
    %v2707 = vpack.c.b16 %v2677, %v2674
    %v2708 = vpack.c.b16 %v2678, %v2675
    %v2709 = vpack.c.b16 %v2682, %v2679
    %v2710 = vpack.c.b16 %v2683, %v2680
    %v2711 = vpack.c.b16 %v2684, %v2681
    %v2712 = vpack.c.b16 %v2688, %v2685
    %v2713 = vpack.c.b16 %v2689, %v2686
    %v2714 = vpack.c.b16 %v2690, %v2687
    %2739 = vmatpush.bf16.msra.mxu0 %v2712
    %2740 = vmatpush.bf16.msra.mxu0 %v2709
    %2741 = vmatpush.bf16.msra.mxu0 %v2706
    %2742 = vmatpush.bf16.msra.mxu0 %v2703
    %2743 = vmatpush.bf16.msra.mxu0 %v2700
    %2744 = vmatpush.bf16.msra.mxu0 %v2697
    %2745 = vmatpush.bf16.msra.mxu0 %v2694
    %2746 = vmatpush.bf16.msra.mxu0 %v2691
    %2747 = vmatmul.bf16.gmra.mxu0 %v2578
    %v2748 = vpop.f32.mrf.mxu0
    %v2749 = vadd.f32 0.0, %v2748
    %v2750 = vpop.f32.mrf.mxu0
    %2751 = vdwg.mxu0
    %2752 = vmatpush.bf16.msra.mxu0 %v2713
    %2753 = vmatpush.bf16.msra.mxu0 %v2710
    %2754 = vmatpush.bf16.msra.mxu0 %v2707
    %2755 = vmatpush.bf16.msra.mxu0 %v2704
    %2756 = vmatpush.bf16.msra.mxu0 %v2701
    %2757 = vmatpush.bf16.msra.mxu0 %v2698
    %2758 = vmatpush.bf16.msra.mxu0 %v2695
    %2759 = vmatpush.bf16.msra.mxu0 %v2692
    %2760 = vmatmul.bf16.gmra.mxu0 %v2578
    %v2761 = vpop.f32.mrf.mxu0
    %v2762 = vadd.f32 0.0, %v2761
    %v2763 = vpop.f32.mrf.mxu0
    %2764 = vdwg.mxu0
    %2765 = vmatpush.bf16.msra.mxu0 %v2714
    %2766 = vmatpush.bf16.msra.mxu0 %v2711
    %2767 = vmatpush.bf16.msra.mxu0 %v2708
    %2768 = vmatpush.bf16.msra.mxu0 %v2705
    %2769 = vmatpush.bf16.msra.mxu0 %v2702
    %2770 = vmatpush.bf16.msra.mxu0 %v2699
    %2771 = vmatpush.bf16.msra.mxu0 %v2696
    %2772 = vmatpush.bf16.msra.mxu0 %v2693
    %2773 = vmatmul.bf16.gmra.mxu0 %v2578
    %v2774 = vpop.f32.mrf.mxu0
    %v2775 = vadd.f32 0.0, %v2774
    %v2776 = vpop.f32.mrf.mxu0
    %2777 = vdwg.mxu0
    %s2778 = scalar_lea.vmem [#allocation3], 144
    %v2779 = vld [vmem:[%s2778] sm:$0xff]
    %v2780 = vld [vmem:[%s2778 + $0x8] sm:$0xff]
    %v2781 = vld [vmem:[%s2778 + $0x10] sm:$0xff]
    %v2782 = vadd.f32 %v2779, %v2749
    %v2783 = vxor.u32 %v2782, 2147483648
    %v2784 = vmul.f32 %v2783, 1.442695
    %v2785 = vpow.pop %v2784
    %v2786 = vadd.f32 %v2785, 1.0
    %v2787 = vrcp.pop %v2786
    %v2788 = vmul.f32 %v2786, %v2787
    %v2789 = vsub.f32 1.0, %v2788
    %v2790 = vmul.f32 %v2787, %v2789
    %v2791 = vadd.f32 %v2787, %v2790
    %vm2792 = vweird.f32 %v2786
    %vm2793 = vweird.f32 %v2787
    %vm2794 = vmor %vm2792, %vm2793
    %v2795 = vsel %vm2794, %v2787, %v2791
    %v2796 = vand.u32 2147483647, %v2786
    %vm2797 = vcmp.eq.f32.partialorder %v2796, 8.507059e+37
    %v2798 = vand.u32 %v2786, 2147483648
    %v2799 = vor.u32 1.1754944e-38, %v2798
    %v2800 = vsel %vm2797, %v2799, %v2795
    %v2801 = vmul.f32 1.0, %v2800
    %v2802 = vadd.f32 %v2780, %v2762
    %v2803 = vxor.u32 %v2802, 2147483648
    %v2804 = vmul.f32 %v2803, 1.442695
    %v2805 = vpow.pop %v2804
    %v2806 = vadd.f32 %v2805, 1.0
    %v2807 = vrcp.pop %v2806
    %v2808 = vmul.f32 %v2806, %v2807
    %v2809 = vsub.f32 1.0, %v2808
    %v2810 = vmul.f32 %v2807, %v2809
    %v2811 = vadd.f32 %v2807, %v2810
    %vm2812 = vweird.f32 %v2806
    %vm2813 = vweird.f32 %v2807
    %vm2814 = vmor %vm2812, %vm2813
    %v2815 = vsel %vm2814, %v2807, %v2811
    %v2816 = vand.u32 2147483647, %v2806
    %vm2817 = vcmp.eq.f32.partialorder %v2816, 8.507059e+37
    %v2818 = vand.u32 %v2806, 2147483648
    %v2819 = vor.u32 1.1754944e-38, %v2818
    %v2820 = vsel %vm2817, %v2819, %v2815
    %v2821 = vmul.f32 1.0, %v2820
    %v2822 = vadd.f32 %v2775, %v397
    %v2823 = vmul.f32 %v2801, %v2822
    %v2824 = vadd.f32 %v2781, %v2823
    %v2825 = vtanh.pop %v2824
    %v2826 = vsub.f32 1.0, %v2821
    %v2827 = vmul.f32 %v2826, %v2825
    %v2828 = vmul.f32 %v2821, %v2577
    %v2829 = vadd.f32 %v2827, %v2828
    %s2830 = sadd.s32 %s651, 6
    %v2831 = vstv %s2830
    %vm2832 = vcmp.lt.s32.totalorder %v2831, %v394
    %v2833 = vsel %vm2832, 1, 0
    %2834 = vset.pattern.permute.xlu0 0
    %2835 = vperm.xlu0 %2834, %v2833
    %v2836 = vpop.permute.xlu0 %2835
    %vm2837 = vcmp.eq.s32.totalorder %v2836, 1
    %v2838 = vsel %vm2837, %v2829, %v2577
    %2839 = vst [vmem:[#allocation2] sm:$0xff] %v2838
    %v2840 = vsel %vm2837, %v2829, 0.0
    %v2841 = vpack.c.bf16 %v2840, %v2840
    %v2843 = vrot.slane %v2841, 3
    %v2846 = vsel %vm665, %v2841, %v2843
    %v2848 = vsel %vm670, %v2841, %v2843
    %v2850 = vrot.slane %v2848, 1
    %v2851 = vsel %vm674, %v2841, %v2843
    %v2853 = vrot.slane %v2851, 2
    %v2854 = vsel %vm678, %v2841, %v2843
    %v2856 = vrot.slane %v2854, 3
    %v2857 = vunpack.i.l.s16 %v2846
    %v2858 = vunpack.i.h.s16 %v2846
    %v2859 = vunpack.i.l.s16 %v2850
    %v2860 = vunpack.i.h.s16 %v2850
    %v2861 = vunpack.i.l.s16 %v2853
    %v2862 = vunpack.i.h.s16 %v2853
    %v2863 = vunpack.i.l.s16 %v2856
    %v2864 = vunpack.i.h.s16 %v2856
    %v2865 = vpack.i.b16 %v2857, %v2857
    %v2866 = vpack.i.b16 %v2858, %v2858
    %v2867 = vpack.i.b16 %v2859, %v2859
    %v2868 = vpack.i.b16 %v2860, %v2860
    %v2869 = vpack.i.b16 %v2861, %v2861
    %v2870 = vpack.i.b16 %v2862, %v2862
    %v2871 = vpack.i.b16 %v2863, %v2863
    %v2872 = vpack.i.b16 %v2864, %v2864
    %v2874 = vunpack.c.l.s4 286326784
    %v2875 = vunpack.c.0.s8 %v2874
    %v2876 = vperm.slane %v2865, %v2875
    %v2878 = vunpack.c.l.s4 286326784
    %v2879 = vunpack.c.0.s8 %v2878
    %v2880 = vperm.slane %v2866, %v2879
    %v2882 = vunpack.c.l.s4 286326784
    %v2883 = vunpack.c.0.s8 %v2882
    %v2884 = vperm.slane %v2867, %v2883
    %v2886 = vunpack.c.l.s4 286326784
    %v2887 = vunpack.c.0.s8 %v2886
    %v2888 = vperm.slane %v2868, %v2887
    %v2890 = vunpack.c.l.s4 286326784
    %v2891 = vunpack.c.0.s8 %v2890
    %v2892 = vperm.slane %v2869, %v2891
    %v2894 = vunpack.c.l.s4 286326784
    %v2895 = vunpack.c.0.s8 %v2894
    %v2896 = vperm.slane %v2870, %v2895
    %v2898 = vunpack.c.l.s4 286326784
    %v2899 = vunpack.c.0.s8 %v2898
    %v2900 = vperm.slane %v2871, %v2899
    %v2902 = vunpack.c.l.s4 286326784
    %v2903 = vunpack.c.0.s8 %v2902
    %v2904 = vperm.slane %v2872, %v2903
    %vm2913 = vcmask 1043459
    %vm2914 = vsmask.f32 3328
    %vm2915 = vmand %vm2913, %vm2914
    %v2916 = vld [vmem:[#allocation4] sm:$0x8]
    %v2917 = vsel %vm2915, %v2876, %v2916
    %2918 = vst [vmem:[#allocation4] sm:$0x8] %v2917
    %v2919 = vld [vmem:[#allocation4 + $0x4] sm:$0x8]
    %v2920 = vsel %vm2915, %v2880, %v2919
    %2921 = vst [vmem:[#allocation4 + $0x4] sm:$0x8] %v2920
    %v2922 = vld [vmem:[#allocation4 + $0x8] sm:$0x8]
    %v2923 = vsel %vm2915, %v2884, %v2922
    %2924 = vst [vmem:[#allocation4 + $0x8] sm:$0x8] %v2923
    %v2925 = vld [vmem:[#allocation4 + $0xc] sm:$0x8]
    %v2926 = vsel %vm2915, %v2888, %v2925
    %2927 = vst [vmem:[#allocation4 + $0xc] sm:$0x8] %v2926
    %v2928 = vld [vmem:[#allocation4 + $0x10] sm:$0x8]
    %v2929 = vsel %vm2915, %v2892, %v2928
    %2930 = vst [vmem:[#allocation4 + $0x10] sm:$0x8] %v2929
    %v2931 = vld [vmem:[#allocation4 + $0x14] sm:$0x8]
    %v2932 = vsel %vm2915, %v2896, %v2931
    %2933 = vst [vmem:[#allocation4 + $0x14] sm:$0x8] %v2932
    %v2934 = vld [vmem:[#allocation4 + $0x18] sm:$0x8]
    %v2935 = vsel %vm2915, %v2900, %v2934
    %2936 = vst [vmem:[#allocation4 + $0x18] sm:$0x8] %v2935
    %v2937 = vld [vmem:[#allocation4 + $0x1c] sm:$0x8]
    %v2938 = vsel %vm2915, %v2904, %v2937
    %2939 = vst [vmem:[#allocation4 + $0x1c] sm:$0x8] %v2938
    %v2940 = vld [vmem:[#allocation2] sm:$0xff]
    %v2941 = vpack.c.bf16 %v2940, %v2940
    %v2942 = vld [vmem:[#allocation10] sm:$0xff]
    %v2943 = vld [vmem:[#allocation10 + $0x8] sm:$0xf]
    %v2944 = vld [vmem:[#allocation10 + $0xc] sm:$0xff]
    %v2945 = vld [vmem:[#allocation10 + $0x14] sm:$0xf]
    %v2946 = vld [vmem:[#allocation10 + $0x18] sm:$0xff]
    %v2947 = vld [vmem:[#allocation10 + $0x20] sm:$0xf]
    %v2948 = vld [vmem:[#allocation10 + $0x24] sm:$0xff]
    %v2949 = vld [vmem:[#allocation10 + $0x2c] sm:$0xf]
    %v2950 = vld [vmem:[#allocation10 + $0x30] sm:$0xff]
    %v2951 = vld [vmem:[#allocation10 + $0x38] sm:$0xf]
    %v2952 = vld [vmem:[#allocation10 + $0x3c] sm:$0xff]
    %v2953 = vld [vmem:[#allocation10 + $0x44] sm:$0xf]
    %v2954 = vld [vmem:[#allocation10 + $0x48] sm:$0xff]
    %v2955 = vld [vmem:[#allocation10 + $0x50] sm:$0xf]
    %v2956 = vld [vmem:[#allocation10 + $0x54] sm:$0xff]
    %v2957 = vld [vmem:[#allocation10 + $0x5c] sm:$0xf]
    %v2958 = vld [vmem:[#allocation10 + $0x60] sm:$0xff]
    %v2959 = vld [vmem:[#allocation10 + $0x68] sm:$0xf]
    %v2960 = vld [vmem:[#allocation10 + $0x6c] sm:$0xff]
    %v2961 = vld [vmem:[#allocation10 + $0x74] sm:$0xf]
    %v2962 = vld [vmem:[#allocation10 + $0x78] sm:$0xff]
    %v2963 = vld [vmem:[#allocation10 + $0x80] sm:$0xf]
    %v2964 = vld [vmem:[#allocation10 + $0x84] sm:$0xff]
    %v2965 = vld [vmem:[#allocation10 + $0x8c] sm:$0xf]
    %v2966 = vld [vmem:[#allocation10 + $0x90] sm:$0xff]
    %v2967 = vld [vmem:[#allocation10 + $0x98] sm:$0xf]
    %v2968 = vld [vmem:[#allocation10 + $0x9c] sm:$0xff]
    %v2969 = vld [vmem:[#allocation10 + $0xa4] sm:$0xf]
    %v2970 = vld [vmem:[#allocation10 + $0xa8] sm:$0xff]
    %v2971 = vld [vmem:[#allocation10 + $0xb0] sm:$0xf]
    %v2972 = vld [vmem:[#allocation10 + $0xb4] sm:$0xff]
    %v2973 = vld [vmem:[#allocation10 + $0xbc] sm:$0xf]
    %v3006 = vunpack.c.l.b16 %v2942
    %v3007 = vunpack.c.h.b16 %v2942
    %v3008 = vunpack.c.l.b16 %v2943
    %v3009 = vunpack.c.l.b16 %v2944
    %v3010 = vunpack.c.h.b16 %v2944
    %v3011 = vunpack.c.l.b16 %v2945
    %v3012 = vunpack.c.l.b16 %v2946
    %v3013 = vunpack.c.h.b16 %v2946
    %v3014 = vunpack.c.l.b16 %v2947
    %v3015 = vunpack.c.l.b16 %v2948
    %v3016 = vunpack.c.h.b16 %v2948
    %v3017 = vunpack.c.l.b16 %v2949
    %v3018 = vunpack.c.l.b16 %v2950
    %v3019 = vunpack.c.h.b16 %v2950
    %v3020 = vunpack.c.l.b16 %v2951
    %v3021 = vunpack.c.l.b16 %v2952
    %v3022 = vunpack.c.h.b16 %v2952
    %v3023 = vunpack.c.l.b16 %v2953
    %v3024 = vunpack.c.l.b16 %v2954
    %v3025 = vunpack.c.h.b16 %v2954
    %v3026 = vunpack.c.l.b16 %v2955
    %v3027 = vunpack.c.l.b16 %v2956
    %v3028 = vunpack.c.h.b16 %v2956
    %v3029 = vunpack.c.l.b16 %v2957
    %v3030 = vunpack.c.l.b16 %v2958
    %v3031 = vunpack.c.h.b16 %v2958
    %v3032 = vunpack.c.l.b16 %v2959
    %v3033 = vunpack.c.l.b16 %v2960
    %v3034 = vunpack.c.h.b16 %v2960
    %v3035 = vunpack.c.l.b16 %v2961
    %v3036 = vunpack.c.l.b16 %v2962
    %v3037 = vunpack.c.h.b16 %v2962
    %v3038 = vunpack.c.l.b16 %v2963
    %v3039 = vunpack.c.l.b16 %v2964
    %v3040 = vunpack.c.h.b16 %v2964
    %v3041 = vunpack.c.l.b16 %v2965
    %v3042 = vunpack.c.l.b16 %v2966
    %v3043 = vunpack.c.h.b16 %v2966
    %v3044 = vunpack.c.l.b16 %v2967
    %v3045 = vunpack.c.l.b16 %v2968
    %v3046 = vunpack.c.h.b16 %v2968
    %v3047 = vunpack.c.l.b16 %v2969
    %v3048 = vunpack.c.l.b16 %v2970
    %v3049 = vunpack.c.h.b16 %v2970
    %v3050 = vunpack.c.l.b16 %v2971
    %v3051 = vunpack.c.l.b16 %v2972
    %v3052 = vunpack.c.h.b16 %v2972
    %v3053 = vunpack.c.l.b16 %v2973
    %v3054 = vpack.c.b16 %v3009, %v3006
    %v3055 = vpack.c.b16 %v3010, %v3007
    %v3056 = vpack.c.b16 %v3011, %v3008
    %v3057 = vpack.c.b16 %v3015, %v3012
    %v3058 = vpack.c.b16 %v3016, %v3013
    %v3059 = vpack.c.b16 %v3017, %v3014
    %v3060 = vpack.c.b16 %v3021, %v3018
    %v3061 = vpack.c.b16 %v3022, %v3019
    %v3062 = vpack.c.b16 %v3023, %v3020
    %v3063 = vpack.c.b16 %v3027, %v3024
    %v3064 = vpack.c.b16 %v3028, %v3025
    %v3065 = vpack.c.b16 %v3029, %v3026
    %v3066 = vpack.c.b16 %v3033, %v3030
    %v3067 = vpack.c.b16 %v3034, %v3031
    %v3068 = vpack.c.b16 %v3035, %v3032
    %v3069 = vpack.c.b16 %v3039, %v3036
    %v3070 = vpack.c.b16 %v3040, %v3037
    %v3071 = vpack.c.b16 %v3041, %v3038
    %v3072 = vpack.c.b16 %v3045, %v3042
    %v3073 = vpack.c.b16 %v3046, %v3043
    %v3074 = vpack.c.b16 %v3047, %v3044
    %v3075 = vpack.c.b16 %v3051, %v3048
    %v3076 = vpack.c.b16 %v3052, %v3049
    %v3077 = vpack.c.b16 %v3053, %v3050
    %3102 = vmatpush.bf16.msra.mxu0 %v3075
    %3103 = vmatpush.bf16.msra.mxu0 %v3072
    %3104 = vmatpush.bf16.msra.mxu0 %v3069
    %3105 = vmatpush.bf16.msra.mxu0 %v3066
    %3106 = vmatpush.bf16.msra.mxu0 %v3063
    %3107 = vmatpush.bf16.msra.mxu0 %v3060
    %3108 = vmatpush.bf16.msra.mxu0 %v3057
    %3109 = vmatpush.bf16.msra.mxu0 %v3054
    %3110 = vmatmul.bf16.gmra.mxu0 %v2941
    %v3111 = vpop.f32.mrf.mxu0
    %v3112 = vadd.f32 0.0, %v3111
    %v3113 = vpop.f32.mrf.mxu0
    %3114 = vdwg.mxu0
    %3115 = vmatpush.bf16.msra.mxu0 %v3076
    %3116 = vmatpush.bf16.msra.mxu0 %v3073
    %3117 = vmatpush.bf16.msra.mxu0 %v3070
    %3118 = vmatpush.bf16.msra.mxu0 %v3067
    %3119 = vmatpush.bf16.msra.mxu0 %v3064
    %3120 = vmatpush.bf16.msra.mxu0 %v3061
    %3121 = vmatpush.bf16.msra.mxu0 %v3058
    %3122 = vmatpush.bf16.msra.mxu0 %v3055
    %3123 = vmatmul.bf16.gmra.mxu0 %v2941
    %v3124 = vpop.f32.mrf.mxu0
    %v3125 = vadd.f32 0.0, %v3124
    %v3126 = vpop.f32.mrf.mxu0
    %3127 = vdwg.mxu0
    %3128 = vmatpush.bf16.msra.mxu0 %v3077
    %3129 = vmatpush.bf16.msra.mxu0 %v3074
    %3130 = vmatpush.bf16.msra.mxu0 %v3071
    %3131 = vmatpush.bf16.msra.mxu0 %v3068
    %3132 = vmatpush.bf16.msra.mxu0 %v3065
    %3133 = vmatpush.bf16.msra.mxu0 %v3062
    %3134 = vmatpush.bf16.msra.mxu0 %v3059
    %3135 = vmatpush.bf16.msra.mxu0 %v3056
    %3136 = vmatmul.bf16.gmra.mxu0 %v2941
    %v3137 = vpop.f32.mrf.mxu0
    %v3138 = vadd.f32 0.0, %v3137
    %v3139 = vpop.f32.mrf.mxu0
    %3140 = vdwg.mxu0
    %s3141 = scalar_lea.vmem [#allocation3], 168
    %v3142 = vld [vmem:[%s3141] sm:$0xff]
    %v3143 = vld [vmem:[%s3141 + $0x8] sm:$0xff]
    %v3144 = vld [vmem:[%s3141 + $0x10] sm:$0xff]
    %v3145 = vadd.f32 %v3142, %v3112
    %v3146 = vxor.u32 %v3145, 2147483648
    %v3147 = vmul.f32 %v3146, 1.442695
    %v3148 = vpow.pop %v3147
    %v3149 = vadd.f32 %v3148, 1.0
    %v3150 = vrcp.pop %v3149
    %v3151 = vmul.f32 %v3149, %v3150
    %v3152 = vsub.f32 1.0, %v3151
    %v3153 = vmul.f32 %v3150, %v3152
    %v3154 = vadd.f32 %v3150, %v3153
    %vm3155 = vweird.f32 %v3149
    %vm3156 = vweird.f32 %v3150
    %vm3157 = vmor %vm3155, %vm3156
    %v3158 = vsel %vm3157, %v3150, %v3154
    %v3159 = vand.u32 2147483647, %v3149
    %vm3160 = vcmp.eq.f32.partialorder %v3159, 8.507059e+37
    %v3161 = vand.u32 %v3149, 2147483648
    %v3162 = vor.u32 1.1754944e-38, %v3161
    %v3163 = vsel %vm3160, %v3162, %v3158
    %v3164 = vmul.f32 1.0, %v3163
    %v3165 = vadd.f32 %v3143, %v3125
    %v3166 = vxor.u32 %v3165, 2147483648
    %v3167 = vmul.f32 %v3166, 1.442695
    %v3168 = vpow.pop %v3167
    %v3169 = vadd.f32 %v3168, 1.0
    %v3170 = vrcp.pop %v3169
    %v3171 = vmul.f32 %v3169, %v3170
    %v3172 = vsub.f32 1.0, %v3171
    %v3173 = vmul.f32 %v3170, %v3172
    %v3174 = vadd.f32 %v3170, %v3173
    %vm3175 = vweird.f32 %v3169
    %vm3176 = vweird.f32 %v3170
    %vm3177 = vmor %vm3175, %vm3176
    %v3178 = vsel %vm3177, %v3170, %v3174
    %v3179 = vand.u32 2147483647, %v3169
    %vm3180 = vcmp.eq.f32.partialorder %v3179, 8.507059e+37
    %v3181 = vand.u32 %v3169, 2147483648
    %v3182 = vor.u32 1.1754944e-38, %v3181
    %v3183 = vsel %vm3180, %v3182, %v3178
    %v3184 = vmul.f32 1.0, %v3183
    %v3185 = vadd.f32 %v3138, %v397
    %v3186 = vmul.f32 %v3164, %v3185
    %v3187 = vadd.f32 %v3144, %v3186
    %v3188 = vtanh.pop %v3187
    %v3189 = vsub.f32 1.0, %v3184
    %v3190 = vmul.f32 %v3189, %v3188
    %v3191 = vmul.f32 %v3184, %v2940
    %v3192 = vadd.f32 %v3190, %v3191
    %s3193 = sadd.s32 %s651, 7
    %v3194 = vstv %s3193
    %vm3195 = vcmp.lt.s32.totalorder %v3194, %v394
    %v3196 = vsel %vm3195, 1, 0
    %3197 = vset.pattern.permute.xlu0 0
    %3198 = vperm.xlu0 %3197, %v3196
    %v3199 = vpop.permute.xlu0 %3198
    %vm3200 = vcmp.eq.s32.totalorder %v3199, 1
    %v3201 = vsel %vm3200, %v3192, %v2940
    %3202 = vst [vmem:[#allocation2] sm:$0xff] %v3201
    %v3203 = vsel %vm3200, %v3192, 0.0
    %v3204 = vpack.c.bf16 %v3203, %v3203
    %v3206 = vrot.slane %v3204, 3
    %v3209 = vsel %vm665, %v3204, %v3206
    %v3211 = vsel %vm670, %v3204, %v3206
    %v3213 = vrot.slane %v3211, 1
    %v3214 = vsel %vm674, %v3204, %v3206
    %v3216 = vrot.slane %v3214, 2
    %v3217 = vsel %vm678, %v3204, %v3206
    %v3219 = vrot.slane %v3217, 3
    %v3220 = vunpack.i.l.s16 %v3209
    %v3221 = vunpack.i.h.s16 %v3209
    %v3222 = vunpack.i.l.s16 %v3213
    %v3223 = vunpack.i.h.s16 %v3213
    %v3224 = vunpack.i.l.s16 %v3216
    %v3225 = vunpack.i.h.s16 %v3216
    %v3226 = vunpack.i.l.s16 %v3219
    %v3227 = vunpack.i.h.s16 %v3219
    %v3228 = vpack.i.b16 %v3220, %v3220
    %v3229 = vpack.i.b16 %v3221, %v3221
    %v3230 = vpack.i.b16 %v3222, %v3222
    %v3231 = vpack.i.b16 %v3223, %v3223
    %v3232 = vpack.i.b16 %v3224, %v3224
    %v3233 = vpack.i.b16 %v3225, %v3225
    %v3234 = vpack.i.b16 %v3226, %v3226
    %v3235 = vpack.i.b16 %v3227, %v3227
    %v3237 = vunpack.c.l.s4 286326784
    %v3238 = vunpack.c.0.s8 %v3237
    %v3239 = vperm.slane %v3228, %v3238
    %v3241 = vunpack.c.l.s4 286326784
    %v3242 = vunpack.c.0.s8 %v3241
    %v3243 = vperm.slane %v3229, %v3242
    %v3245 = vunpack.c.l.s4 286326784
    %v3246 = vunpack.c.0.s8 %v3245
    %v3247 = vperm.slane %v3230, %v3246
    %v3249 = vunpack.c.l.s4 286326784
    %v3250 = vunpack.c.0.s8 %v3249
    %v3251 = vperm.slane %v3231, %v3250
    %v3253 = vunpack.c.l.s4 286326784
    %v3254 = vunpack.c.0.s8 %v3253
    %v3255 = vperm.slane %v3232, %v3254
    %v3257 = vunpack.c.l.s4 286326784
    %v3258 = vunpack.c.0.s8 %v3257
    %v3259 = vperm.slane %v3233, %v3258
    %v3261 = vunpack.c.l.s4 286326784
    %v3262 = vunpack.c.0.s8 %v3261
    %v3263 = vperm.slane %v3234, %v3262
    %v3265 = vunpack.c.l.s4 286326784
    %v3266 = vunpack.c.0.s8 %v3265
    %v3267 = vperm.slane %v3235, %v3266
    %vm3276 = vsmask.f32 7950
    %vm3277 = vmand %vm2913, %vm3276
    %v3278 = vld [vmem:[#allocation4] sm:$0x8]
    %v3279 = vsel %vm3277, %v3239, %v3278
    %3280 = vst [vmem:[#allocation4] sm:$0x8] %v3279
    %v3281 = vld [vmem:[#allocation4 + $0x4] sm:$0x8]
    %v3282 = vsel %vm3277, %v3243, %v3281
    %3283 = vst [vmem:[#allocation4 + $0x4] sm:$0x8] %v3282
    %v3284 = vld [vmem:[#allocation4 + $0x8] sm:$0x8]
    %v3285 = vsel %vm3277, %v3247, %v3284
    %3286 = vst [vmem:[#allocation4 + $0x8] sm:$0x8] %v3285
    %v3287 = vld [vmem:[#allocation4 + $0xc] sm:$0x8]
    %v3288 = vsel %vm3277, %v3251, %v3287
    %3289 = vst [vmem:[#allocation4 + $0xc] sm:$0x8] %v3288
    %v3290 = vld [vmem:[#allocation4 + $0x10] sm:$0x8]
    %v3291 = vsel %vm3277, %v3255, %v3290
    %3292 = vst [vmem:[#allocation4 + $0x10] sm:$0x8] %v3291
    %v3293 = vld [vmem:[#allocation4 + $0x14] sm:$0x8]
    %v3294 = vsel %vm3277, %v3259, %v3293
    %3295 = vst [vmem:[#allocation4 + $0x14] sm:$0x8] %v3294
    %v3296 = vld [vmem:[#allocation4 + $0x18] sm:$0x8]
    %v3297 = vsel %vm3277, %v3263, %v3296
    %3298 = vst [vmem:[#allocation4 + $0x18] sm:$0x8] %v3297
    %v3299 = vld [vmem:[#allocation4 + $0x1c] sm:$0x8]
    %v3300 = vsel %vm3277, %v3267, %v3299
    %3301 = vst [vmem:[#allocation4 + $0x1c] sm:$0x8] %v3300
    %v3302 = vld [vmem:[#allocation4] sm:$0xf]
    %v3303 = vld [vmem:[#allocation4 + $0x4] sm:$0xf]
    %v3304 = vld [vmem:[#allocation4 + $0x8] sm:$0xf]
    %v3305 = vld [vmem:[#allocation4 + $0xc] sm:$0xf]
    %v3306 = vld [vmem:[#allocation4 + $0x10] sm:$0xf]
    %v3307 = vld [vmem:[#allocation4 + $0x14] sm:$0xf]
    %v3308 = vld [vmem:[#allocation4 + $0x18] sm:$0xf]
    %v3309 = vld [vmem:[#allocation4 + $0x1c] sm:$0xf]
    %3310 = vst [vmem:[#allocation11] sm:$0xf] %v3302
    %3311 = vst [vmem:[#allocation11 + $0x4] sm:$0xf] %v3303
    %3312 = vst [vmem:[#allocation11 + $0x8] sm:$0xf] %v3304
    %3313 = vst [vmem:[#allocation11 + $0xc] sm:$0xf] %v3305
    %3314 = vst [vmem:[#allocation11 + $0x10] sm:$0xf] %v3306
    %3315 = vst [vmem:[#allocation11 + $0x14] sm:$0xf] %v3307
    %3316 = vst [vmem:[#allocation11 + $0x18] sm:$0xf] %v3308
    %3317 = vst [vmem:[#allocation11 + $0x1c] sm:$0xf] %v3309
    // Predicated region
    $region46: #{tpu_custom_call.1} parent=1 // pred_check
      %p3318 = pneg %p77
    $region47: #{tpu_custom_call.1} parent=1 // pred_check_branch
      %3320 = sbr.rel (%p3318) target = $region49
    $region48: #{tpu_custom_call.1} parent=1 // pred_region
      %v3321 = vld [vmem:[#allocation2] sm:$0xff]
      %3322 = vst [vmem:[#allocation12] sm:$0xff] %v3321
    $region49: #{tpu_custom_call.1} parent=1 // pred_fallthru
      _
    // Predicated region
    $region50: #{tpu_custom_call.1} parent=1 // pred_check
      _
    $region51: #{tpu_custom_call.1} parent=1 // pred_check_branch
      %3324 = sbr.rel (0) target = $region53
    $region52: #{tpu_custom_call.1} parent=1 // pred_region
      %3326 = vsyncadd [#allocation7], 0
      %s3327 = sshll.u32 [#allocation11], 4
      %s3328 = int_to_ptr.vmem [resolvable:$true] %s3327
      %s3329 = sshll.u32 %s7, 4
      %s3330 = int_to_ptr.hbm [resolvable:$true] %s3329
      %3335 = dma.vmem_to_hbm [thread:$0]  %s3328, 512, %s3330, [#allocation7], 64, 64, 4
    $region53: #{tpu_custom_call.1} parent=1 // pred_fallthru
      _
    // Predicated region
    $region54: #{tpu_custom_call.1} parent=1 // pred_check
      _
    $region55: #{tpu_custom_call.1} parent=1 // pred_check_branch
      %3337 = sbr.rel (0) target = $region57
    $region56: #{tpu_custom_call.1} parent=1 // pred_region
      %3339 = vsyncadd [#allocation13], 0
      %s3341 = sshll.u32 [#allocation12], 4
      %s3342 = int_to_ptr.vmem [resolvable:$true] %s3341
      %s3343 = sshll.u32 %s8, 4
      %s3344 = int_to_ptr.hbm [resolvable:$true] %s3343
      %3346 = dma.vmem_to_hbm [thread:$0]  %s3342, 128, %s3344, [#allocation13]
    $region57: #{tpu_custom_call.1} parent=1 // pred_fallthru
      _
    // Predicated region
    $region58: #{tpu_custom_call.1} parent=1 // pred_check
      _
    $region59: #{tpu_custom_call.1} parent=1 // pred_check_branch
      %3348 = sbr.rel (0) target = $region61
    $region60: #{tpu_custom_call.1} parent=1 // pred_region
      %3350 = dma.done [#allocation7], 512
    $region61: #{tpu_custom_call.1} parent=1 // pred_fallthru
      _
    // Predicated region
    $region62: #{tpu_custom_call.1} parent=1 // pred_check
      _
    $region63: #{tpu_custom_call.1} parent=1 // pred_check_branch
      %3352 = sbr.rel (0) target = $region65
    $region64: #{tpu_custom_call.1} parent=1 // pred_region
      %3354 = dma.done [#allocation13], 128
    $region65: #{tpu_custom_call.1} parent=1 // pred_fallthru
      _
    %3355 = vsyncpa [#allocation6], 1
    %3356 = vsyncpa [#allocation9], 1
    %3357 = vsyncpa [#allocation7], 1
    %3358 = vsyncpa [#allocation13], 1

</llo_original>
